<compile_context>
chip_gen: v5e
topology: v5e:2x2
jax: 0.10.0
libtpu: 0.0.40
codegen_flags: <defaults>
</compile_context>

<pallas_src>
import numpy as np
import jax
import jax.numpy as jnp
from jax import lax
from jax.experimental import pallas as pl
from jax.experimental.pallas import tpu as pltpu

# Geometry implied by SimpleNet's reshape((-1, 500)):
# 64 -> conv5 -> 60 -> pool3 -> 20 -> conv5 -> 16 -> pool3 -> 5 ; 20*5*5 = 500.
IMG = 64              # input H = W
P1 = 20               # pool1 output H = W (conv2 input)
S_REAL = P1 * P1      # 400: flattened pool1 spatial size
S = 416               # lane-padded width of the flattened pool1 map
C1P = 16              # conv1 channels (10) padded to a sublane multiple
K2 = 5 * C1P          # 80: dy-grouped conv2 contraction depth
W_R = 320             # conv2 flat-output width (idx = y*20+x, y < 16)
W_STK = 400           # width of the dx-stacked pool1 scratch
W_M = 256             # pool2 slab width consumed by the folded fc (needs >=253)
N_CLS = 15


# ---------------------------------------------------------------------------
# Fused kernel: one grid step = one image, everything stays on-chip.
# ---------------------------------------------------------------------------
def _simple_net_kernel(x_ref, w1_ref, b1_ref, w2_ref, b2_ref, afc_ref, bfc_ref,
                       o_ref, stk_ref):
    x = x_ref[0]                                            # (49, S)

    # ---- conv1 -> MaxPool(3): one MXU dot + 9-phase max on sublane groups --
    pre = jnp.dot(w1_ref[...], x,
                  preferred_element_type=jnp.float32)       # (9*C1P, S)
    p1 = pre[0:C1P]
    for g in range(1, 9):
        p1 = jnp.maximum(p1, pre[C1P * g:C1P * (g + 1)])
    # bias + ReLU deferred past the max (ReLU monotone, bias phase-invariant).
    p1 = jnp.maximum(p1 + b1_ref[...], 0.0)                 # (C1P, S)
    # p1[c, ph*20+pw] = maxpool(relu(conv1))[c, ph, pw]; rows 10..15 are pad.

    # ---- conv2: stack 5 dx-shifted copies once, then 5 dots with K = 80 ----
    for dx in range(5):
        stk_ref[C1P * dx:C1P * (dx + 1), :] = p1[:, dx:dx + W_STK]
    r = jnp.zeros((20, W_R), jnp.float32)
    for dy in range(5):
        r = r + jnp.dot(w2_ref[dy], stk_ref[:, P1 * dy:P1 * dy + W_R],
                        preferred_element_type=jnp.float32)  # (20,80)@(80,320)
    # r[o, y*20+x] = conv2_pre[o, y, x]; columns with x >= 16 are unused junk.

    # ---- MaxPool(3): max over the 9 window offsets (stride folded into afc) -
    m = r[:, 0:W_M]
    for i in range(3):
        for j in range(3):
            off = P1 * i + j
            if off:
                m = jnp.maximum(m, r[:, off:off + W_M])      # (20, W_M)
    m = jnp.maximum(m + b2_ref[...], 0.0)                    # bias+ReLU deferred
    # m[c, 60*ph+3*pw] = maxpool(relu(conv2))[c, ph, pw]; other lanes are junk
    # that multiplies zero rows of afc below.

    # ---- fc1 ∘ fc2 folded into one affine map (no nonlinearity in between) --
    y = bfc_ref[...]                                         # (1, 15)
    for c in range(20):
        y = y + jnp.dot(m[c:c + 1, :], afc_ref[c],
                        preferred_element_type=jnp.float32)  # (1,W_M)@(W_M,15)
    o_ref[...] = y.reshape(1, 1, N_CLS)


# ---------------------------------------------------------------------------
# Wrapper-side prep (tiny, fused by XLA, runs once per forward on the input).
# ---------------------------------------------------------------------------
def _superpatches(x_nchw):
    """(N,1,64,64) -> (N,49,S): X[n, 7u+v, 20ph+pw] = x[n,0, 3ph+u, 3pw+v]."""
    assert x_nchw.shape[1:] == (1, IMG, IMG)
    x2d = x_nchw[:, 0].astype(jnp.float32)                   # (N, 64, 64)
    n = x2d.shape[0]
    cols = []
    for u in range(7):
        for v in range(7):
            sub = x2d[:, u:u + 3 * P1 - 2:3, v:v + 3 * P1 - 2:3]   # (N,20,20)
            cols.append(sub.reshape(n, 1, S_REAL))
    xp = jnp.concatenate(cols, axis=1)                        # (N, 49, 400)
    return jnp.pad(xp, ((0, 0), (0, 0), (0, S - S_REAL)))     # (N, 49, S)


@jax.jit
def simple_net_forward(x_nchw, fused):
    n = x_nchw.shape[0]
    xp = _superpatches(x_nchw)
    out = pl.pallas_call(
        _simple_net_kernel,
        out_shape=jax.ShapeDtypeStruct((n, 1, N_CLS), jnp.float32),
        grid_spec=pltpu.PrefetchScalarGridSpec(
            num_scalar_prefetch=0,
            grid=(n,),
            in_specs=[
                pl.BlockSpec((1, 49, S), lambda b: (b, 0, 0)),        # patches
                pl.BlockSpec((9 * C1P, 49), lambda b: (0, 0)),        # conv1 (folded)
                pl.BlockSpec((C1P, 1), lambda b: (0, 0)),             # conv1 bias
                pl.BlockSpec((5, 20, K2), lambda b: (0, 0, 0)),       # conv2 (dy-grouped)
                pl.BlockSpec((20, 1), lambda b: (0, 0)),              # conv2 bias
                pl.BlockSpec((20, W_M, N_CLS), lambda b: (0, 0, 0)),  # fc1∘fc2 (folded)
                pl.BlockSpec((1, N_CLS), lambda b: (0, 0)),           # fc bias
            ],
            out_specs=pl.BlockSpec((1, 1, N_CLS), lambda b: (b, 0, 0)),
            scratch_shapes=[pltpu.VMEM((5 * C1P, W_STK), jnp.float32)],
        ),
        compiler_params=pltpu.CompilerParams(
            dimension_semantics=("parallel",)),
    )(xp, fused["w1"], fused["b1"], fused["w2"], fused["b2"],
      fused["afc"], fused["bfc"])
    return out.reshape(n, N_CLS)


# ---------------------------------------------------------------------------
# One-time host-side (numpy) folding of PyTorch-layout weights.
# ---------------------------------------------------------------------------
def prepare_fused_params(p):
    p = {k: np.asarray(v, np.float32) for k, v in p.items()}

    # conv1: OIHW (10,1,5,5) -> per-pool-phase stacked matrix (9*16, 49).
    w1 = p["conv1_w"][:, 0]                                   # (10, 5, 5)
    w1_all = np.zeros((9 * C1P, 49), np.float32)
    for i in range(3):
        for j in range(3):
            frame = np.zeros((C1P, 7, 7), np.float32)
            frame[:10, i:i + 5, j:j + 5] = w1
            g = 3 * i + j
            w1_all[C1P * g:C1P * (g + 1)] = frame.reshape(C1P, 49)
    b1 = np.zeros((C1P, 1), np.float32)
    b1[:10, 0] = p["conv1_b"]

    # conv2: OIHW (20,10,5,5) -> 5 dy-grouped (20, 5*16) matrices; column
    # index is 16*dx + c (channels 10..15 are zero pad).
    w2g = np.zeros((5, 20, K2), np.float32)
    for dy in range(5):
        for dx in range(5):
            w2g[dy, :, C1P * dx:C1P * dx + 10] = p["conv2_w"][:, :, dy, dx]
    b2 = p["conv2_b"].reshape(20, 1)

    # fc1 ∘ fc2 folded (no nonlinearity between them): scores = flat @ Wc.T + bc.
    wc = p["fc2_w"] @ p["fc1_w"]                              # (15, 500)
    bc = p["fc2_w"] @ p["fc1_b"] + p["fc2_b"]                 # (15,)
    wct = wc.T.reshape(20, 5, 5, N_CLS)                       # [c, ph, pw, k]
    afc = np.zeros((20, W_M, N_CLS), np.float32)              # stride-3 pool
    for ph in range(5):                                       # selection + NCHW
        for pw in range(5):                                   # flatten folded in
            afc[:, 60 * ph + 3 * pw, :] = wct[:, ph, pw, :]
    bfc = bc.reshape(1, N_CLS)

    return dict(w1=jnp.asarray(w1_all), b1=jnp.asarray(b1), w2=jnp.asarray(w2g),
                b2=jnp.asarray(b2), afc=jnp.asarray(afc), bfc=jnp.asarray(bfc))


def init_torch_layout_params(key):
    """Parameters in the original PyTorch layouts (conv OIHW, linear (out,in))."""
    ks = jax.random.split(key, 8)
    s = 0.05
    return {
        "conv1_w": s * jax.random.normal(ks[0], (10, 1, 5, 5), jnp.float32),
        "conv1_b": s * jax.random.normal(ks[1], (10,), jnp.float32),
        "conv2_w": s * jax.random.normal(ks[2], (20, 10, 5, 5), jnp.float32),
        "conv2_b": s * jax.random.normal(ks[3], (20,), jnp.float32),
        "fc1_w": s * jax.random.normal(ks[4], (100, 500), jnp.float32),
        "fc1_b": s * jax.random.normal(ks[5], (100,), jnp.float32),
        "fc2_w": s * jax.random.normal(ks[6], (15, 100), jnp.float32),
        "fc2_b": s * jax.random.normal(ks[7], (15,), jnp.float32),
    }


def reference_forward(x, p):
    """Pure-JAX (XLA) reference matching SimpleNet.forward exactly."""
    dn = ("NCHW", "OIHW", "NCHW")
    prec = lax.Precision.HIGHEST
    h = lax.conv_general_dilated(x, p["conv1_w"], (1, 1), "VALID",
                                 dimension_numbers=dn, precision=prec)
    h = jnp.maximum(h + p["conv1_b"][None, :, None, None], 0.0)
    h = lax.reduce_window(h, -jnp.inf, lax.max, (1, 1, 3, 3), (1, 1, 3, 3), "VALID")
    h = lax.conv_general_dilated(h, p["conv2_w"], (1, 1), "VALID",
                                 dimension_numbers=dn, precision=prec)
    h = jnp.maximum(h + p["conv2_b"][None, :, None, None], 0.0)
    h = lax.reduce_window(h, -jnp.inf, lax.max, (1, 1, 3, 3), (1, 1, 3, 3), "VALID")
    flat = h.reshape(-1, 500)
    fc1 = flat @ p["fc1_w"].T + p["fc1_b"]
    return fc1 @ p["fc2_w"].T + p["fc2_b"]


if __name__ == "__main__":
    key = jax.random.PRNGKey(0)
    k_param, k_x = jax.random.split(key)
    torch_params = init_torch_layout_params(k_param)
    fused = prepare_fused_params(torch_params)

    # (N, C, H, W) = (2, 1, 64, 64): the spatial size implied by
    # SimpleNet.forward's reshape((-1, 500)).
    x = jax.random.normal(k_x, (2, 1, 64, 64), jnp.float32)

    y = simple_net_forward(x, fused)
    jax.block_until_ready(y)
    assert y.shape == (2, 15) and y.dtype == jnp.float32

    y_ref = reference_forward(x, torch_params)
    err = float(jnp.max(jnp.abs(y - y_ref)))
    assert jnp.allclose(y, y_ref, atol=1e-2, rtol=1e-2), err

    # TODO(synk): loss_criterion (CrossEntropyLoss, reduction='sum') is defined
    # in SimpleNet.__init__ but never used in forward(), so it is not ported.
    print("KERNEL_OK")
</pallas_src>

<mosaic_0001>
module attributes {stable_mosaic.version = 11 : i64} {
  func.func @_simple_net_kernel(%arg0: i32, %arg1: memref<1x49x416xf32, #tpu.memory_space<vmem>>, %arg2: memref<144x49xf32, #tpu.memory_space<vmem>>, %arg3: memref<16x1xf32, #tpu.memory_space<vmem>>, %arg4: memref<5x20x80xf32, #tpu.memory_space<vmem>>, %arg5: memref<20x1xf32, #tpu.memory_space<vmem>>, %arg6: memref<20x256x15xf32, #tpu.memory_space<vmem>>, %arg7: memref<1x15xf32, #tpu.memory_space<vmem>>, %arg8: memref<1x1x15xf32, #tpu.memory_space<vmem>>, %arg9: memref<80x400xf32, #tpu.memory_space<vmem>>) attributes {dimension_semantics = [#tpu.dimension_semantics<parallel>], iteration_bounds = array<i64: 2>, scalar_prefetch = 0 : i64, scratch_operands = 1 : i64, tpu.core_type = #tpu.core_type<tc>, window_params = [{transform_indices = @transform_0, window_bounds = array<i64: 1, 49, 416>}, {pipeline_mode = #tpu.pipeline_mode<synchronous>, transform_indices = @transform_1, window_bounds = array<i64: 144, 49>}, {pipeline_mode = #tpu.pipeline_mode<synchronous>, transform_indices = @transform_2, window_bounds = array<i64: 16, 1>}, {pipeline_mode = #tpu.pipeline_mode<synchronous>, transform_indices = @transform_3, window_bounds = array<i64: 5, 20, 80>}, {pipeline_mode = #tpu.pipeline_mode<synchronous>, transform_indices = @transform_4, window_bounds = array<i64: 20, 1>}, {pipeline_mode = #tpu.pipeline_mode<synchronous>, transform_indices = @transform_5, window_bounds = array<i64: 20, 256, 15>}, {pipeline_mode = #tpu.pipeline_mode<synchronous>, transform_indices = @transform_6, window_bounds = array<i64: 1, 15>}, {transform_indices = @transform_7, window_bounds = array<i64: 1, 1, 15>}]} {
    %c0 = arith.constant 0 : index
    %c0_0 = arith.constant 0 : index
    %c0_1 = arith.constant 0 : index
    %0 = vector.load %arg1[%c0, %c0_0, %c0_1] : memref<1x49x416xf32, #tpu.memory_space<vmem>>, vector<1x49x416xf32>
    %1 = vector.shape_cast %0 : vector<1x49x416xf32> to vector<49x416xf32>
    %c0_2 = arith.constant 0 : index
    %c0_3 = arith.constant 0 : index
    %2 = vector.load %arg2[%c0_2, %c0_3] : memref<144x49xf32, #tpu.memory_space<vmem>>, vector<144x49xf32>
    %cst = arith.constant dense<0.000000e+00> : vector<144x416xf32>
    %3 = tpu.matmul %2, %1, %cst {dimension_numbers = #tpu.dot_dimension_numbers<[1], [0], [0], [1], [0, 0, 1, 1], [], []>} : vector<144x49xf32>, vector<49x416xf32>, vector<144x416xf32> -> vector<144x416xf32>
    %4 = vector.extract_strided_slice %3 {offsets = [0, 0], sizes = [16, 416], strides = [1, 1]} : vector<144x416xf32> to vector<16x416xf32>
    %5 = vector.extract_strided_slice %3 {offsets = [16, 0], sizes = [16, 416], strides = [1, 1]} : vector<144x416xf32> to vector<16x416xf32>
    %6 = arith.maximumf %4, %5 : vector<16x416xf32>
    %7 = vector.extract_strided_slice %3 {offsets = [32, 0], sizes = [16, 416], strides = [1, 1]} : vector<144x416xf32> to vector<16x416xf32>
    %8 = arith.maximumf %6, %7 : vector<16x416xf32>
    %9 = vector.extract_strided_slice %3 {offsets = [48, 0], sizes = [16, 416], strides = [1, 1]} : vector<144x416xf32> to vector<16x416xf32>
    %10 = arith.maximumf %8, %9 : vector<16x416xf32>
    %11 = vector.extract_strided_slice %3 {offsets = [64, 0], sizes = [16, 416], strides = [1, 1]} : vector<144x416xf32> to vector<16x416xf32>
    %12 = arith.maximumf %10, %11 : vector<16x416xf32>
    %13 = vector.extract_strided_slice %3 {offsets = [80, 0], sizes = [16, 416], strides = [1, 1]} : vector<144x416xf32> to vector<16x416xf32>
    %14 = arith.maximumf %12, %13 : vector<16x416xf32>
    %15 = vector.extract_strided_slice %3 {offsets = [96, 0], sizes = [16, 416], strides = [1, 1]} : vector<144x416xf32> to vector<16x416xf32>
    %16 = arith.maximumf %14, %15 : vector<16x416xf32>
    %17 = vector.extract_strided_slice %3 {offsets = [112, 0], sizes = [16, 416], strides = [1, 1]} : vector<144x416xf32> to vector<16x416xf32>
    %18 = arith.maximumf %16, %17 : vector<16x416xf32>
    %19 = vector.extract_strided_slice %3 {offsets = [128, 0], sizes = [16, 416], strides = [1, 1]} : vector<144x416xf32> to vector<16x416xf32>
    %20 = arith.maximumf %18, %19 : vector<16x416xf32>
    %c0_4 = arith.constant 0 : index
    %c0_5 = arith.constant 0 : index
    %21 = vector.load %arg3[%c0_4, %c0_5] : memref<16x1xf32, #tpu.memory_space<vmem>>, vector<16x1xf32>
    %22 = vector.broadcast %21 : vector<16x1xf32> to vector<16x416xf32>
    %23 = arith.addf %20, %22 : vector<16x416xf32>
    %cst_6 = arith.constant 0.000000e+00 : f32
    %24 = vector.broadcast %cst_6 : f32 to vector<16x416xf32>
    %25 = arith.maximumf %23, %24 : vector<16x416xf32>
    %26 = vector.extract_strided_slice %25 {offsets = [0, 0], sizes = [16, 400], strides = [1, 1]} : vector<16x416xf32> to vector<16x400xf32>
    %c0_7 = arith.constant 0 : index
    %c0_8 = arith.constant 0 : index
    %27 = vector.load %arg9[%c0_7, %c0_8] : memref<80x400xf32, #tpu.memory_space<vmem>>, vector<16x400xf32>
    tpu.vector_store %arg9[%c0_7, %c0_8], %26 {strides = array<i32>} : memref<80x400xf32, #tpu.memory_space<vmem>>, vector<16x400xf32>,
    %28 = vector.extract_strided_slice %25 {offsets = [0, 1], sizes = [16, 400], strides = [1, 1]} : vector<16x416xf32> to vector<16x400xf32>
    %c16 = arith.constant 16 : index
    %c0_9 = arith.constant 0 : index
    %29 = vector.load %arg9[%c16, %c0_9] : memref<80x400xf32, #tpu.memory_space<vmem>>, vector<16x400xf32>
    tpu.vector_store %arg9[%c16, %c0_9], %28 {strides = array<i32>} : memref<80x400xf32, #tpu.memory_space<vmem>>, vector<16x400xf32>,
    %30 = vector.extract_strided_slice %25 {offsets = [0, 2], sizes = [16, 400], strides = [1, 1]} : vector<16x416xf32> to vector<16x400xf32>
    %c32 = arith.constant 32 : index
    %c0_10 = arith.constant 0 : index
    %31 = vector.load %arg9[%c32, %c0_10] : memref<80x400xf32, #tpu.memory_space<vmem>>, vector<16x400xf32>
    tpu.vector_store %arg9[%c32, %c0_10], %30 {strides = array<i32>} : memref<80x400xf32, #tpu.memory_space<vmem>>, vector<16x400xf32>,
    %32 = vector.extract_strided_slice %25 {offsets = [0, 3], sizes = [16, 400], strides = [1, 1]} : vector<16x416xf32> to vector<16x400xf32>
    %c48 = arith.constant 48 : index
    %c0_11 = arith.constant 0 : index
    %33 = vector.load %arg9[%c48, %c0_11] : memref<80x400xf32, #tpu.memory_space<vmem>>, vector<16x400xf32>
    tpu.vector_store %arg9[%c48, %c0_11], %32 {strides = array<i32>} : memref<80x400xf32, #tpu.memory_space<vmem>>, vector<16x400xf32>,
    %34 = vector.extract_strided_slice %25 {offsets = [0, 4], sizes = [16, 400], strides = [1, 1]} : vector<16x416xf32> to vector<16x400xf32>
    %c64 = arith.constant 64 : index
    %c0_12 = arith.constant 0 : index
    %35 = vector.load %arg9[%c64, %c0_12] : memref<80x400xf32, #tpu.memory_space<vmem>>, vector<16x400xf32>
    tpu.vector_store %arg9[%c64, %c0_12], %34 {strides = array<i32>} : memref<80x400xf32, #tpu.memory_space<vmem>>, vector<16x400xf32>,
    %cst_13 = arith.constant 0.000000e+00 : f32
    %36 = vector.broadcast %cst_13 : f32 to vector<20x320xf32>
    %c0_14 = arith.constant 0 : index
    %c0_15 = arith.constant 0 : index
    %c0_16 = arith.constant 0 : index
    %37 = vector.load %arg4[%c0_14, %c0_15, %c0_16] : memref<5x20x80xf32, #tpu.memory_space<vmem>>, vector<1x20x80xf32>
    %38 = vector.shape_cast %37 : vector<1x20x80xf32> to vector<20x80xf32>
    %c0_17 = arith.constant 0 : index
    %c0_18 = arith.constant 0 : index
    %39 = vector.load %arg9[%c0_17, %c0_18] : memref<80x400xf32, #tpu.memory_space<vmem>>, vector<80x320xf32>
    %cst_19 = arith.constant dense<0.000000e+00> : vector<20x320xf32>
    %40 = tpu.matmul %38, %39, %cst_19 {dimension_numbers = #tpu.dot_dimension_numbers<[1], [0], [0], [1], [0, 0, 1, 1], [], []>} : vector<20x80xf32>, vector<80x320xf32>, vector<20x320xf32> -> vector<20x320xf32>
    %41 = arith.addf %36, %40 : vector<20x320xf32>
    %c1 = arith.constant 1 : index
    %c0_20 = arith.constant 0 : index
    %c0_21 = arith.constant 0 : index
    %42 = vector.load %arg4[%c1, %c0_20, %c0_21] : memref<5x20x80xf32, #tpu.memory_space<vmem>>, vector<1x20x80xf32>
    %43 = vector.shape_cast %42 : vector<1x20x80xf32> to vector<20x80xf32>
    %c0_22 = arith.constant 0 : index
    %c20 = arith.constant 20 : index
    %44 = vector.load %arg9[%c0_22, %c20] : memref<80x400xf32, #tpu.memory_space<vmem>>, vector<80x320xf32>
    %cst_23 = arith.constant dense<0.000000e+00> : vector<20x320xf32>
    %45 = tpu.matmul %43, %44, %cst_23 {dimension_numbers = #tpu.dot_dimension_numbers<[1], [0], [0], [1], [0, 0, 1, 1], [], []>} : vector<20x80xf32>, vector<80x320xf32>, vector<20x320xf32> -> vector<20x320xf32>
    %46 = arith.addf %41, %45 : vector<20x320xf32>
    %c2 = arith.constant 2 : index
    %c0_24 = arith.constant 0 : index
    %c0_25 = arith.constant 0 : index
    %47 = vector.load %arg4[%c2, %c0_24, %c0_25] : memref<5x20x80xf32, #tpu.memory_space<vmem>>, vector<1x20x80xf32>
    %48 = vector.shape_cast %47 : vector<1x20x80xf32> to vector<20x80xf32>
    %c0_26 = arith.constant 0 : index
    %c40 = arith.constant 40 : index
    %49 = vector.load %arg9[%c0_26, %c40] : memref<80x400xf32, #tpu.memory_space<vmem>>, vector<80x320xf32>
    %cst_27 = arith.constant dense<0.000000e+00> : vector<20x320xf32>
    %50 = tpu.matmul %48, %49, %cst_27 {dimension_numbers = #tpu.dot_dimension_numbers<[1], [0], [0], [1], [0, 0, 1, 1], [], []>} : vector<20x80xf32>, vector<80x320xf32>, vector<20x320xf32> -> vector<20x320xf32>
    %51 = arith.addf %46, %50 : vector<20x320xf32>
    %c3 = arith.constant 3 : index
    %c0_28 = arith.constant 0 : index
    %c0_29 = arith.constant 0 : index
    %52 = vector.load %arg4[%c3, %c0_28, %c0_29] : memref<5x20x80xf32, #tpu.memory_space<vmem>>, vector<1x20x80xf32>
    %53 = vector.shape_cast %52 : vector<1x20x80xf32> to vector<20x80xf32>
    %c0_30 = arith.constant 0 : index
    %c60 = arith.constant 60 : index
    %54 = vector.load %arg9[%c0_30, %c60] : memref<80x400xf32, #tpu.memory_space<vmem>>, vector<80x320xf32>
    %cst_31 = arith.constant dense<0.000000e+00> : vector<20x320xf32>
    %55 = tpu.matmul %53, %54, %cst_31 {dimension_numbers = #tpu.dot_dimension_numbers<[1], [0], [0], [1], [0, 0, 1, 1], [], []>} : vector<20x80xf32>, vector<80x320xf32>, vector<20x320xf32> -> vector<20x320xf32>
    %56 = arith.addf %51, %55 : vector<20x320xf32>
    %c4 = arith.constant 4 : index
    %c0_32 = arith.constant 0 : index
    %c0_33 = arith.constant 0 : index
    %57 = vector.load %arg4[%c4, %c0_32, %c0_33] : memref<5x20x80xf32, #tpu.memory_space<vmem>>, vector<1x20x80xf32>
    %58 = vector.shape_cast %57 : vector<1x20x80xf32> to vector<20x80xf32>
    %c0_34 = arith.constant 0 : index
    %c80 = arith.constant 80 : index
    %59 = vector.load %arg9[%c0_34, %c80] : memref<80x400xf32, #tpu.memory_space<vmem>>, vector<80x320xf32>
    %cst_35 = arith.constant dense<0.000000e+00> : vector<20x320xf32>
    %60 = tpu.matmul %58, %59, %cst_35 {dimension_numbers = #tpu.dot_dimension_numbers<[1], [0], [0], [1], [0, 0, 1, 1], [], []>} : vector<20x80xf32>, vector<80x320xf32>, vector<20x320xf32> -> vector<20x320xf32>
    %61 = arith.addf %56, %60 : vector<20x320xf32>
    %62 = vector.extract_strided_slice %61 {offsets = [0, 0], sizes = [20, 256], strides = [1, 1]} : vector<20x320xf32> to vector<20x256xf32>
    %63 = vector.extract_strided_slice %61 {offsets = [0, 1], sizes = [20, 256], strides = [1, 1]} : vector<20x320xf32> to vector<20x256xf32>
    %64 = arith.maximumf %62, %63 : vector<20x256xf32>
    %65 = vector.extract_strided_slice %61 {offsets = [0, 2], sizes = [20, 256], strides = [1, 1]} : vector<20x320xf32> to vector<20x256xf32>
    %66 = arith.maximumf %64, %65 : vector<20x256xf32>
    %67 = vector.extract_strided_slice %61 {offsets = [0, 20], sizes = [20, 256], strides = [1, 1]} : vector<20x320xf32> to vector<20x256xf32>
    %68 = arith.maximumf %66, %67 : vector<20x256xf32>
    %69 = vector.extract_strided_slice %61 {offsets = [0, 21], sizes = [20, 256], strides = [1, 1]} : vector<20x320xf32> to vector<20x256xf32>
    %70 = arith.maximumf %68, %69 : vector<20x256xf32>
    %71 = vector.extract_strided_slice %61 {offsets = [0, 22], sizes = [20, 256], strides = [1, 1]} : vector<20x320xf32> to vector<20x256xf32>
    %72 = arith.maximumf %70, %71 : vector<20x256xf32>
    %73 = vector.extract_strided_slice %61 {offsets = [0, 40], sizes = [20, 256], strides = [1, 1]} : vector<20x320xf32> to vector<20x256xf32>
    %74 = arith.maximumf %72, %73 : vector<20x256xf32>
    %75 = vector.extract_strided_slice %61 {offsets = [0, 41], sizes = [20, 256], strides = [1, 1]} : vector<20x320xf32> to vector<20x256xf32>
    %76 = arith.maximumf %74, %75 : vector<20x256xf32>
    %77 = vector.extract_strided_slice %61 {offsets = [0, 42], sizes = [20, 256], strides = [1, 1]} : vector<20x320xf32> to vector<20x256xf32>
    %78 = arith.maximumf %76, %77 : vector<20x256xf32>
    %c0_36 = arith.constant 0 : index
    %c0_37 = arith.constant 0 : index
    %79 = vector.load %arg5[%c0_36, %c0_37] : memref<20x1xf32, #tpu.memory_space<vmem>>, vector<20x1xf32>
    %80 = vector.broadcast %79 : vector<20x1xf32> to vector<20x256xf32>
    %81 = arith.addf %78, %80 : vector<20x256xf32>
    %cst_38 = arith.constant 0.000000e+00 : f32
    %82 = vector.broadcast %cst_38 : f32 to vector<20x256xf32>
    %83 = arith.maximumf %81, %82 : vector<20x256xf32>
    %c0_39 = arith.constant 0 : index
    %c0_40 = arith.constant 0 : index
    %84 = vector.load %arg7[%c0_39, %c0_40] : memref<1x15xf32, #tpu.memory_space<vmem>>, vector<1x15xf32>
    %85 = vector.extract_strided_slice %83 {offsets = [0, 0], sizes = [1, 256], strides = [1, 1]} : vector<20x256xf32> to vector<1x256xf32>
    %c0_41 = arith.constant 0 : index
    %c0_42 = arith.constant 0 : index
    %c0_43 = arith.constant 0 : index
    %86 = vector.load %arg6[%c0_41, %c0_42, %c0_43] : memref<20x256x15xf32, #tpu.memory_space<vmem>>, vector<1x256x15xf32>
    %87 = vector.shape_cast %86 : vector<1x256x15xf32> to vector<256x15xf32>
    %cst_44 = arith.constant dense<0.000000e+00> : vector<1x15xf32>
    %88 = tpu.matmul %85, %87, %cst_44 {dimension_numbers = #tpu.dot_dimension_numbers<[1], [0], [0], [1], [0, 0, 1, 1], [], []>} : vector<1x256xf32>, vector<256x15xf32>, vector<1x15xf32> -> vector<1x15xf32>
    %89 = arith.addf %84, %88 : vector<1x15xf32>
    %90 = vector.extract_strided_slice %83 {offsets = [1, 0], sizes = [1, 256], strides = [1, 1]} : vector<20x256xf32> to vector<1x256xf32>
    %c1_45 = arith.constant 1 : index
    %c0_46 = arith.constant 0 : index
    %c0_47 = arith.constant 0 : index
    %91 = vector.load %arg6[%c1_45, %c0_46, %c0_47] : memref<20x256x15xf32, #tpu.memory_space<vmem>>, vector<1x256x15xf32>
    %92 = vector.shape_cast %91 : vector<1x256x15xf32> to vector<256x15xf32>
    %cst_48 = arith.constant dense<0.000000e+00> : vector<1x15xf32>
    %93 = tpu.matmul %90, %92, %cst_48 {dimension_numbers = #tpu.dot_dimension_numbers<[1], [0], [0], [1], [0, 0, 1, 1], [], []>} : vector<1x256xf32>, vector<256x15xf32>, vector<1x15xf32> -> vector<1x15xf32>
    %94 = arith.addf %89, %93 : vector<1x15xf32>
    %95 = vector.extract_strided_slice %83 {offsets = [2, 0], sizes = [1, 256], strides = [1, 1]} : vector<20x256xf32> to vector<1x256xf32>
    %c2_49 = arith.constant 2 : index
    %c0_50 = arith.constant 0 : index
    %c0_51 = arith.constant 0 : index
    %96 = vector.load %arg6[%c2_49, %c0_50, %c0_51] : memref<20x256x15xf32, #tpu.memory_space<vmem>>, vector<1x256x15xf32>
    %97 = vector.shape_cast %96 : vector<1x256x15xf32> to vector<256x15xf32>
    %cst_52 = arith.constant dense<0.000000e+00> : vector<1x15xf32>
    %98 = tpu.matmul %95, %97, %cst_52 {dimension_numbers = #tpu.dot_dimension_numbers<[1], [0], [0], [1], [0, 0, 1, 1], [], []>} : vector<1x256xf32>, vector<256x15xf32>, vector<1x15xf32> -> vector<1x15xf32>
    %99 = arith.addf %94, %98 : vector<1x15xf32>
    %100 = vector.extract_strided_slice %83 {offsets = [3, 0], sizes = [1, 256], strides = [1, 1]} : vector<20x256xf32> to vector<1x256xf32>
    %c3_53 = arith.constant 3 : index
    %c0_54 = arith.constant 0 : index
    %c0_55 = arith.constant 0 : index
    %101 = vector.load %arg6[%c3_53, %c0_54, %c0_55] : memref<20x256x15xf32, #tpu.memory_space<vmem>>, vector<1x256x15xf32>
    %102 = vector.shape_cast %101 : vector<1x256x15xf32> to vector<256x15xf32>
    %cst_56 = arith.constant dense<0.000000e+00> : vector<1x15xf32>
    %103 = tpu.matmul %100, %102, %cst_56 {dimension_numbers = #tpu.dot_dimension_numbers<[1], [0], [0], [1], [0, 0, 1, 1], [], []>} : vector<1x256xf32>, vector<256x15xf32>, vector<1x15xf32> -> vector<1x15xf32>
    %104 = arith.addf %99, %103 : vector<1x15xf32>
    %105 = vector.extract_strided_slice %83 {offsets = [4, 0], sizes = [1, 256], strides = [1, 1]} : vector<20x256xf32> to vector<1x256xf32>
    %c4_57 = arith.constant 4 : index
    %c0_58 = arith.constant 0 : index
    %c0_59 = arith.constant 0 : index
    %106 = vector.load %arg6[%c4_57, %c0_58, %c0_59] : memref<20x256x15xf32, #tpu.memory_space<vmem>>, vector<1x256x15xf32>
    %107 = vector.shape_cast %106 : vector<1x256x15xf32> to vector<256x15xf32>
    %cst_60 = arith.constant dense<0.000000e+00> : vector<1x15xf32>
    %108 = tpu.matmul %105, %107, %cst_60 {dimension_numbers = #tpu.dot_dimension_numbers<[1], [0], [0], [1], [0, 0, 1, 1], [], []>} : vector<1x256xf32>, vector<256x15xf32>, vector<1x15xf32> -> vector<1x15xf32>
    %109 = arith.addf %104, %108 : vector<1x15xf32>
    %110 = vector.extract_strided_slice %83 {offsets = [5, 0], sizes = [1, 256], strides = [1, 1]} : vector<20x256xf32> to vector<1x256xf32>
    %c5 = arith.constant 5 : index
    %c0_61 = arith.constant 0 : index
    %c0_62 = arith.constant 0 : index
    %111 = vector.load %arg6[%c5, %c0_61, %c0_62] : memref<20x256x15xf32, #tpu.memory_space<vmem>>, vector<1x256x15xf32>
    %112 = vector.shape_cast %111 : vector<1x256x15xf32> to vector<256x15xf32>
    %cst_63 = arith.constant dense<0.000000e+00> : vector<1x15xf32>
    %113 = tpu.matmul %110, %112, %cst_63 {dimension_numbers = #tpu.dot_dimension_numbers<[1], [0], [0], [1], [0, 0, 1, 1], [], []>} : vector<1x256xf32>, vector<256x15xf32>, vector<1x15xf32> -> vector<1x15xf32>
    %114 = arith.addf %109, %113 : vector<1x15xf32>
    %115 = vector.extract_strided_slice %83 {offsets = [6, 0], sizes = [1, 256], strides = [1, 1]} : vector<20x256xf32> to vector<1x256xf32>
    %c6 = arith.constant 6 : index
    %c0_64 = arith.constant 0 : index
    %c0_65 = arith.constant 0 : index
    %116 = vector.load %arg6[%c6, %c0_64, %c0_65] : memref<20x256x15xf32, #tpu.memory_space<vmem>>, vector<1x256x15xf32>
    %117 = vector.shape_cast %116 : vector<1x256x15xf32> to vector<256x15xf32>
    %cst_66 = arith.constant dense<0.000000e+00> : vector<1x15xf32>
    %118 = tpu.matmul %115, %117, %cst_66 {dimension_numbers = #tpu.dot_dimension_numbers<[1], [0], [0], [1], [0, 0, 1, 1], [], []>} : vector<1x256xf32>, vector<256x15xf32>, vector<1x15xf32> -> vector<1x15xf32>
    %119 = arith.addf %114, %118 : vector<1x15xf32>
    %120 = vector.extract_strided_slice %83 {offsets = [7, 0], sizes = [1, 256], strides = [1, 1]} : vector<20x256xf32> to vector<1x256xf32>
    %c7 = arith.constant 7 : index
    %c0_67 = arith.constant 0 : index
    %c0_68 = arith.constant 0 : index
    %121 = vector.load %arg6[%c7, %c0_67, %c0_68] : memref<20x256x15xf32, #tpu.memory_space<vmem>>, vector<1x256x15xf32>
    %122 = vector.shape_cast %121 : vector<1x256x15xf32> to vector<256x15xf32>
    %cst_69 = arith.constant dense<0.000000e+00> : vector<1x15xf32>
    %123 = tpu.matmul %120, %122, %cst_69 {dimension_numbers = #tpu.dot_dimension_numbers<[1], [0], [0], [1], [0, 0, 1, 1], [], []>} : vector<1x256xf32>, vector<256x15xf32>, vector<1x15xf32> -> vector<1x15xf32>
    %124 = arith.addf %119, %123 : vector<1x15xf32>
    %125 = vector.extract_strided_slice %83 {offsets = [8, 0], sizes = [1, 256], strides = [1, 1]} : vector<20x256xf32> to vector<1x256xf32>
    %c8 = arith.constant 8 : index
    %c0_70 = arith.constant 0 : index
    %c0_71 = arith.constant 0 : index
    %126 = vector.load %arg6[%c8, %c0_70, %c0_71] : memref<20x256x15xf32, #tpu.memory_space<vmem>>, vector<1x256x15xf32>
    %127 = vector.shape_cast %126 : vector<1x256x15xf32> to vector<256x15xf32>
    %cst_72 = arith.constant dense<0.000000e+00> : vector<1x15xf32>
    %128 = tpu.matmul %125, %127, %cst_72 {dimension_numbers = #tpu.dot_dimension_numbers<[1], [0], [0], [1], [0, 0, 1, 1], [], []>} : vector<1x256xf32>, vector<256x15xf32>, vector<1x15xf32> -> vector<1x15xf32>
    %129 = arith.addf %124, %128 : vector<1x15xf32>
    %130 = vector.extract_strided_slice %83 {offsets = [9, 0], sizes = [1, 256], strides = [1, 1]} : vector<20x256xf32> to vector<1x256xf32>
    %c9 = arith.constant 9 : index
    %c0_73 = arith.constant 0 : index
    %c0_74 = arith.constant 0 : index
    %131 = vector.load %arg6[%c9, %c0_73, %c0_74] : memref<20x256x15xf32, #tpu.memory_space<vmem>>, vector<1x256x15xf32>
    %132 = vector.shape_cast %131 : vector<1x256x15xf32> to vector<256x15xf32>
    %cst_75 = arith.constant dense<0.000000e+00> : vector<1x15xf32>
    %133 = tpu.matmul %130, %132, %cst_75 {dimension_numbers = #tpu.dot_dimension_numbers<[1], [0], [0], [1], [0, 0, 1, 1], [], []>} : vector<1x256xf32>, vector<256x15xf32>, vector<1x15xf32> -> vector<1x15xf32>
    %134 = arith.addf %129, %133 : vector<1x15xf32>
    %135 = vector.extract_strided_slice %83 {offsets = [10, 0], sizes = [1, 256], strides = [1, 1]} : vector<20x256xf32> to vector<1x256xf32>
    %c10 = arith.constant 10 : index
    %c0_76 = arith.constant 0 : index
    %c0_77 = arith.constant 0 : index
    %136 = vector.load %arg6[%c10, %c0_76, %c0_77] : memref<20x256x15xf32, #tpu.memory_space<vmem>>, vector<1x256x15xf32>
    %137 = vector.shape_cast %136 : vector<1x256x15xf32> to vector<256x15xf32>
    %cst_78 = arith.constant dense<0.000000e+00> : vector<1x15xf32>
    %138 = tpu.matmul %135, %137, %cst_78 {dimension_numbers = #tpu.dot_dimension_numbers<[1], [0], [0], [1], [0, 0, 1, 1], [], []>} : vector<1x256xf32>, vector<256x15xf32>, vector<1x15xf32> -> vector<1x15xf32>
    %139 = arith.addf %134, %138 : vector<1x15xf32>
    %140 = vector.extract_strided_slice %83 {offsets = [11, 0], sizes = [1, 256], strides = [1, 1]} : vector<20x256xf32> to vector<1x256xf32>
    %c11 = arith.constant 11 : index
    %c0_79 = arith.constant 0 : index
    %c0_80 = arith.constant 0 : index
    %141 = vector.load %arg6[%c11, %c0_79, %c0_80] : memref<20x256x15xf32, #tpu.memory_space<vmem>>, vector<1x256x15xf32>
    %142 = vector.shape_cast %141 : vector<1x256x15xf32> to vector<256x15xf32>
    %cst_81 = arith.constant dense<0.000000e+00> : vector<1x15xf32>
    %143 = tpu.matmul %140, %142, %cst_81 {dimension_numbers = #tpu.dot_dimension_numbers<[1], [0], [0], [1], [0, 0, 1, 1], [], []>} : vector<1x256xf32>, vector<256x15xf32>, vector<1x15xf32> -> vector<1x15xf32>
    %144 = arith.addf %139, %143 : vector<1x15xf32>
    %145 = vector.extract_strided_slice %83 {offsets = [12, 0], sizes = [1, 256], strides = [1, 1]} : vector<20x256xf32> to vector<1x256xf32>
    %c12 = arith.constant 12 : index
    %c0_82 = arith.constant 0 : index
    %c0_83 = arith.constant 0 : index
    %146 = vector.load %arg6[%c12, %c0_82, %c0_83] : memref<20x256x15xf32, #tpu.memory_space<vmem>>, vector<1x256x15xf32>
    %147 = vector.shape_cast %146 : vector<1x256x15xf32> to vector<256x15xf32>
    %cst_84 = arith.constant dense<0.000000e+00> : vector<1x15xf32>
    %148 = tpu.matmul %145, %147, %cst_84 {dimension_numbers = #tpu.dot_dimension_numbers<[1], [0], [0], [1], [0, 0, 1, 1], [], []>} : vector<1x256xf32>, vector<256x15xf32>, vector<1x15xf32> -> vector<1x15xf32>
    %149 = arith.addf %144, %148 : vector<1x15xf32>
    %150 = vector.extract_strided_slice %83 {offsets = [13, 0], sizes = [1, 256], strides = [1, 1]} : vector<20x256xf32> to vector<1x256xf32>
    %c13 = arith.constant 13 : index
    %c0_85 = arith.constant 0 : index
    %c0_86 = arith.constant 0 : index
    %151 = vector.load %arg6[%c13, %c0_85, %c0_86] : memref<20x256x15xf32, #tpu.memory_space<vmem>>, vector<1x256x15xf32>
    %152 = vector.shape_cast %151 : vector<1x256x15xf32> to vector<256x15xf32>
    %cst_87 = arith.constant dense<0.000000e+00> : vector<1x15xf32>
    %153 = tpu.matmul %150, %152, %cst_87 {dimension_numbers = #tpu.dot_dimension_numbers<[1], [0], [0], [1], [0, 0, 1, 1], [], []>} : vector<1x256xf32>, vector<256x15xf32>, vector<1x15xf32> -> vector<1x15xf32>
    %154 = arith.addf %149, %153 : vector<1x15xf32>
    %155 = vector.extract_strided_slice %83 {offsets = [14, 0], sizes = [1, 256], strides = [1, 1]} : vector<20x256xf32> to vector<1x256xf32>
    %c14 = arith.constant 14 : index
    %c0_88 = arith.constant 0 : index
    %c0_89 = arith.constant 0 : index
    %156 = vector.load %arg6[%c14, %c0_88, %c0_89] : memref<20x256x15xf32, #tpu.memory_space<vmem>>, vector<1x256x15xf32>
    %157 = vector.shape_cast %156 : vector<1x256x15xf32> to vector<256x15xf32>
    %cst_90 = arith.constant dense<0.000000e+00> : vector<1x15xf32>
    %158 = tpu.matmul %155, %157, %cst_90 {dimension_numbers = #tpu.dot_dimension_numbers<[1], [0], [0], [1], [0, 0, 1, 1], [], []>} : vector<1x256xf32>, vector<256x15xf32>, vector<1x15xf32> -> vector<1x15xf32>
    %159 = arith.addf %154, %158 : vector<1x15xf32>
    %160 = vector.extract_strided_slice %83 {offsets = [15, 0], sizes = [1, 256], strides = [1, 1]} : vector<20x256xf32> to vector<1x256xf32>
    %c15 = arith.constant 15 : index
    %c0_91 = arith.constant 0 : index
    %c0_92 = arith.constant 0 : index
    %161 = vector.load %arg6[%c15, %c0_91, %c0_92] : memref<20x256x15xf32, #tpu.memory_space<vmem>>, vector<1x256x15xf32>
    %162 = vector.shape_cast %161 : vector<1x256x15xf32> to vector<256x15xf32>
    %cst_93 = arith.constant dense<0.000000e+00> : vector<1x15xf32>
    %163 = tpu.matmul %160, %162, %cst_93 {dimension_numbers = #tpu.dot_dimension_numbers<[1], [0], [0], [1], [0, 0, 1, 1], [], []>} : vector<1x256xf32>, vector<256x15xf32>, vector<1x15xf32> -> vector<1x15xf32>
    %164 = arith.addf %159, %163 : vector<1x15xf32>
    %165 = vector.extract_strided_slice %83 {offsets = [16, 0], sizes = [1, 256], strides = [1, 1]} : vector<20x256xf32> to vector<1x256xf32>
    %c16_94 = arith.constant 16 : index
    %c0_95 = arith.constant 0 : index
    %c0_96 = arith.constant 0 : index
    %166 = vector.load %arg6[%c16_94, %c0_95, %c0_96] : memref<20x256x15xf32, #tpu.memory_space<vmem>>, vector<1x256x15xf32>
    %167 = vector.shape_cast %166 : vector<1x256x15xf32> to vector<256x15xf32>
    %cst_97 = arith.constant dense<0.000000e+00> : vector<1x15xf32>
    %168 = tpu.matmul %165, %167, %cst_97 {dimension_numbers = #tpu.dot_dimension_numbers<[1], [0], [0], [1], [0, 0, 1, 1], [], []>} : vector<1x256xf32>, vector<256x15xf32>, vector<1x15xf32> -> vector<1x15xf32>
    %169 = arith.addf %164, %168 : vector<1x15xf32>
    %170 = vector.extract_strided_slice %83 {offsets = [17, 0], sizes = [1, 256], strides = [1, 1]} : vector<20x256xf32> to vector<1x256xf32>
    %c17 = arith.constant 17 : index
    %c0_98 = arith.constant 0 : index
    %c0_99 = arith.constant 0 : index
    %171 = vector.load %arg6[%c17, %c0_98, %c0_99] : memref<20x256x15xf32, #tpu.memory_space<vmem>>, vector<1x256x15xf32>
    %172 = vector.shape_cast %171 : vector<1x256x15xf32> to vector<256x15xf32>
    %cst_100 = arith.constant dense<0.000000e+00> : vector<1x15xf32>
    %173 = tpu.matmul %170, %172, %cst_100 {dimension_numbers = #tpu.dot_dimension_numbers<[1], [0], [0], [1], [0, 0, 1, 1], [], []>} : vector<1x256xf32>, vector<256x15xf32>, vector<1x15xf32> -> vector<1x15xf32>
    %174 = arith.addf %169, %173 : vector<1x15xf32>
    %175 = vector.extract_strided_slice %83 {offsets = [18, 0], sizes = [1, 256], strides = [1, 1]} : vector<20x256xf32> to vector<1x256xf32>
    %c18 = arith.constant 18 : index
    %c0_101 = arith.constant 0 : index
    %c0_102 = arith.constant 0 : index
    %176 = vector.load %arg6[%c18, %c0_101, %c0_102] : memref<20x256x15xf32, #tpu.memory_space<vmem>>, vector<1x256x15xf32>
    %177 = vector.shape_cast %176 : vector<1x256x15xf32> to vector<256x15xf32>
    %cst_103 = arith.constant dense<0.000000e+00> : vector<1x15xf32>
    %178 = tpu.matmul %175, %177, %cst_103 {dimension_numbers = #tpu.dot_dimension_numbers<[1], [0], [0], [1], [0, 0, 1, 1], [], []>} : vector<1x256xf32>, vector<256x15xf32>, vector<1x15xf32> -> vector<1x15xf32>
    %179 = arith.addf %174, %178 : vector<1x15xf32>
    %180 = vector.extract_strided_slice %83 {offsets = [19, 0], sizes = [1, 256], strides = [1, 1]} : vector<20x256xf32> to vector<1x256xf32>
    %c19 = arith.constant 19 : index
    %c0_104 = arith.constant 0 : index
    %c0_105 = arith.constant 0 : index
    %181 = vector.load %arg6[%c19, %c0_104, %c0_105] : memref<20x256x15xf32, #tpu.memory_space<vmem>>, vector<1x256x15xf32>
    %182 = vector.shape_cast %181 : vector<1x256x15xf32> to vector<256x15xf32>
    %cst_106 = arith.constant dense<0.000000e+00> : vector<1x15xf32>
    %183 = tpu.matmul %180, %182, %cst_106 {dimension_numbers = #tpu.dot_dimension_numbers<[1], [0], [0], [1], [0, 0, 1, 1], [], []>} : vector<1x256xf32>, vector<256x15xf32>, vector<1x15xf32> -> vector<1x15xf32>
    %184 = arith.addf %179, %183 : vector<1x15xf32>
    %185 = vector.shape_cast %184 : vector<1x15xf32> to vector<1x1x15xf32>
    %c0_107 = arith.constant 0 : index
    %c0_108 = arith.constant 0 : index
    %c0_109 = arith.constant 0 : index
    %186 = vector.load %arg8[%c0_107, %c0_108, %c0_109] : memref<1x1x15xf32, #tpu.memory_space<vmem>>, vector<1x1x15xf32>
    tpu.vector_store %arg8[%c0_107, %c0_108, %c0_109], %185 {strides = array<i32>} : memref<1x1x15xf32, #tpu.memory_space<vmem>>, vector<1x1x15xf32>,
    return
  }
  func.func @transform_0(%arg0: i32) -> (i32, i32, i32) {
    %c0_i32 = arith.constant 0 : i32
    %c0_i32_0 = arith.constant 0 : i32
    %c0_i32_1 = arith.constant 0 : i32
    return %arg0, %c0_i32, %c0_i32_0 : i32, i32, i32
  }
  func.func @transform_1(%arg0: i32) -> (i32, i32) {
    %c0_i32 = arith.constant 0 : i32
    %c0_i32_0 = arith.constant 0 : i32
    %c0_i32_1 = arith.constant 0 : i32
    return %c0_i32, %c0_i32_0 : i32, i32
  }
  func.func @transform_2(%arg0: i32) -> (i32, i32) {
    %c0_i32 = arith.constant 0 : i32
    %c0_i32_0 = arith.constant 0 : i32
    %c0_i32_1 = arith.constant 0 : i32
    return %c0_i32, %c0_i32_0 : i32, i32
  }
  func.func @transform_3(%arg0: i32) -> (i32, i32, i32) {
    %c0_i32 = arith.constant 0 : i32
    %c0_i32_0 = arith.constant 0 : i32
    %c0_i32_1 = arith.constant 0 : i32
    %c0_i32_2 = arith.constant 0 : i32
    return %c0_i32, %c0_i32_0, %c0_i32_1 : i32, i32, i32
  }
  func.func @transform_4(%arg0: i32) -> (i32, i32) {
    %c0_i32 = arith.constant 0 : i32
    %c0_i32_0 = arith.constant 0 : i32
    %c0_i32_1 = arith.constant 0 : i32
    return %c0_i32, %c0_i32_0 : i32, i32
  }
  func.func @transform_5(%arg0: i32) -> (i32, i32, i32) {
    %c0_i32 = arith.constant 0 : i32
    %c0_i32_0 = arith.constant 0 : i32
    %c0_i32_1 = arith.constant 0 : i32
    %c0_i32_2 = arith.constant 0 : i32
    return %c0_i32, %c0_i32_0, %c0_i32_1 : i32, i32, i32
  }
  func.func @transform_6(%arg0: i32) -> (i32, i32) {
    %c0_i32 = arith.constant 0 : i32
    %c0_i32_0 = arith.constant 0 : i32
    %c0_i32_1 = arith.constant 0 : i32
    return %c0_i32, %c0_i32_0 : i32, i32
  }
  func.func @transform_7(%arg0: i32) -> (i32, i32, i32) {
    %c0_i32 = arith.constant 0 : i32
    %c0_i32_0 = arith.constant 0 : i32
    %c0_i32_1 = arith.constant 0 : i32
    return %arg0, %c0_i32, %c0_i32_0 : i32, i32, i32
  }
}

</mosaic_0001>

<llo_original>
// kernel: simple_net_forward.1
$region0: #{simple_net_forward.1}
  #allocation0 [shape = 'u32[]', space=smem, size = 0x4, offset = 0x4, fixed_abs, tag = 'smem constant byte address 0x4 - core index']
  #allocation1 [shape = 'u32[72,128]{1,0:T(1,128)}', space=vmem, size = 0x9000, scoped, tag = 'internal scratch']
  #allocation2 [shape = 'f32[80,400]{1,0:T(8,128)}', space=vmem, size = 0x28000, scoped, tag = 'scratch operand']
  %s0 = inlined_call_operand.vmem [shape: f32[2,49,416], index: 0, kind: input, shape index: {}]
  %s1 = inlined_call_operand.vmem [shape: f32[144,49], index: 1, kind: input, shape index: {}]
  %s2 = inlined_call_operand.vmem [shape: f32[16,1], index: 2, kind: input, shape index: {}]
  %s3 = inlined_call_operand.vmem [shape: f32[5,20,80], index: 3, kind: input, shape index: {}]
  %s4 = inlined_call_operand.vmem [shape: f32[20,1], index: 4, kind: input, shape index: {}]
  %s5 = inlined_call_operand.vmem [shape: f32[20,256,15], index: 5, kind: input, shape index: {}]
  %s6 = inlined_call_operand.vmem [shape: f32[1,15], index: 6, kind: input, shape index: {}]
  %s7 = inlined_call_operand.hbm [shape: f32[2,1,15], index: 7, kind: output, shape index: {}]
  %s8 = sld [smem:[#allocation0]]
  $region61: #{simple_net_forward.1} parent=0
    _
  %s10 = ssub.s32 1, %s8
  %s11 = scalar_select 0, %s10, %s8
  $region1: #{simple_net_forward.1} parent=0
    #allocation3 [shape = 'u8[1024]{0}', space=vmem, size = 0x400, scoped, tag = 'output window, operand 0']
    #allocation4 [shape = 's32[2]{0}', space=sflag, size = 0x8, scoped, tag = 'scoped memory for simple_net_forward.1']
    %12 = vsyncpa [#allocation4], 0
    %s13 = scalar_lea.sflag [#allocation4], 1
    %14 = vsyncpa %s13, 0
    loop: start=0, step=1, limit=4
    $region2: #{simple_net_forward.1} parent=1 // loop_pre_header
      _
    $region3: #{simple_net_forward.1} parent=1 // loop_header
      %s16 = sphi 0, %s20
      %p17 = scmp.ge.s32.totalorder %s16, 4
      %s26 = sphi 0, %s28
      %s29 = sphi 0, %s26
      %s30 = sphi 0, %s29
      %s46 = sphi 0, %s30
      %s50 = sphi 0, %s50
      %s52 = sphi 0, %s50
      %s53 = sphi 0, %s52
      %s67 = sphi 0, %s53
      %s71 = sphi 0, %s71
      %s73 = sphi 0, %s71
      %s74 = sphi 0, %s73
      %s88 = sphi 0, %s74
      %s92 = sphi 0, %s92
      %s94 = sphi 0, %s92
      %s95 = sphi 0, %s94
      %s109 = sphi 0, %s95
      %s113 = sphi 0, %s113
      %s115 = sphi 0, %s113
      %s116 = sphi 0, %s115
      %s130 = sphi 0, %s116
      %s134 = sphi 0, %s134
      %s136 = sphi 0, %s134
      %s137 = sphi 0, %s136
      %s151 = sphi 0, %s137
      %s155 = sphi 0, %s155
      %s157 = sphi 0, %s155
      %s158 = sphi 0, %s157
      %s172 = sphi 0, %s158
      %s178 = sphi 0, %s180
      %s181 = sphi 0, %s178
      %s182 = sphi 0, %s181
      %s198 = sphi 0, %s182
    $region4: #{simple_net_forward.1} parent=1 // loop_header_branch
      %19 = sbr.rel (%p17) target = $region8
    $region5: #{simple_net_forward.1} parent=1 // loop_body
      %s21 = ssub.s32 %s16, 1
      %s22 = ssub.s32 %s16, 2
      %s23 = sadd.s32 %s16, 1
      %s24 = ssub.s32 %s16, %s23
      %p25 = scmp.eq.s32.totalorder %s24, 0
      %s27 = sadd.s32 %s26, 1
      %s28 = scalar_select %p25, %s26, %s27
      %p31 = pneg %p25
      %p32 = scmp.eq.s32.totalorder %s16, 1
      %p33 = por %p31, %p32
      %p34 = scmp.ne.s32.totalorder %s26, %s29
      %p35 = scmp.eq.s32.totalorder %s16, 0
      %p36 = por %p34, %p35
      %p37 = scmp.ne.s32.totalorder %s26, %s29
      %p38 = scmp.eq.s32.totalorder %s21, 1
      %p39 = por %p37, %p38
      %p40 = scmp.ne.s32.totalorder %s29, %s30
      %p41 = scmp.eq.s32.totalorder %s21, 0
      %p42 = por %p40, %p41
      %p43 = scmp.ne.s32.totalorder %s29, %s30
      %p44 = scmp.eq.s32.totalorder %s22, 1
      %p45 = por %p43, %p44
      %p47 = scmp.ne.s32.totalorder %s30, %s46
      %p48 = scmp.eq.s32.totalorder %s22, 0
      %p49 = por %p47, %p48
      %s51 = sadd.s32 %s50, 1
      %p54 = scmp.eq.s32.totalorder %s16, 1
      %p55 = scmp.ne.s32.totalorder %s50, %s52
      %p56 = scmp.eq.s32.totalorder %s16, 0
      %p57 = por %p55, %p56
      %p58 = scmp.ne.s32.totalorder %s50, %s52
      %p59 = scmp.eq.s32.totalorder %s21, 1
      %p60 = por %p58, %p59
      %p61 = scmp.ne.s32.totalorder %s52, %s53
      %p62 = scmp.eq.s32.totalorder %s21, 0
      %p63 = por %p61, %p62
      %p64 = scmp.ne.s32.totalorder %s52, %s53
      %p65 = scmp.eq.s32.totalorder %s22, 1
      %p66 = por %p64, %p65
      %p68 = scmp.ne.s32.totalorder %s53, %s67
      %p69 = scmp.eq.s32.totalorder %s22, 0
      %p70 = por %p68, %p69
      %s72 = sadd.s32 %s71, 1
      %p75 = scmp.eq.s32.totalorder %s16, 1
      %p76 = scmp.ne.s32.totalorder %s71, %s73
      %p77 = scmp.eq.s32.totalorder %s16, 0
      %p78 = por %p76, %p77
      %p79 = scmp.ne.s32.totalorder %s71, %s73
      %p80 = scmp.eq.s32.totalorder %s21, 1
      %p81 = por %p79, %p80
      %p82 = scmp.ne.s32.totalorder %s73, %s74
      %p83 = scmp.eq.s32.totalorder %s21, 0
      %p84 = por %p82, %p83
      %p85 = scmp.ne.s32.totalorder %s73, %s74
      %p86 = scmp.eq.s32.totalorder %s22, 1
      %p87 = por %p85, %p86
      %p89 = scmp.ne.s32.totalorder %s74, %s88
      %p90 = scmp.eq.s32.totalorder %s22, 0
      %p91 = por %p89, %p90
      %s93 = sadd.s32 %s92, 1
      %p96 = scmp.eq.s32.totalorder %s16, 1
      %p97 = scmp.ne.s32.totalorder %s92, %s94
      %p98 = scmp.eq.s32.totalorder %s16, 0
      %p99 = por %p97, %p98
      %p100 = scmp.ne.s32.totalorder %s92, %s94
      %p101 = scmp.eq.s32.totalorder %s21, 1
      %p102 = por %p100, %p101
      %p103 = scmp.ne.s32.totalorder %s94, %s95
      %p104 = scmp.eq.s32.totalorder %s21, 0
      %p105 = por %p103, %p104
      %p106 = scmp.ne.s32.totalorder %s94, %s95
      %p107 = scmp.eq.s32.totalorder %s22, 1
      %p108 = por %p106, %p107
      %p110 = scmp.ne.s32.totalorder %s95, %s109
      %p111 = scmp.eq.s32.totalorder %s22, 0
      %p112 = por %p110, %p111
      %s114 = sadd.s32 %s113, 1
      %p117 = scmp.eq.s32.totalorder %s16, 1
      %p118 = scmp.ne.s32.totalorder %s113, %s115
      %p119 = scmp.eq.s32.totalorder %s16, 0
      %p120 = por %p118, %p119
      %p121 = scmp.ne.s32.totalorder %s113, %s115
      %p122 = scmp.eq.s32.totalorder %s21, 1
      %p123 = por %p121, %p122
      %p124 = scmp.ne.s32.totalorder %s115, %s116
      %p125 = scmp.eq.s32.totalorder %s21, 0
      %p126 = por %p124, %p125
      %p127 = scmp.ne.s32.totalorder %s115, %s116
      %p128 = scmp.eq.s32.totalorder %s22, 1
      %p129 = por %p127, %p128
      %p131 = scmp.ne.s32.totalorder %s116, %s130
      %p132 = scmp.eq.s32.totalorder %s22, 0
      %p133 = por %p131, %p132
      %s135 = sadd.s32 %s134, 1
      %p138 = scmp.eq.s32.totalorder %s16, 1
      %p139 = scmp.ne.s32.totalorder %s134, %s136
      %p140 = scmp.eq.s32.totalorder %s16, 0
      %p141 = por %p139, %p140
      %p142 = scmp.ne.s32.totalorder %s134, %s136
      %p143 = scmp.eq.s32.totalorder %s21, 1
      %p144 = por %p142, %p143
      %p145 = scmp.ne.s32.totalorder %s136, %s137
      %p146 = scmp.eq.s32.totalorder %s21, 0
      %p147 = por %p145, %p146
      %p148 = scmp.ne.s32.totalorder %s136, %s137
      %p149 = scmp.eq.s32.totalorder %s22, 1
      %p150 = por %p148, %p149
      %p152 = scmp.ne.s32.totalorder %s137, %s151
      %p153 = scmp.eq.s32.totalorder %s22, 0
      %p154 = por %p152, %p153
      %s156 = sadd.s32 %s155, 1
      %p159 = scmp.eq.s32.totalorder %s16, 1
      %p160 = scmp.ne.s32.totalorder %s155, %s157
      %p161 = scmp.eq.s32.totalorder %s16, 0
      %p162 = por %p160, %p161
      %p163 = scmp.ne.s32.totalorder %s155, %s157
      %p164 = scmp.eq.s32.totalorder %s21, 1
      %p165 = por %p163, %p164
      %p166 = scmp.ne.s32.totalorder %s157, %s158
      %p167 = scmp.eq.s32.totalorder %s21, 0
      %p168 = por %p166, %p167
      %p169 = scmp.ne.s32.totalorder %s157, %s158
      %p170 = scmp.eq.s32.totalorder %s22, 1
      %p171 = por %p169, %p170
      %p173 = scmp.ne.s32.totalorder %s158, %s172
      %p174 = scmp.eq.s32.totalorder %s22, 0
      %p175 = por %p173, %p174
      %s176 = ssub.s32 %s16, %s23
      %p177 = scmp.eq.s32.totalorder %s176, 0
      %s179 = sadd.s32 %s178, 1
      %s180 = scalar_select %p177, %s178, %s179
      %p183 = pneg %p177
      %p184 = scmp.eq.s32.totalorder %s16, 1
      %p185 = por %p183, %p184
      %p186 = scmp.ne.s32.totalorder %s178, %s181
      %p187 = scmp.eq.s32.totalorder %s16, 0
      %p188 = por %p186, %p187
      %p189 = scmp.ne.s32.totalorder %s178, %s181
      %p190 = scmp.eq.s32.totalorder %s21, 1
      %p191 = por %p189, %p190
      %p192 = scmp.ne.s32.totalorder %s181, %s182
      %p193 = scmp.eq.s32.totalorder %s21, 0
      %p194 = por %p192, %p193
      %p195 = scmp.ne.s32.totalorder %s181, %s182
      %p196 = scmp.eq.s32.totalorder %s22, 1
      %p197 = por %p195, %p196
      %p199 = scmp.ne.s32.totalorder %s182, %s198
      %p200 = scmp.eq.s32.totalorder %s22, 0
      %p201 = por %p199, %p200
      %p202 = scmp.le.s32.totalorder 1, %s16
      %p203 = scmp.lt.s32.totalorder %s16, 3
      %p204 = pnand %p202, %p203
      %p205 = pneg %p204
      // Predicated region
      $region9: #{simple_net_forward.1} parent=5 // pred_check
        _
      $region10: #{simple_net_forward.1} parent=5 // pred_check_branch
        %207 = sbr.rel (%p204) target = $region12
      $region11: #{simple_net_forward.1} parent=5 // pred_region
        %s208 = ssub.s32 %s16, 1
        // Predicated region
        $region13: #{simple_net_forward.1} parent=11 // pred_check
          %p209 = pneg %p63
        $region14: #{simple_net_forward.1} parent=11 // pred_check_branch
          %211 = sbr.rel (%p209) target = $region16
        $region15: #{simple_net_forward.1} parent=11 // pred_region
          _
        $region16: #{simple_net_forward.1} parent=11 // pred_fallthru
          _
        // Predicated region
        $region17: #{simple_net_forward.1} parent=11 // pred_check
          %p212 = pneg %p84
        $region18: #{simple_net_forward.1} parent=11 // pred_check_branch
          %214 = sbr.rel (%p212) target = $region20
        $region19: #{simple_net_forward.1} parent=11 // pred_region
          _
        $region20: #{simple_net_forward.1} parent=11 // pred_fallthru
          _
        // Predicated region
        $region21: #{simple_net_forward.1} parent=11 // pred_check
          %p215 = pneg %p105
        $region22: #{simple_net_forward.1} parent=11 // pred_check_branch
          %217 = sbr.rel (%p215) target = $region24
        $region23: #{simple_net_forward.1} parent=11 // pred_region
          _
        $region24: #{simple_net_forward.1} parent=11 // pred_fallthru
          _
        // Predicated region
        $region25: #{simple_net_forward.1} parent=11 // pred_check
          %p218 = pneg %p126
        $region26: #{simple_net_forward.1} parent=11 // pred_check_branch
          %220 = sbr.rel (%p218) target = $region28
        $region27: #{simple_net_forward.1} parent=11 // pred_region
          _
        $region28: #{simple_net_forward.1} parent=11 // pred_fallthru
          _
        // Predicated region
        $region29: #{simple_net_forward.1} parent=11 // pred_check
          %p221 = pneg %p147
        $region30: #{simple_net_forward.1} parent=11 // pred_check_branch
          %223 = sbr.rel (%p221) target = $region32
        $region31: #{simple_net_forward.1} parent=11 // pred_region
          _
        $region32: #{simple_net_forward.1} parent=11 // pred_fallthru
          _
        // Predicated region
        $region33: #{simple_net_forward.1} parent=11 // pred_check
          %p224 = pneg %p168
        $region34: #{simple_net_forward.1} parent=11 // pred_check_branch
          %226 = sbr.rel (%p224) target = $region36
        $region35: #{simple_net_forward.1} parent=11 // pred_region
          _
        $region36: #{simple_net_forward.1} parent=11 // pred_fallthru
          _
      $region12: #{simple_net_forward.1} parent=5 // pred_fallthru
        _
      %p227 = scmp.lt.s32.totalorder %s16, 2
      // Predicated region
      $region37: #{simple_net_forward.1} parent=5 // pred_check
        %p228 = pneg %p227
      $region38: #{simple_net_forward.1} parent=5 // pred_check_branch
        %230 = sbr.rel (%p228) target = $region40
      $region39: #{simple_net_forward.1} parent=5 // pred_region
        // Predicated region
        $region41: #{simple_net_forward.1} parent=39 // pred_check
          %p231 = pneg %p36
        $region42: #{simple_net_forward.1} parent=39 // pred_check_branch
          %233 = sbr.rel (%p231) target = $region44
        $region43: #{simple_net_forward.1} parent=39 // pred_region
          %p234 = scmp.lt.s32.totalorder %s16, 1
          %s235 = scalar_select %p234, %s16, 1
          %s236 = smul.addr %s235, 28
          %s237 = smul.addr %s236, 8
          %s238 = scalar_lea.vmem %s0, %s237
        $region44: #{simple_net_forward.1} parent=39 // pred_fallthru
          _
      $region40: #{simple_net_forward.1} parent=5 // pred_fallthru
        _
      %p239 = scmp.le.s32.totalorder 1, %s16
      %p240 = scmp.lt.s32.totalorder %s16, 3
      %p241 = pnand %p239, %p240
      %p242 = pneg %p241
      // Predicated region
      $region45: #{simple_net_forward.1} parent=5 // pred_check
        _
      $region46: #{simple_net_forward.1} parent=5 // pred_check_branch
        %244 = sbr.rel (%p241) target = $region48
      $region47: #{simple_net_forward.1} parent=5 // pred_region
        %s245 = ssub.s32 %s16, 1
        %p246 = scmp.lt.s32.totalorder %s21, 1
        %s247 = scalar_select %p246, %s21, 1
        %s248 = smul.addr %s247, 28
        %s249 = smul.addr %s248, 8
        %s250 = scalar_lea.vmem %s0, %s249
        %p251 = pneg %p42
        %p252 = pneg %p39
        %p253 = pneg %p63
        %p254 = pneg %p60
        %p255 = pneg %p84
        %p256 = pneg %p81
        %p257 = pneg %p105
        %p258 = pneg %p102
        %p259 = pneg %p126
        %p260 = pneg %p123
        %p261 = pneg %p147
        %p262 = pneg %p144
        %p263 = pneg %p168
        %p264 = pneg %p165
        %p265 = pneg %p194
        %p266 = pneg %p191
        %s267 = sand.u32 %s181, 1
        %s268 = scalar_lea.sflag [#allocation4], %s267
        %s269 = sand.u32 %s181, 1
        %s270 = scalar_lea.vmem [#allocation3], %s269
        %p271 = scmp.lt.s32.totalorder %s21, 1
        %s272 = scalar_select %p271, %s21, 1
        %s273 = smul.addr %s272, 28
        %s274 = smul.addr %s273, 8
        %s275 = scalar_lea.vmem %s0, %s274
        %v276 = vld [vmem:[%s275] sm:$0xff]
        %v277 = vld [vmem:[%s275 + $0x8] sm:$0xff]
        %v278 = vld [vmem:[%s275 + $0x10] sm:$0xff]
        %v279 = vld [vmem:[%s275 + $0x18] sm:$0xff]
        %v280 = vld [vmem:[%s275 + $0x20] sm:$0xff]
        %v281 = vld [vmem:[%s275 + $0x28] sm:$0xff]
        %v282 = vld [vmem:[%s275 + $0x30] sm:$0xff]
        %v283 = vld [vmem:[%s275 + $0x38] sm:$0xff]
        %v284 = vld [vmem:[%s275 + $0x40] sm:$0xff]
        %v285 = vld [vmem:[%s275 + $0x48] sm:$0xff]
        %v286 = vld [vmem:[%s275 + $0x50] sm:$0xff]
        %v287 = vld [vmem:[%s275 + $0x58] sm:$0xff]
        %v288 = vld [vmem:[%s275 + $0x60] sm:$0xff]
        %v289 = vld [vmem:[%s275 + $0x68] sm:$0xff]
        %v290 = vld [vmem:[%s275 + $0x70] sm:$0xff]
        %v291 = vld [vmem:[%s275 + $0x78] sm:$0xff]
        %v292 = vld [vmem:[%s275 + $0x80] sm:$0xff]
        %v293 = vld [vmem:[%s275 + $0x88] sm:$0xff]
        %v294 = vld [vmem:[%s275 + $0x90] sm:$0xff]
        %v295 = vld [vmem:[%s275 + $0x98] sm:$0xff]
        %v296 = vld [vmem:[%s275 + $0xa0] sm:$0xff]
        %v297 = vld [vmem:[%s275 + $0xa8] sm:$0xff]
        %v298 = vld [vmem:[%s275 + $0xb0] sm:$0xff]
        %v299 = vld [vmem:[%s275 + $0xb8] sm:$0xff]
        %v300 = vld [vmem:[%s275 + $0xc0] sm:$0x1]
        %v301 = vld [vmem:[%s275 + $0xc8] sm:$0x1]
        %v302 = vld [vmem:[%s275 + $0xd0] sm:$0x1]
        %v303 = vld [vmem:[%s275 + $0xd8] sm:$0x1]
        %v304 = vld [vmem:[%s1] sm:$0xff]
        %v305 = vld [vmem:[%s1 + $0x8] sm:$0xff]
        %v306 = vld [vmem:[%s1 + $0x10] sm:$0xff]
        %v307 = vld [vmem:[%s1 + $0x18] sm:$0xff]
        %v308 = vld [vmem:[%s1 + $0x20] sm:$0xff]
        %v309 = vld [vmem:[%s1 + $0x28] sm:$0xff]
        %v310 = vld [vmem:[%s1 + $0x30] sm:$0xff]
        %v311 = vld [vmem:[%s1 + $0x38] sm:$0xff]
        %v312 = vld [vmem:[%s1 + $0x40] sm:$0xff]
        %v313 = vld [vmem:[%s1 + $0x48] sm:$0xff]
        %v314 = vld [vmem:[%s1 + $0x50] sm:$0xff]
        %v315 = vld [vmem:[%s1 + $0x58] sm:$0xff]
        %v316 = vld [vmem:[%s1 + $0x60] sm:$0xff]
        %v317 = vld [vmem:[%s1 + $0x68] sm:$0xff]
        %v318 = vld [vmem:[%s1 + $0x70] sm:$0xff]
        %v319 = vld [vmem:[%s1 + $0x78] sm:$0xff]
        %v320 = vld [vmem:[%s1 + $0x80] sm:$0xff]
        %v321 = vld [vmem:[%s1 + $0x88] sm:$0xff]
        %vm322 = vcmask 400384
        %v324 = vsel %vm322, %v304, 0
        %v327 = vsel %vm322, %v305, 0
        %v330 = vsel %vm322, %v306, 0
        %v333 = vsel %vm322, %v307, 0
        %v336 = vsel %vm322, %v308, 0
        %v339 = vsel %vm322, %v309, 0
        %v342 = vsel %vm322, %v310, 0
        %v345 = vsel %vm322, %v311, 0
        %v348 = vsel %vm322, %v312, 0
        %v351 = vsel %vm322, %v313, 0
        %v354 = vsel %vm322, %v314, 0
        %v357 = vsel %vm322, %v315, 0
        %v360 = vsel %vm322, %v316, 0
        %v363 = vsel %vm322, %v317, 0
        %v366 = vsel %vm322, %v318, 0
        %v369 = vsel %vm322, %v319, 0
        %v372 = vsel %vm322, %v320, 0
        %v375 = vsel %vm322, %v321, 0
        %vm377 = vcmask 1040384
        %v379 = vsel %vm377, %v300, 0
        %v382 = vsel %vm377, %v301, 0
        %v385 = vsel %vm377, %v302, 0
        %v388 = vsel %vm377, %v303, 0
        %390 = vmatpush.msra.mxu0 0.0
        %391 = vmatpush.msra.mxu0 0.0
        %392 = vmatpush.msra.mxu0 0.0
        %393 = vmatpush.msra.mxu0 0.0
        %394 = vmatpush.msra.mxu0 0.0
        %395 = vmatpush.msra.mxu0 0.0
        %396 = vmatpush.msra.mxu0 0.0
        %397 = vmatpush.msra.mxu0 0.0
        %398 = vmatpush.msra.mxu0 0.0
        %399 = vmatpush.msra.mxu0 %v379
        %400 = vmatpush.msra.mxu0 %v296
        %401 = vmatpush.msra.mxu0 %v292
        %402 = vmatpush.msra.mxu0 %v288
        %403 = vmatpush.msra.mxu0 %v284
        %404 = vmatpush.msra.mxu0 %v280
        %405 = vmatpush.msra.mxu0 %v276
        %406 = vmatmul.f32.gmra.mxu0 %v324
        %v407 = vpop.f32.mrf.mxu0
        %v408 = vadd.f32 0.0, %v407
        %409 = vmatmul.f32.gmra.mxu0 %v327
        %v410 = vpop.f32.mrf.mxu0
        %v411 = vadd.f32 0.0, %v410
        %412 = vmatmul.f32.gmra.mxu0 %v330
        %v413 = vpop.f32.mrf.mxu0
        %v414 = vadd.f32 0.0, %v413
        %415 = vmatmul.f32.gmra.mxu0 %v333
        %v416 = vpop.f32.mrf.mxu0
        %v417 = vadd.f32 0.0, %v416
        %418 = vmatmul.f32.gmra.mxu0 %v336
        %v419 = vpop.f32.mrf.mxu0
        %v420 = vadd.f32 0.0, %v419
        %421 = vmatmul.f32.gmra.mxu0 %v339
        %v422 = vpop.f32.mrf.mxu0
        %v423 = vadd.f32 0.0, %v422
        %424 = vmatmul.f32.gmra.mxu0 %v342
        %v425 = vpop.f32.mrf.mxu0
        %v426 = vadd.f32 0.0, %v425
        %427 = vmatmul.f32.gmra.mxu0 %v345
        %v428 = vpop.f32.mrf.mxu0
        %v429 = vadd.f32 0.0, %v428
        %430 = vmatmul.f32.gmra.mxu0 %v348
        %v431 = vpop.f32.mrf.mxu0
        %v432 = vadd.f32 0.0, %v431
        %433 = vmatmul.f32.gmra.mxu0 %v351
        %v434 = vpop.f32.mrf.mxu0
        %v435 = vadd.f32 0.0, %v434
        %436 = vmatmul.f32.gmra.mxu0 %v354
        %v437 = vpop.f32.mrf.mxu0
        %v438 = vadd.f32 0.0, %v437
        %439 = vmatmul.f32.gmra.mxu0 %v357
        %v440 = vpop.f32.mrf.mxu0
        %v441 = vadd.f32 0.0, %v440
        %442 = vmatmul.f32.gmra.mxu0 %v360
        %v443 = vpop.f32.mrf.mxu0
        %v444 = vadd.f32 0.0, %v443
        %445 = vmatmul.f32.gmra.mxu0 %v363
        %v446 = vpop.f32.mrf.mxu0
        %v447 = vadd.f32 0.0, %v446
        %448 = vmatmul.f32.gmra.mxu0 %v366
        %v449 = vpop.f32.mrf.mxu0
        %v450 = vadd.f32 0.0, %v449
        %451 = vmatmul.f32.gmra.mxu0 %v369
        %v452 = vpop.f32.mrf.mxu0
        %v453 = vadd.f32 0.0, %v452
        %454 = vmatmul.f32.gmra.mxu0 %v372
        %v455 = vpop.f32.mrf.mxu0
        %v456 = vadd.f32 0.0, %v455
        %457 = vmatmul.f32.gmra.mxu0 %v375
        %v458 = vpop.f32.mrf.mxu0
        %v459 = vadd.f32 0.0, %v458
        %460 = vdwg.mxu0
        %461 = vmatpush.msra.mxu0 0.0
        %462 = vmatpush.msra.mxu0 0.0
        %463 = vmatpush.msra.mxu0 0.0
        %464 = vmatpush.msra.mxu0 0.0
        %465 = vmatpush.msra.mxu0 0.0
        %466 = vmatpush.msra.mxu0 0.0
        %467 = vmatpush.msra.mxu0 0.0
        %468 = vmatpush.msra.mxu0 0.0
        %469 = vmatpush.msra.mxu0 0.0
        %470 = vmatpush.msra.mxu0 %v382
        %471 = vmatpush.msra.mxu0 %v297
        %472 = vmatpush.msra.mxu0 %v293
        %473 = vmatpush.msra.mxu0 %v289
        %474 = vmatpush.msra.mxu0 %v285
        %475 = vmatpush.msra.mxu0 %v281
        %476 = vmatpush.msra.mxu0 %v277
        %477 = vmatmul.f32.gmra.mxu0 %v324
        %v478 = vpop.f32.mrf.mxu0
        %v479 = vadd.f32 0.0, %v478
        %480 = vmatmul.f32.gmra.mxu0 %v327
        %v481 = vpop.f32.mrf.mxu0
        %v482 = vadd.f32 0.0, %v481
        %483 = vmatmul.f32.gmra.mxu0 %v330
        %v484 = vpop.f32.mrf.mxu0
        %v485 = vadd.f32 0.0, %v484
        %486 = vmatmul.f32.gmra.mxu0 %v333
        %v487 = vpop.f32.mrf.mxu0
        %v488 = vadd.f32 0.0, %v487
        %489 = vmatmul.f32.gmra.mxu0 %v336
        %v490 = vpop.f32.mrf.mxu0
        %v491 = vadd.f32 0.0, %v490
        %492 = vmatmul.f32.gmra.mxu0 %v339
        %v493 = vpop.f32.mrf.mxu0
        %v494 = vadd.f32 0.0, %v493
        %495 = vmatmul.f32.gmra.mxu0 %v342
        %v496 = vpop.f32.mrf.mxu0
        %v497 = vadd.f32 0.0, %v496
        %498 = vmatmul.f32.gmra.mxu0 %v345
        %v499 = vpop.f32.mrf.mxu0
        %v500 = vadd.f32 0.0, %v499
        %501 = vmatmul.f32.gmra.mxu0 %v348
        %v502 = vpop.f32.mrf.mxu0
        %v503 = vadd.f32 0.0, %v502
        %504 = vmatmul.f32.gmra.mxu0 %v351
        %v505 = vpop.f32.mrf.mxu0
        %v506 = vadd.f32 0.0, %v505
        %507 = vmatmul.f32.gmra.mxu0 %v354
        %v508 = vpop.f32.mrf.mxu0
        %v509 = vadd.f32 0.0, %v508
        %510 = vmatmul.f32.gmra.mxu0 %v357
        %v511 = vpop.f32.mrf.mxu0
        %v512 = vadd.f32 0.0, %v511
        %513 = vmatmul.f32.gmra.mxu0 %v360
        %v514 = vpop.f32.mrf.mxu0
        %v515 = vadd.f32 0.0, %v514
        %516 = vmatmul.f32.gmra.mxu0 %v363
        %v517 = vpop.f32.mrf.mxu0
        %v518 = vadd.f32 0.0, %v517
        %519 = vmatmul.f32.gmra.mxu0 %v366
        %v520 = vpop.f32.mrf.mxu0
        %v521 = vadd.f32 0.0, %v520
        %522 = vmatmul.f32.gmra.mxu0 %v369
        %v523 = vpop.f32.mrf.mxu0
        %v524 = vadd.f32 0.0, %v523
        %525 = vmatmul.f32.gmra.mxu0 %v372
        %v526 = vpop.f32.mrf.mxu0
        %v527 = vadd.f32 0.0, %v526
        %528 = vmatmul.f32.gmra.mxu0 %v375
        %v529 = vpop.f32.mrf.mxu0
        %v530 = vadd.f32 0.0, %v529
        %531 = vdwg.mxu0
        %532 = vmatpush.msra.mxu0 0.0
        %533 = vmatpush.msra.mxu0 0.0
        %534 = vmatpush.msra.mxu0 0.0
        %535 = vmatpush.msra.mxu0 0.0
        %536 = vmatpush.msra.mxu0 0.0
        %537 = vmatpush.msra.mxu0 0.0
        %538 = vmatpush.msra.mxu0 0.0
        %539 = vmatpush.msra.mxu0 0.0
        %540 = vmatpush.msra.mxu0 0.0
        %541 = vmatpush.msra.mxu0 %v385
        %542 = vmatpush.msra.mxu0 %v298
        %543 = vmatpush.msra.mxu0 %v294
        %544 = vmatpush.msra.mxu0 %v290
        %545 = vmatpush.msra.mxu0 %v286
        %546 = vmatpush.msra.mxu0 %v282
        %547 = vmatpush.msra.mxu0 %v278
        %548 = vmatmul.f32.gmra.mxu0 %v324
        %v549 = vpop.f32.mrf.mxu0
        %v550 = vadd.f32 0.0, %v549
        %551 = vmatmul.f32.gmra.mxu0 %v327
        %v552 = vpop.f32.mrf.mxu0
        %v553 = vadd.f32 0.0, %v552
        %554 = vmatmul.f32.gmra.mxu0 %v330
        %v555 = vpop.f32.mrf.mxu0
        %v556 = vadd.f32 0.0, %v555
        %557 = vmatmul.f32.gmra.mxu0 %v333
        %v558 = vpop.f32.mrf.mxu0
        %v559 = vadd.f32 0.0, %v558
        %560 = vmatmul.f32.gmra.mxu0 %v336
        %v561 = vpop.f32.mrf.mxu0
        %v562 = vadd.f32 0.0, %v561
        %563 = vmatmul.f32.gmra.mxu0 %v339
        %v564 = vpop.f32.mrf.mxu0
        %v565 = vadd.f32 0.0, %v564
        %566 = vmatmul.f32.gmra.mxu0 %v342
        %v567 = vpop.f32.mrf.mxu0
        %v568 = vadd.f32 0.0, %v567
        %569 = vmatmul.f32.gmra.mxu0 %v345
        %v570 = vpop.f32.mrf.mxu0
        %v571 = vadd.f32 0.0, %v570
        %572 = vmatmul.f32.gmra.mxu0 %v348
        %v573 = vpop.f32.mrf.mxu0
        %v574 = vadd.f32 0.0, %v573
        %575 = vmatmul.f32.gmra.mxu0 %v351
        %v576 = vpop.f32.mrf.mxu0
        %v577 = vadd.f32 0.0, %v576
        %578 = vmatmul.f32.gmra.mxu0 %v354
        %v579 = vpop.f32.mrf.mxu0
        %v580 = vadd.f32 0.0, %v579
        %581 = vmatmul.f32.gmra.mxu0 %v357
        %v582 = vpop.f32.mrf.mxu0
        %v583 = vadd.f32 0.0, %v582
        %584 = vmatmul.f32.gmra.mxu0 %v360
        %v585 = vpop.f32.mrf.mxu0
        %v586 = vadd.f32 0.0, %v585
        %587 = vmatmul.f32.gmra.mxu0 %v363
        %v588 = vpop.f32.mrf.mxu0
        %v589 = vadd.f32 0.0, %v588
        %590 = vmatmul.f32.gmra.mxu0 %v366
        %v591 = vpop.f32.mrf.mxu0
        %v592 = vadd.f32 0.0, %v591
        %593 = vmatmul.f32.gmra.mxu0 %v369
        %v594 = vpop.f32.mrf.mxu0
        %v595 = vadd.f32 0.0, %v594
        %596 = vmatmul.f32.gmra.mxu0 %v372
        %v597 = vpop.f32.mrf.mxu0
        %v598 = vadd.f32 0.0, %v597
        %599 = vmatmul.f32.gmra.mxu0 %v375
        %v600 = vpop.f32.mrf.mxu0
        %v601 = vadd.f32 0.0, %v600
        %602 = vdwg.mxu0
        %603 = vmatpush.msra.mxu0 0.0
        %604 = vmatpush.msra.mxu0 0.0
        %605 = vmatpush.msra.mxu0 0.0
        %606 = vmatpush.msra.mxu0 0.0
        %607 = vmatpush.msra.mxu0 0.0
        %608 = vmatpush.msra.mxu0 0.0
        %609 = vmatpush.msra.mxu0 0.0
        %610 = vmatpush.msra.mxu0 0.0
        %611 = vmatpush.msra.mxu0 0.0
        %612 = vmatpush.msra.mxu0 %v388
        %613 = vmatpush.msra.mxu0 %v299
        %614 = vmatpush.msra.mxu0 %v295
        %615 = vmatpush.msra.mxu0 %v291
        %616 = vmatpush.msra.mxu0 %v287
        %617 = vmatpush.msra.mxu0 %v283
        %618 = vmatpush.msra.mxu0 %v279
        %619 = vmatmul.f32.gmra.mxu0 %v324
        %v620 = vpop.f32.mrf.mxu0
        %v621 = vadd.f32 0.0, %v620
        %622 = vmatmul.f32.gmra.mxu0 %v327
        %v623 = vpop.f32.mrf.mxu0
        %v624 = vadd.f32 0.0, %v623
        %625 = vmatmul.f32.gmra.mxu0 %v330
        %v626 = vpop.f32.mrf.mxu0
        %v627 = vadd.f32 0.0, %v626
        %628 = vmatmul.f32.gmra.mxu0 %v333
        %v629 = vpop.f32.mrf.mxu0
        %v630 = vadd.f32 0.0, %v629
        %631 = vmatmul.f32.gmra.mxu0 %v336
        %v632 = vpop.f32.mrf.mxu0
        %v633 = vadd.f32 0.0, %v632
        %634 = vmatmul.f32.gmra.mxu0 %v339
        %v635 = vpop.f32.mrf.mxu0
        %v636 = vadd.f32 0.0, %v635
        %637 = vmatmul.f32.gmra.mxu0 %v342
        %v638 = vpop.f32.mrf.mxu0
        %v639 = vadd.f32 0.0, %v638
        %640 = vmatmul.f32.gmra.mxu0 %v345
        %v641 = vpop.f32.mrf.mxu0
        %v642 = vadd.f32 0.0, %v641
        %643 = vmatmul.f32.gmra.mxu0 %v348
        %v644 = vpop.f32.mrf.mxu0
        %v645 = vadd.f32 0.0, %v644
        %646 = vmatmul.f32.gmra.mxu0 %v351
        %v647 = vpop.f32.mrf.mxu0
        %v648 = vadd.f32 0.0, %v647
        %649 = vmatmul.f32.gmra.mxu0 %v354
        %v650 = vpop.f32.mrf.mxu0
        %v651 = vadd.f32 0.0, %v650
        %652 = vmatmul.f32.gmra.mxu0 %v357
        %v653 = vpop.f32.mrf.mxu0
        %v654 = vadd.f32 0.0, %v653
        %655 = vmatmul.f32.gmra.mxu0 %v360
        %v656 = vpop.f32.mrf.mxu0
        %v657 = vadd.f32 0.0, %v656
        %658 = vmatmul.f32.gmra.mxu0 %v363
        %v659 = vpop.f32.mrf.mxu0
        %v660 = vadd.f32 0.0, %v659
        %661 = vmatmul.f32.gmra.mxu0 %v366
        %v662 = vpop.f32.mrf.mxu0
        %v663 = vadd.f32 0.0, %v662
        %664 = vmatmul.f32.gmra.mxu0 %v369
        %v665 = vpop.f32.mrf.mxu0
        %v666 = vadd.f32 0.0, %v665
        %667 = vmatmul.f32.gmra.mxu0 %v372
        %v668 = vpop.f32.mrf.mxu0
        %v669 = vadd.f32 0.0, %v668
        %670 = vmatmul.f32.gmra.mxu0 %v375
        %v671 = vpop.f32.mrf.mxu0
        %v672 = vadd.f32 0.0, %v671
        %673 = vdwg.mxu0
        %v674 = vmax.f32 %v408, %v414
        %v675 = vmax.f32 %v479, %v485
        %v676 = vmax.f32 %v550, %v556
        %v677 = vmax.f32 %v621, %v627
        %v678 = vmax.f32 %v411, %v417
        %v679 = vmax.f32 %v482, %v488
        %v680 = vmax.f32 %v553, %v559
        %v681 = vmax.f32 %v624, %v630
        %v682 = vmax.f32 %v674, %v420
        %v683 = vmax.f32 %v675, %v491
        %v684 = vmax.f32 %v676, %v562
        %v685 = vmax.f32 %v677, %v633
        %v686 = vmax.f32 %v678, %v423
        %v687 = vmax.f32 %v679, %v494
        %v688 = vmax.f32 %v680, %v565
        %v689 = vmax.f32 %v681, %v636
        %v690 = vmax.f32 %v682, %v426
        %v691 = vmax.f32 %v683, %v497
        %v692 = vmax.f32 %v684, %v568
        %v693 = vmax.f32 %v685, %v639
        %v694 = vmax.f32 %v686, %v429
        %v695 = vmax.f32 %v687, %v500
        %v696 = vmax.f32 %v688, %v571
        %v697 = vmax.f32 %v689, %v642
        %v698 = vmax.f32 %v690, %v432
        %v699 = vmax.f32 %v691, %v503
        %v700 = vmax.f32 %v692, %v574
        %v701 = vmax.f32 %v693, %v645
        %v702 = vmax.f32 %v694, %v435
        %v703 = vmax.f32 %v695, %v506
        %v704 = vmax.f32 %v696, %v577
        %v705 = vmax.f32 %v697, %v648
        %v706 = vmax.f32 %v698, %v438
        %v707 = vmax.f32 %v699, %v509
        %v708 = vmax.f32 %v700, %v580
        %v709 = vmax.f32 %v701, %v651
        %v710 = vmax.f32 %v702, %v441
        %v711 = vmax.f32 %v703, %v512
        %v712 = vmax.f32 %v704, %v583
        %v713 = vmax.f32 %v705, %v654
        %v714 = vmax.f32 %v706, %v444
        %v715 = vmax.f32 %v707, %v515
        %v716 = vmax.f32 %v708, %v586
        %v717 = vmax.f32 %v709, %v657
        %v718 = vmax.f32 %v710, %v447
        %v719 = vmax.f32 %v711, %v518
        %v720 = vmax.f32 %v712, %v589
        %v721 = vmax.f32 %v713, %v660
        %v722 = vmax.f32 %v714, %v450
        %v723 = vmax.f32 %v715, %v521
        %v724 = vmax.f32 %v716, %v592
        %v725 = vmax.f32 %v717, %v663
        %v726 = vmax.f32 %v718, %v453
        %v727 = vmax.f32 %v719, %v524
        %v728 = vmax.f32 %v720, %v595
        %v729 = vmax.f32 %v721, %v666
        %v730 = vmax.f32 %v722, %v456
        %v731 = vmax.f32 %v723, %v527
        %v732 = vmax.f32 %v724, %v598
        %v733 = vmax.f32 %v725, %v669
        %v734 = vmax.f32 %v726, %v459
        %v735 = vmax.f32 %v727, %v530
        %v736 = vmax.f32 %v728, %v601
        %v737 = vmax.f32 %v729, %v672
        %v738 = vld [vmem:[%s2] sm:$0xff]
        %v739 = vld [vmem:[%s2 + $0x8] sm:$0xff]
        %741 = vset.pattern.permute.xlu0 0
        %742 = vperm.xlu0 %741, %v738
        %v743 = vpop.permute.xlu0 %742
        %746 = vset.pattern.permute.xlu0 0
        %747 = vperm.xlu0 %746, %v739
        %v748 = vpop.permute.xlu0 %747
        %v750 = vadd.f32 %v730, %v743
        %v751 = vadd.f32 %v731, %v743
        %v752 = vadd.f32 %v732, %v743
        %v753 = vadd.f32 %v733, %v743
        %v754 = vadd.f32 %v734, %v748
        %v755 = vadd.f32 %v735, %v748
        %v756 = vadd.f32 %v736, %v748
        %v757 = vadd.f32 %v737, %v748
        %v758 = vmax.f32 %v750, 0.0
        %v759 = vmax.f32 %v751, 0.0
        %v760 = vmax.f32 %v752, 0.0
        %v761 = vmax.f32 %v753, 0.0
        %v762 = vmax.f32 %v754, 0.0
        %v763 = vmax.f32 %v755, 0.0
        %v764 = vmax.f32 %v756, 0.0
        %v765 = vmax.f32 %v757, 0.0
        %766 = vst [vmem:[#allocation2] sm:$0xff] %v758
        %767 = vst [vmem:[#allocation2 + $0x8] sm:$0xff] %v759
        %768 = vst [vmem:[#allocation2 + $0x10] sm:$0xff] %v760
        %vm769 = vcmask 130048
        %770 = vst.msk [vmem:[#allocation2 + $0x18] sm:$0xff] %vm769, %v761
        %771 = vst [vmem:[#allocation2 + $0x20] sm:$0xff] %v762
        %772 = vst [vmem:[#allocation2 + $0x28] sm:$0xff] %v763
        %773 = vst [vmem:[#allocation2 + $0x30] sm:$0xff] %v764
        %774 = vst.msk [vmem:[#allocation2 + $0x38] sm:$0xff] %vm769, %v765
        %783 = vrot.lane.b32.xlu0 %v758, 127
        %v784 = vpop.permute.xlu0 %783
        %785 = vrot.lane.b32.xlu0 %v759, 127
        %v786 = vpop.permute.xlu0 %785
        %787 = vrot.lane.b32.xlu0 %v760, 127
        %v788 = vpop.permute.xlu0 %787
        %789 = vrot.lane.b32.xlu0 %v761, 127
        %v790 = vpop.permute.xlu0 %789
        %791 = vrot.lane.b32.xlu0 %v762, 127
        %v792 = vpop.permute.xlu0 %791
        %793 = vrot.lane.b32.xlu0 %v763, 127
        %v794 = vpop.permute.xlu0 %793
        %795 = vrot.lane.b32.xlu0 %v764, 127
        %v796 = vpop.permute.xlu0 %795
        %797 = vrot.lane.b32.xlu0 %v765, 127
        %v798 = vpop.permute.xlu0 %797
        %vm799 = vcmask 1039360
        %v800 = vsel %vm799, %v784, %v786
        %v801 = vsel %vm799, %v786, %v788
        %v802 = vsel %vm799, %v788, %v790
        %v803 = vsel %vm799, %v792, %v794
        %v804 = vsel %vm799, %v794, %v796
        %v805 = vsel %vm799, %v796, %v798
        %814 = vst [vmem:[#allocation2 + $0x40] sm:$0xff] %v800
        %815 = vst [vmem:[#allocation2 + $0x48] sm:$0xff] %v801
        %816 = vst [vmem:[#allocation2 + $0x50] sm:$0xff] %v802
        %817 = vst.msk [vmem:[#allocation2 + $0x58] sm:$0xff] %vm769, %v790
        %818 = vst [vmem:[#allocation2 + $0x60] sm:$0xff] %v803
        %819 = vst [vmem:[#allocation2 + $0x68] sm:$0xff] %v804
        %820 = vst [vmem:[#allocation2 + $0x70] sm:$0xff] %v805
        %821 = vst.msk [vmem:[#allocation2 + $0x78] sm:$0xff] %vm769, %v798
        %822 = vrot.lane.b32.xlu0 %v758, 126
        %v823 = vpop.permute.xlu0 %822
        %824 = vrot.lane.b32.xlu0 %v759, 126
        %v825 = vpop.permute.xlu0 %824
        %826 = vrot.lane.b32.xlu0 %v760, 126
        %v827 = vpop.permute.xlu0 %826
        %828 = vrot.lane.b32.xlu0 %v761, 126
        %v829 = vpop.permute.xlu0 %828
        %830 = vrot.lane.b32.xlu0 %v762, 126
        %v831 = vpop.permute.xlu0 %830
        %832 = vrot.lane.b32.xlu0 %v763, 126
        %v833 = vpop.permute.xlu0 %832
        %834 = vrot.lane.b32.xlu0 %v764, 126
        %v835 = vpop.permute.xlu0 %834
        %836 = vrot.lane.b32.xlu0 %v765, 126
        %v837 = vpop.permute.xlu0 %836
        %vm838 = vcmask 1031168
        %v839 = vsel %vm838, %v823, %v825
        %v840 = vsel %vm838, %v825, %v827
        %v841 = vsel %vm838, %v827, %v829
        %v842 = vsel %vm838, %v831, %v833
        %v843 = vsel %vm838, %v833, %v835
        %v844 = vsel %vm838, %v835, %v837
        %853 = vst [vmem:[#allocation2 + $0x80] sm:$0xff] %v839
        %854 = vst [vmem:[#allocation2 + $0x88] sm:$0xff] %v840
        %855 = vst [vmem:[#allocation2 + $0x90] sm:$0xff] %v841
        %856 = vst.msk [vmem:[#allocation2 + $0x98] sm:$0xff] %vm769, %v829
        %857 = vst [vmem:[#allocation2 + $0xa0] sm:$0xff] %v842
        %858 = vst [vmem:[#allocation2 + $0xa8] sm:$0xff] %v843
        %859 = vst [vmem:[#allocation2 + $0xb0] sm:$0xff] %v844
        %860 = vst.msk [vmem:[#allocation2 + $0xb8] sm:$0xff] %vm769, %v837
        %861 = vrot.lane.b32.xlu0 %v758, 125
        %v862 = vpop.permute.xlu0 %861
        %863 = vrot.lane.b32.xlu0 %v759, 125
        %v864 = vpop.permute.xlu0 %863
        %865 = vrot.lane.b32.xlu0 %v760, 125
        %v866 = vpop.permute.xlu0 %865
        %867 = vrot.lane.b32.xlu0 %v761, 125
        %v868 = vpop.permute.xlu0 %867
        %869 = vrot.lane.b32.xlu0 %v762, 125
        %v870 = vpop.permute.xlu0 %869
        %871 = vrot.lane.b32.xlu0 %v763, 125
        %v872 = vpop.permute.xlu0 %871
        %873 = vrot.lane.b32.xlu0 %v764, 125
        %v874 = vpop.permute.xlu0 %873
        %875 = vrot.lane.b32.xlu0 %v765, 125
        %v876 = vpop.permute.xlu0 %875
        %vm877 = vcmask 1022976
        %v878 = vsel %vm877, %v862, %v864
        %v879 = vsel %vm877, %v864, %v866
        %v880 = vsel %vm877, %v866, %v868
        %v881 = vsel %vm877, %v870, %v872
        %v882 = vsel %vm877, %v872, %v874
        %v883 = vsel %vm877, %v874, %v876
        %892 = vst [vmem:[#allocation2 + $0xc0] sm:$0xff] %v878
        %893 = vst [vmem:[#allocation2 + $0xc8] sm:$0xff] %v879
        %894 = vst [vmem:[#allocation2 + $0xd0] sm:$0xff] %v880
        %895 = vst.msk [vmem:[#allocation2 + $0xd8] sm:$0xff] %vm769, %v868
        %896 = vst [vmem:[#allocation2 + $0xe0] sm:$0xff] %v881
        %897 = vst [vmem:[#allocation2 + $0xe8] sm:$0xff] %v882
        %898 = vst [vmem:[#allocation2 + $0xf0] sm:$0xff] %v883
        %899 = vst.msk [vmem:[#allocation2 + $0xf8] sm:$0xff] %vm769, %v876
        %900 = vrot.lane.b32.xlu0 %v758, 124
        %v901 = vpop.permute.xlu0 %900
        %902 = vrot.lane.b32.xlu0 %v759, 124
        %v903 = vpop.permute.xlu0 %902
        %904 = vrot.lane.b32.xlu0 %v760, 124
        %v905 = vpop.permute.xlu0 %904
        %906 = vrot.lane.b32.xlu0 %v761, 124
        %v907 = vpop.permute.xlu0 %906
        %908 = vrot.lane.b32.xlu0 %v762, 124
        %v909 = vpop.permute.xlu0 %908
        %910 = vrot.lane.b32.xlu0 %v763, 124
        %v911 = vpop.permute.xlu0 %910
        %912 = vrot.lane.b32.xlu0 %v764, 124
        %v913 = vpop.permute.xlu0 %912
        %914 = vrot.lane.b32.xlu0 %v765, 124
        %v915 = vpop.permute.xlu0 %914
        %vm916 = vcmask 1014784
        %v917 = vsel %vm916, %v901, %v903
        %v918 = vsel %vm916, %v903, %v905
        %v919 = vsel %vm916, %v905, %v907
        %v920 = vsel %vm916, %v909, %v911
        %v921 = vsel %vm916, %v911, %v913
        %v922 = vsel %vm916, %v913, %v915
        %931 = vst [vmem:[#allocation2 + $0x100] sm:$0xff] %v917
        %932 = vst [vmem:[#allocation2 + $0x108] sm:$0xff] %v918
        %933 = vst [vmem:[#allocation2 + $0x110] sm:$0xff] %v919
        %934 = vst.msk [vmem:[#allocation2 + $0x118] sm:$0xff] %vm769, %v907
        %935 = vst [vmem:[#allocation2 + $0x120] sm:$0xff] %v920
        %936 = vst [vmem:[#allocation2 + $0x128] sm:$0xff] %v921
        %937 = vst [vmem:[#allocation2 + $0x130] sm:$0xff] %v922
        %938 = vst.msk [vmem:[#allocation2 + $0x138] sm:$0xff] %vm769, %v915
        %v939 = vld [vmem:[%s3] sm:$0xff]
        %v940 = vld [vmem:[%s3 + $0x8] sm:$0xff]
        %v941 = vld [vmem:[%s3 + $0x10] sm:$0xf]
        %v942 = vld [vmem:[#allocation2] sm:$0xff]
        %v943 = vld [vmem:[#allocation2 + $0x8] sm:$0xff]
        %v944 = vld [vmem:[#allocation2 + $0x10] sm:$0xff]
        %v945 = vld [vmem:[#allocation2 + $0x20] sm:$0xff]
        %v946 = vld [vmem:[#allocation2 + $0x28] sm:$0xff]
        %v947 = vld [vmem:[#allocation2 + $0x30] sm:$0xff]
        %v948 = vld [vmem:[#allocation2 + $0x40] sm:$0xff]
        %v949 = vld [vmem:[#allocation2 + $0x48] sm:$0xff]
        %v950 = vld [vmem:[#allocation2 + $0x50] sm:$0xff]
        %v951 = vld [vmem:[#allocation2 + $0x60] sm:$0xff]
        %v952 = vld [vmem:[#allocation2 + $0x68] sm:$0xff]
        %v953 = vld [vmem:[#allocation2 + $0x70] sm:$0xff]
        %v954 = vld [vmem:[#allocation2 + $0x80] sm:$0xff]
        %v955 = vld [vmem:[#allocation2 + $0x88] sm:$0xff]
        %v956 = vld [vmem:[#allocation2 + $0x90] sm:$0xff]
        %v957 = vld [vmem:[#allocation2 + $0xa0] sm:$0xff]
        %v958 = vld [vmem:[#allocation2 + $0xa8] sm:$0xff]
        %v959 = vld [vmem:[#allocation2 + $0xb0] sm:$0xff]
        %v960 = vld [vmem:[#allocation2 + $0xc0] sm:$0xff]
        %v961 = vld [vmem:[#allocation2 + $0xc8] sm:$0xff]
        %v962 = vld [vmem:[#allocation2 + $0xd0] sm:$0xff]
        %v963 = vld [vmem:[#allocation2 + $0xe0] sm:$0xff]
        %v964 = vld [vmem:[#allocation2 + $0xe8] sm:$0xff]
        %v965 = vld [vmem:[#allocation2 + $0xf0] sm:$0xff]
        %v966 = vld [vmem:[#allocation2 + $0x100] sm:$0xff]
        %v967 = vld [vmem:[#allocation2 + $0x108] sm:$0xff]
        %v968 = vld [vmem:[#allocation2 + $0x110] sm:$0xff]
        %v969 = vld [vmem:[#allocation2 + $0x120] sm:$0xff]
        %v970 = vld [vmem:[#allocation2 + $0x128] sm:$0xff]
        %v971 = vld [vmem:[#allocation2 + $0x130] sm:$0xff]
        %s972 = scalar_lea.vmem %s3, 24
        %v973 = vld [vmem:[%s972] sm:$0xff]
        %v974 = vld [vmem:[%s972 + $0x8] sm:$0xff]
        %v975 = vld [vmem:[%s972 + $0x10] sm:$0xf]
        %1006 = vrot.lane.b32.xlu0 %v942, 108
        %v1007 = vpop.permute.xlu0 %1006
        %1008 = vrot.lane.b32.xlu0 %v943, 108
        %v1009 = vpop.permute.xlu0 %1008
        %1010 = vrot.lane.b32.xlu0 %v944, 108
        %v1011 = vpop.permute.xlu0 %1010
        %1012 = vrot.lane.b32.xlu0 %v945, 108
        %v1013 = vpop.permute.xlu0 %1012
        %1014 = vrot.lane.b32.xlu0 %v946, 108
        %v1015 = vpop.permute.xlu0 %1014
        %1016 = vrot.lane.b32.xlu0 %v947, 108
        %v1017 = vpop.permute.xlu0 %1016
        %1018 = vrot.lane.b32.xlu0 %v948, 108
        %v1019 = vpop.permute.xlu0 %1018
        %1020 = vrot.lane.b32.xlu0 %v949, 108
        %v1021 = vpop.permute.xlu0 %1020
        %1022 = vrot.lane.b32.xlu0 %v950, 108
        %v1023 = vpop.permute.xlu0 %1022
        %1024 = vrot.lane.b32.xlu0 %v951, 108
        %v1025 = vpop.permute.xlu0 %1024
        %1026 = vrot.lane.b32.xlu0 %v952, 108
        %v1027 = vpop.permute.xlu0 %1026
        %1028 = vrot.lane.b32.xlu0 %v953, 108
        %v1029 = vpop.permute.xlu0 %1028
        %1030 = vrot.lane.b32.xlu0 %v954, 108
        %v1031 = vpop.permute.xlu0 %1030
        %1032 = vrot.lane.b32.xlu0 %v955, 108
        %v1033 = vpop.permute.xlu0 %1032
        %1034 = vrot.lane.b32.xlu0 %v956, 108
        %v1035 = vpop.permute.xlu0 %1034
        %1036 = vrot.lane.b32.xlu0 %v957, 108
        %v1037 = vpop.permute.xlu0 %1036
        %1038 = vrot.lane.b32.xlu0 %v958, 108
        %v1039 = vpop.permute.xlu0 %1038
        %1040 = vrot.lane.b32.xlu0 %v959, 108
        %v1041 = vpop.permute.xlu0 %1040
        %1042 = vrot.lane.b32.xlu0 %v960, 108
        %v1043 = vpop.permute.xlu0 %1042
        %1044 = vrot.lane.b32.xlu0 %v961, 108
        %v1045 = vpop.permute.xlu0 %1044
        %1046 = vrot.lane.b32.xlu0 %v962, 108
        %v1047 = vpop.permute.xlu0 %1046
        %1048 = vrot.lane.b32.xlu0 %v963, 108
        %v1049 = vpop.permute.xlu0 %1048
        %1050 = vrot.lane.b32.xlu0 %v964, 108
        %v1051 = vpop.permute.xlu0 %1050
        %1052 = vrot.lane.b32.xlu0 %v965, 108
        %v1053 = vpop.permute.xlu0 %1052
        %1054 = vrot.lane.b32.xlu0 %v966, 108
        %v1055 = vpop.permute.xlu0 %1054
        %1056 = vrot.lane.b32.xlu0 %v967, 108
        %v1057 = vpop.permute.xlu0 %1056
        %1058 = vrot.lane.b32.xlu0 %v968, 108
        %v1059 = vpop.permute.xlu0 %1058
        %1060 = vrot.lane.b32.xlu0 %v969, 108
        %v1061 = vpop.permute.xlu0 %1060
        %1062 = vrot.lane.b32.xlu0 %v970, 108
        %v1063 = vpop.permute.xlu0 %1062
        %1064 = vrot.lane.b32.xlu0 %v971, 108
        %v1065 = vpop.permute.xlu0 %1064
        %vm1066 = vcmask 883712
        %v1067 = vsel %vm1066, %v1007, %v1009
        %v1068 = vsel %vm1066, %v1009, %v1011
        %v1069 = vsel %vm1066, %v1013, %v1015
        %v1070 = vsel %vm1066, %v1015, %v1017
        %v1071 = vsel %vm1066, %v1019, %v1021
        %v1072 = vsel %vm1066, %v1021, %v1023
        %v1073 = vsel %vm1066, %v1025, %v1027
        %v1074 = vsel %vm1066, %v1027, %v1029
        %v1075 = vsel %vm1066, %v1031, %v1033
        %v1076 = vsel %vm1066, %v1033, %v1035
        %v1077 = vsel %vm1066, %v1037, %v1039
        %v1078 = vsel %vm1066, %v1039, %v1041
        %v1079 = vsel %vm1066, %v1043, %v1045
        %v1080 = vsel %vm1066, %v1045, %v1047
        %v1081 = vsel %vm1066, %v1049, %v1051
        %v1082 = vsel %vm1066, %v1051, %v1053
        %v1083 = vsel %vm1066, %v1055, %v1057
        %v1084 = vsel %vm1066, %v1057, %v1059
        %v1085 = vsel %vm1066, %v1061, %v1063
        %v1086 = vsel %vm1066, %v1063, %v1065
        %vm1117 = vcmask 654336
        %v1119 = vsel %vm1117, %v973, 0
        %v1122 = vsel %vm1117, %v974, 0
        %v1125 = vsel %vm1117, %v975, 0
        %1127 = vmatpush.msra.mxu0 0.0
        %1128 = vmatpush.msra.mxu0 0.0
        %1129 = vmatpush.msra.mxu0 0.0
        %1130 = vmatpush.msra.mxu0 0.0
        %1131 = vmatpush.msra.mxu0 0.0
        %1132 = vmatpush.msra.mxu0 0.0
        %1133 = vmatpush.msra.mxu0 %v1085
        %1134 = vmatpush.msra.mxu0 %v1083
        %1135 = vmatpush.msra.mxu0 %v1081
        %1136 = vmatpush.msra.mxu0 %v1079
        %1137 = vmatpush.msra.mxu0 %v1077
        %1138 = vmatpush.msra.mxu0 %v1075
        %1139 = vmatpush.msra.mxu0 %v1073
        %1140 = vmatpush.msra.mxu0 %v1071
        %1141 = vmatpush.msra.mxu0 %v1069
        %1142 = vmatpush.msra.mxu0 %v1067
        %1143 = vmatmul.f32.gmra.mxu0 %v1119
        %v1144 = vpop.f32.mrf.mxu0
        %v1145 = vadd.f32 0.0, %v1144
        %1146 = vmatmul.f32.gmra.mxu0 %v1122
        %v1147 = vpop.f32.mrf.mxu0
        %v1148 = vadd.f32 0.0, %v1147
        %1149 = vmatmul.f32.gmra.mxu0 %v1125
        %v1150 = vpop.f32.mrf.mxu0
        %v1151 = vadd.f32 0.0, %v1150
        %1152 = vdwg.mxu0
        %1153 = vmatpush.msra.mxu0 0.0
        %1154 = vmatpush.msra.mxu0 0.0
        %1155 = vmatpush.msra.mxu0 0.0
        %1156 = vmatpush.msra.mxu0 0.0
        %1157 = vmatpush.msra.mxu0 0.0
        %1158 = vmatpush.msra.mxu0 0.0
        %1159 = vmatpush.msra.mxu0 %v1086
        %1160 = vmatpush.msra.mxu0 %v1084
        %1161 = vmatpush.msra.mxu0 %v1082
        %1162 = vmatpush.msra.mxu0 %v1080
        %1163 = vmatpush.msra.mxu0 %v1078
        %1164 = vmatpush.msra.mxu0 %v1076
        %1165 = vmatpush.msra.mxu0 %v1074
        %1166 = vmatpush.msra.mxu0 %v1072
        %1167 = vmatpush.msra.mxu0 %v1070
        %1168 = vmatpush.msra.mxu0 %v1068
        %1169 = vmatmul.f32.gmra.mxu0 %v1119
        %v1170 = vpop.f32.mrf.mxu0
        %v1171 = vadd.f32 0.0, %v1170
        %1172 = vmatmul.f32.gmra.mxu0 %v1122
        %v1173 = vpop.f32.mrf.mxu0
        %v1174 = vadd.f32 0.0, %v1173
        %1175 = vmatmul.f32.gmra.mxu0 %v1125
        %v1176 = vpop.f32.mrf.mxu0
        %v1177 = vadd.f32 0.0, %v1176
        %1178 = vdwg.mxu0
        %1179 = vmatpush.msra.mxu0 0.0
        %1180 = vmatpush.msra.mxu0 0.0
        %1181 = vmatpush.msra.mxu0 0.0
        %1182 = vmatpush.msra.mxu0 0.0
        %1183 = vmatpush.msra.mxu0 0.0
        %1184 = vmatpush.msra.mxu0 0.0
        %1185 = vmatpush.msra.mxu0 %v1065
        %1186 = vmatpush.msra.mxu0 %v1059
        %1187 = vmatpush.msra.mxu0 %v1053
        %1188 = vmatpush.msra.mxu0 %v1047
        %1189 = vmatpush.msra.mxu0 %v1041
        %1190 = vmatpush.msra.mxu0 %v1035
        %1191 = vmatpush.msra.mxu0 %v1029
        %1192 = vmatpush.msra.mxu0 %v1023
        %1193 = vmatpush.msra.mxu0 %v1017
        %1194 = vmatpush.msra.mxu0 %v1011
        %1195 = vmatmul.f32.gmra.mxu0 %v1119
        %v1196 = vpop.f32.mrf.mxu0
        %v1197 = vadd.f32 0.0, %v1196
        %1198 = vmatmul.f32.gmra.mxu0 %v1122
        %v1199 = vpop.f32.mrf.mxu0
        %v1200 = vadd.f32 0.0, %v1199
        %1201 = vmatmul.f32.gmra.mxu0 %v1125
        %v1202 = vpop.f32.mrf.mxu0
        %v1203 = vadd.f32 0.0, %v1202
        %1204 = vdwg.mxu0
        %v1206 = vsel %vm1117, %v939, 0
        %v1209 = vsel %vm1117, %v940, 0
        %v1212 = vsel %vm1117, %v941, 0
        %1214 = vmatpush.msra.mxu0 0.0
        %1215 = vmatpush.msra.mxu0 0.0
        %1216 = vmatpush.msra.mxu0 0.0
        %1217 = vmatpush.msra.mxu0 0.0
        %1218 = vmatpush.msra.mxu0 0.0
        %1219 = vmatpush.msra.mxu0 0.0
        %1220 = vmatpush.msra.mxu0 %v969
        %1221 = vmatpush.msra.mxu0 %v966
        %1222 = vmatpush.msra.mxu0 %v963
        %1223 = vmatpush.msra.mxu0 %v960
        %1224 = vmatpush.msra.mxu0 %v957
        %1225 = vmatpush.msra.mxu0 %v954
        %1226 = vmatpush.msra.mxu0 %v951
        %1227 = vmatpush.msra.mxu0 %v948
        %1228 = vmatpush.msra.mxu0 %v945
        %1229 = vmatpush.msra.mxu0 %v942
        %1230 = vmatmul.f32.gmra.mxu0 %v1206
        %v1231 = vpop.f32.mrf.mxu0
        %v1232 = vadd.f32 %v1145, %v1231
        %1233 = vmatmul.f32.gmra.mxu0 %v1209
        %v1234 = vpop.f32.mrf.mxu0
        %v1235 = vadd.f32 %v1148, %v1234
        %1236 = vmatmul.f32.gmra.mxu0 %v1212
        %v1237 = vpop.f32.mrf.mxu0
        %v1238 = vadd.f32 %v1151, %v1237
        %1239 = vdwg.mxu0
        %1240 = vmatpush.msra.mxu0 0.0
        %1241 = vmatpush.msra.mxu0 0.0
        %1242 = vmatpush.msra.mxu0 0.0
        %1243 = vmatpush.msra.mxu0 0.0
        %1244 = vmatpush.msra.mxu0 0.0
        %1245 = vmatpush.msra.mxu0 0.0
        %1246 = vmatpush.msra.mxu0 %v970
        %1247 = vmatpush.msra.mxu0 %v967
        %1248 = vmatpush.msra.mxu0 %v964
        %1249 = vmatpush.msra.mxu0 %v961
        %1250 = vmatpush.msra.mxu0 %v958
        %1251 = vmatpush.msra.mxu0 %v955
        %1252 = vmatpush.msra.mxu0 %v952
        %1253 = vmatpush.msra.mxu0 %v949
        %1254 = vmatpush.msra.mxu0 %v946
        %1255 = vmatpush.msra.mxu0 %v943
        %1256 = vmatmul.f32.gmra.mxu0 %v1206
        %v1257 = vpop.f32.mrf.mxu0
        %v1258 = vadd.f32 %v1171, %v1257
        %1259 = vmatmul.f32.gmra.mxu0 %v1209
        %v1260 = vpop.f32.mrf.mxu0
        %v1261 = vadd.f32 %v1174, %v1260
        %1262 = vmatmul.f32.gmra.mxu0 %v1212
        %v1263 = vpop.f32.mrf.mxu0
        %v1264 = vadd.f32 %v1177, %v1263
        %1265 = vdwg.mxu0
        %1266 = vmatpush.msra.mxu0 0.0
        %1267 = vmatpush.msra.mxu0 0.0
        %1268 = vmatpush.msra.mxu0 0.0
        %1269 = vmatpush.msra.mxu0 0.0
        %1270 = vmatpush.msra.mxu0 0.0
        %1271 = vmatpush.msra.mxu0 0.0
        %1272 = vmatpush.msra.mxu0 %v971
        %1273 = vmatpush.msra.mxu0 %v968
        %1274 = vmatpush.msra.mxu0 %v965
        %1275 = vmatpush.msra.mxu0 %v962
        %1276 = vmatpush.msra.mxu0 %v959
        %1277 = vmatpush.msra.mxu0 %v956
        %1278 = vmatpush.msra.mxu0 %v953
        %1279 = vmatpush.msra.mxu0 %v950
        %1280 = vmatpush.msra.mxu0 %v947
        %1281 = vmatpush.msra.mxu0 %v944
        %1282 = vmatmul.f32.gmra.mxu0 %v1206
        %v1283 = vpop.f32.mrf.mxu0
        %v1284 = vadd.f32 %v1197, %v1283
        %1285 = vmatmul.f32.gmra.mxu0 %v1209
        %v1286 = vpop.f32.mrf.mxu0
        %v1287 = vadd.f32 %v1200, %v1286
        %1288 = vmatmul.f32.gmra.mxu0 %v1212
        %v1289 = vpop.f32.mrf.mxu0
        %v1290 = vadd.f32 %v1203, %v1289
        %1291 = vdwg.mxu0
        %s1292 = scalar_lea.vmem %s3, 48
        %v1293 = vld [vmem:[%s1292] sm:$0xff]
        %v1294 = vld [vmem:[%s1292 + $0x8] sm:$0xff]
        %v1295 = vld [vmem:[%s1292 + $0x10] sm:$0xf]
        %1296 = vrot.lane.b32.xlu0 %v942, 88
        %v1297 = vpop.permute.xlu0 %1296
        %1298 = vrot.lane.b32.xlu0 %v943, 88
        %v1299 = vpop.permute.xlu0 %1298
        %1300 = vrot.lane.b32.xlu0 %v944, 88
        %v1301 = vpop.permute.xlu0 %1300
        %1302 = vrot.lane.b32.xlu0 %v945, 88
        %v1303 = vpop.permute.xlu0 %1302
        %1304 = vrot.lane.b32.xlu0 %v946, 88
        %v1305 = vpop.permute.xlu0 %1304
        %1306 = vrot.lane.b32.xlu0 %v947, 88
        %v1307 = vpop.permute.xlu0 %1306
        %1308 = vrot.lane.b32.xlu0 %v948, 88
        %v1309 = vpop.permute.xlu0 %1308
        %1310 = vrot.lane.b32.xlu0 %v949, 88
        %v1311 = vpop.permute.xlu0 %1310
        %1312 = vrot.lane.b32.xlu0 %v950, 88
        %v1313 = vpop.permute.xlu0 %1312
        %1314 = vrot.lane.b32.xlu0 %v951, 88
        %v1315 = vpop.permute.xlu0 %1314
        %1316 = vrot.lane.b32.xlu0 %v952, 88
        %v1317 = vpop.permute.xlu0 %1316
        %1318 = vrot.lane.b32.xlu0 %v953, 88
        %v1319 = vpop.permute.xlu0 %1318
        %1320 = vrot.lane.b32.xlu0 %v954, 88
        %v1321 = vpop.permute.xlu0 %1320
        %1322 = vrot.lane.b32.xlu0 %v955, 88
        %v1323 = vpop.permute.xlu0 %1322
        %1324 = vrot.lane.b32.xlu0 %v956, 88
        %v1325 = vpop.permute.xlu0 %1324
        %1326 = vrot.lane.b32.xlu0 %v957, 88
        %v1327 = vpop.permute.xlu0 %1326
        %1328 = vrot.lane.b32.xlu0 %v958, 88
        %v1329 = vpop.permute.xlu0 %1328
        %1330 = vrot.lane.b32.xlu0 %v959, 88
        %v1331 = vpop.permute.xlu0 %1330
        %1332 = vrot.lane.b32.xlu0 %v960, 88
        %v1333 = vpop.permute.xlu0 %1332
        %1334 = vrot.lane.b32.xlu0 %v961, 88
        %v1335 = vpop.permute.xlu0 %1334
        %1336 = vrot.lane.b32.xlu0 %v962, 88
        %v1337 = vpop.permute.xlu0 %1336
        %1338 = vrot.lane.b32.xlu0 %v963, 88
        %v1339 = vpop.permute.xlu0 %1338
        %1340 = vrot.lane.b32.xlu0 %v964, 88
        %v1341 = vpop.permute.xlu0 %1340
        %1342 = vrot.lane.b32.xlu0 %v965, 88
        %v1343 = vpop.permute.xlu0 %1342
        %1344 = vrot.lane.b32.xlu0 %v966, 88
        %v1345 = vpop.permute.xlu0 %1344
        %1346 = vrot.lane.b32.xlu0 %v967, 88
        %v1347 = vpop.permute.xlu0 %1346
        %1348 = vrot.lane.b32.xlu0 %v968, 88
        %v1349 = vpop.permute.xlu0 %1348
        %1350 = vrot.lane.b32.xlu0 %v969, 88
        %v1351 = vpop.permute.xlu0 %1350
        %1352 = vrot.lane.b32.xlu0 %v970, 88
        %v1353 = vpop.permute.xlu0 %1352
        %1354 = vrot.lane.b32.xlu0 %v971, 88
        %v1355 = vpop.permute.xlu0 %1354
        %vm1356 = vcmask 719872
        %v1357 = vsel %vm1356, %v1297, %v1299
        %v1358 = vsel %vm1356, %v1299, %v1301
        %v1359 = vsel %vm1356, %v1303, %v1305
        %v1360 = vsel %vm1356, %v1305, %v1307
        %v1361 = vsel %vm1356, %v1309, %v1311
        %v1362 = vsel %vm1356, %v1311, %v1313
        %v1363 = vsel %vm1356, %v1315, %v1317
        %v1364 = vsel %vm1356, %v1317, %v1319
        %v1365 = vsel %vm1356, %v1321, %v1323
        %v1366 = vsel %vm1356, %v1323, %v1325
        %v1367 = vsel %vm1356, %v1327, %v1329
        %v1368 = vsel %vm1356, %v1329, %v1331
        %v1369 = vsel %vm1356, %v1333, %v1335
        %v1370 = vsel %vm1356, %v1335, %v1337
        %v1371 = vsel %vm1356, %v1339, %v1341
        %v1372 = vsel %vm1356, %v1341, %v1343
        %v1373 = vsel %vm1356, %v1345, %v1347
        %v1374 = vsel %vm1356, %v1347, %v1349
        %v1375 = vsel %vm1356, %v1351, %v1353
        %v1376 = vsel %vm1356, %v1353, %v1355
        %v1408 = vsel %vm1117, %v1293, 0
        %v1411 = vsel %vm1117, %v1294, 0
        %v1414 = vsel %vm1117, %v1295, 0
        %1416 = vmatpush.msra.mxu0 0.0
        %1417 = vmatpush.msra.mxu0 0.0
        %1418 = vmatpush.msra.mxu0 0.0
        %1419 = vmatpush.msra.mxu0 0.0
        %1420 = vmatpush.msra.mxu0 0.0
        %1421 = vmatpush.msra.mxu0 0.0
        %1422 = vmatpush.msra.mxu0 %v1375
        %1423 = vmatpush.msra.mxu0 %v1373
        %1424 = vmatpush.msra.mxu0 %v1371
        %1425 = vmatpush.msra.mxu0 %v1369
        %1426 = vmatpush.msra.mxu0 %v1367
        %1427 = vmatpush.msra.mxu0 %v1365
        %1428 = vmatpush.msra.mxu0 %v1363
        %1429 = vmatpush.msra.mxu0 %v1361
        %1430 = vmatpush.msra.mxu0 %v1359
        %1431 = vmatpush.msra.mxu0 %v1357
        %1432 = vmatmul.f32.gmra.mxu0 %v1408
        %v1433 = vpop.f32.mrf.mxu0
        %v1434 = vadd.f32 0.0, %v1433
        %1435 = vmatmul.f32.gmra.mxu0 %v1411
        %v1436 = vpop.f32.mrf.mxu0
        %v1437 = vadd.f32 0.0, %v1436
        %1438 = vmatmul.f32.gmra.mxu0 %v1414
        %v1439 = vpop.f32.mrf.mxu0
        %v1440 = vadd.f32 0.0, %v1439
        %1441 = vdwg.mxu0
        %1442 = vmatpush.msra.mxu0 0.0
        %1443 = vmatpush.msra.mxu0 0.0
        %1444 = vmatpush.msra.mxu0 0.0
        %1445 = vmatpush.msra.mxu0 0.0
        %1446 = vmatpush.msra.mxu0 0.0
        %1447 = vmatpush.msra.mxu0 0.0
        %1448 = vmatpush.msra.mxu0 %v1376
        %1449 = vmatpush.msra.mxu0 %v1374
        %1450 = vmatpush.msra.mxu0 %v1372
        %1451 = vmatpush.msra.mxu0 %v1370
        %1452 = vmatpush.msra.mxu0 %v1368
        %1453 = vmatpush.msra.mxu0 %v1366
        %1454 = vmatpush.msra.mxu0 %v1364
        %1455 = vmatpush.msra.mxu0 %v1362
        %1456 = vmatpush.msra.mxu0 %v1360
        %1457 = vmatpush.msra.mxu0 %v1358
        %1458 = vmatmul.f32.gmra.mxu0 %v1408
        %v1459 = vpop.f32.mrf.mxu0
        %v1460 = vadd.f32 0.0, %v1459
        %1461 = vmatmul.f32.gmra.mxu0 %v1411
        %v1462 = vpop.f32.mrf.mxu0
        %v1463 = vadd.f32 0.0, %v1462
        %1464 = vmatmul.f32.gmra.mxu0 %v1414
        %v1465 = vpop.f32.mrf.mxu0
        %v1466 = vadd.f32 0.0, %v1465
        %1467 = vdwg.mxu0
        %1468 = vmatpush.msra.mxu0 0.0
        %1469 = vmatpush.msra.mxu0 0.0
        %1470 = vmatpush.msra.mxu0 0.0
        %1471 = vmatpush.msra.mxu0 0.0
        %1472 = vmatpush.msra.mxu0 0.0
        %1473 = vmatpush.msra.mxu0 0.0
        %1474 = vmatpush.msra.mxu0 %v1355
        %1475 = vmatpush.msra.mxu0 %v1349
        %1476 = vmatpush.msra.mxu0 %v1343
        %1477 = vmatpush.msra.mxu0 %v1337
        %1478 = vmatpush.msra.mxu0 %v1331
        %1479 = vmatpush.msra.mxu0 %v1325
        %1480 = vmatpush.msra.mxu0 %v1319
        %1481 = vmatpush.msra.mxu0 %v1313
        %1482 = vmatpush.msra.mxu0 %v1307
        %1483 = vmatpush.msra.mxu0 %v1301
        %1484 = vmatmul.f32.gmra.mxu0 %v1408
        %v1485 = vpop.f32.mrf.mxu0
        %v1486 = vadd.f32 0.0, %v1485
        %1487 = vmatmul.f32.gmra.mxu0 %v1411
        %v1488 = vpop.f32.mrf.mxu0
        %v1489 = vadd.f32 0.0, %v1488
        %1490 = vmatmul.f32.gmra.mxu0 %v1414
        %v1491 = vpop.f32.mrf.mxu0
        %v1492 = vadd.f32 0.0, %v1491
        %1493 = vdwg.mxu0
        %v1494 = vadd.f32 %v1232, %v1434
        %v1495 = vadd.f32 %v1258, %v1460
        %v1496 = vadd.f32 %v1284, %v1486
        %v1497 = vadd.f32 %v1235, %v1437
        %v1498 = vadd.f32 %v1261, %v1463
        %v1499 = vadd.f32 %v1287, %v1489
        %v1500 = vadd.f32 %v1238, %v1440
        %v1501 = vadd.f32 %v1264, %v1466
        %v1502 = vadd.f32 %v1290, %v1492
        %s1503 = scalar_lea.vmem %s3, 72
        %v1504 = vld [vmem:[%s1503] sm:$0xff]
        %v1505 = vld [vmem:[%s1503 + $0x8] sm:$0xff]
        %v1506 = vld [vmem:[%s1503 + $0x10] sm:$0xf]
        %1507 = vrot.lane.b32.xlu0 %v942, 68
        %v1508 = vpop.permute.xlu0 %1507
        %1509 = vrot.lane.b32.xlu0 %v943, 68
        %v1510 = vpop.permute.xlu0 %1509
        %1511 = vrot.lane.b32.xlu0 %v944, 68
        %v1512 = vpop.permute.xlu0 %1511
        %1513 = vrot.lane.b32.xlu0 %v945, 68
        %v1514 = vpop.permute.xlu0 %1513
        %1515 = vrot.lane.b32.xlu0 %v946, 68
        %v1516 = vpop.permute.xlu0 %1515
        %1517 = vrot.lane.b32.xlu0 %v947, 68
        %v1518 = vpop.permute.xlu0 %1517
        %1519 = vrot.lane.b32.xlu0 %v948, 68
        %v1520 = vpop.permute.xlu0 %1519
        %1521 = vrot.lane.b32.xlu0 %v949, 68
        %v1522 = vpop.permute.xlu0 %1521
        %1523 = vrot.lane.b32.xlu0 %v950, 68
        %v1524 = vpop.permute.xlu0 %1523
        %1525 = vrot.lane.b32.xlu0 %v951, 68
        %v1526 = vpop.permute.xlu0 %1525
        %1527 = vrot.lane.b32.xlu0 %v952, 68
        %v1528 = vpop.permute.xlu0 %1527
        %1529 = vrot.lane.b32.xlu0 %v953, 68
        %v1530 = vpop.permute.xlu0 %1529
        %1531 = vrot.lane.b32.xlu0 %v954, 68
        %v1532 = vpop.permute.xlu0 %1531
        %1533 = vrot.lane.b32.xlu0 %v955, 68
        %v1534 = vpop.permute.xlu0 %1533
        %1535 = vrot.lane.b32.xlu0 %v956, 68
        %v1536 = vpop.permute.xlu0 %1535
        %1537 = vrot.lane.b32.xlu0 %v957, 68
        %v1538 = vpop.permute.xlu0 %1537
        %1539 = vrot.lane.b32.xlu0 %v958, 68
        %v1540 = vpop.permute.xlu0 %1539
        %1541 = vrot.lane.b32.xlu0 %v959, 68
        %v1542 = vpop.permute.xlu0 %1541
        %1543 = vrot.lane.b32.xlu0 %v960, 68
        %v1544 = vpop.permute.xlu0 %1543
        %1545 = vrot.lane.b32.xlu0 %v961, 68
        %v1546 = vpop.permute.xlu0 %1545
        %1547 = vrot.lane.b32.xlu0 %v962, 68
        %v1548 = vpop.permute.xlu0 %1547
        %1549 = vrot.lane.b32.xlu0 %v963, 68
        %v1550 = vpop.permute.xlu0 %1549
        %1551 = vrot.lane.b32.xlu0 %v964, 68
        %v1552 = vpop.permute.xlu0 %1551
        %1553 = vrot.lane.b32.xlu0 %v965, 68
        %v1554 = vpop.permute.xlu0 %1553
        %1555 = vrot.lane.b32.xlu0 %v966, 68
        %v1556 = vpop.permute.xlu0 %1555
        %1557 = vrot.lane.b32.xlu0 %v967, 68
        %v1558 = vpop.permute.xlu0 %1557
        %1559 = vrot.lane.b32.xlu0 %v968, 68
        %v1560 = vpop.permute.xlu0 %1559
        %1561 = vrot.lane.b32.xlu0 %v969, 68
        %v1562 = vpop.permute.xlu0 %1561
        %1563 = vrot.lane.b32.xlu0 %v970, 68
        %v1564 = vpop.permute.xlu0 %1563
        %1565 = vrot.lane.b32.xlu0 %v971, 68
        %v1566 = vpop.permute.xlu0 %1565
        %vm1567 = vcmask 556032
        %v1568 = vsel %vm1567, %v1508, %v1510
        %v1569 = vsel %vm1567, %v1510, %v1512
        %v1570 = vsel %vm1567, %v1514, %v1516
        %v1571 = vsel %vm1567, %v1516, %v1518
        %v1572 = vsel %vm1567, %v1520, %v1522
        %v1573 = vsel %vm1567, %v1522, %v1524
        %v1574 = vsel %vm1567, %v1526, %v1528
        %v1575 = vsel %vm1567, %v1528, %v1530
        %v1576 = vsel %vm1567, %v1532, %v1534
        %v1577 = vsel %vm1567, %v1534, %v1536
        %v1578 = vsel %vm1567, %v1538, %v1540
        %v1579 = vsel %vm1567, %v1540, %v1542
        %v1580 = vsel %vm1567, %v1544, %v1546
        %v1581 = vsel %vm1567, %v1546, %v1548
        %v1582 = vsel %vm1567, %v1550, %v1552
        %v1583 = vsel %vm1567, %v1552, %v1554
        %v1584 = vsel %vm1567, %v1556, %v1558
        %v1585 = vsel %vm1567, %v1558, %v1560
        %v1586 = vsel %vm1567, %v1562, %v1564
        %v1587 = vsel %vm1567, %v1564, %v1566
        %v1619 = vsel %vm1117, %v1504, 0
        %v1622 = vsel %vm1117, %v1505, 0
        %v1625 = vsel %vm1117, %v1506, 0
        %1627 = vmatpush.msra.mxu0 0.0
        %1628 = vmatpush.msra.mxu0 0.0
        %1629 = vmatpush.msra.mxu0 0.0
        %1630 = vmatpush.msra.mxu0 0.0
        %1631 = vmatpush.msra.mxu0 0.0
        %1632 = vmatpush.msra.mxu0 0.0
        %1633 = vmatpush.msra.mxu0 %v1586
        %1634 = vmatpush.msra.mxu0 %v1584
        %1635 = vmatpush.msra.mxu0 %v1582
        %1636 = vmatpush.msra.mxu0 %v1580
        %1637 = vmatpush.msra.mxu0 %v1578
        %1638 = vmatpush.msra.mxu0 %v1576
        %1639 = vmatpush.msra.mxu0 %v1574
        %1640 = vmatpush.msra.mxu0 %v1572
        %1641 = vmatpush.msra.mxu0 %v1570
        %1642 = vmatpush.msra.mxu0 %v1568
        %1643 = vmatmul.f32.gmra.mxu0 %v1619
        %v1644 = vpop.f32.mrf.mxu0
        %v1645 = vadd.f32 0.0, %v1644
        %1646 = vmatmul.f32.gmra.mxu0 %v1622
        %v1647 = vpop.f32.mrf.mxu0
        %v1648 = vadd.f32 0.0, %v1647
        %1649 = vmatmul.f32.gmra.mxu0 %v1625
        %v1650 = vpop.f32.mrf.mxu0
        %v1651 = vadd.f32 0.0, %v1650
        %1652 = vdwg.mxu0
        %1653 = vmatpush.msra.mxu0 0.0
        %1654 = vmatpush.msra.mxu0 0.0
        %1655 = vmatpush.msra.mxu0 0.0
        %1656 = vmatpush.msra.mxu0 0.0
        %1657 = vmatpush.msra.mxu0 0.0
        %1658 = vmatpush.msra.mxu0 0.0
        %1659 = vmatpush.msra.mxu0 %v1587
        %1660 = vmatpush.msra.mxu0 %v1585
        %1661 = vmatpush.msra.mxu0 %v1583
        %1662 = vmatpush.msra.mxu0 %v1581
        %1663 = vmatpush.msra.mxu0 %v1579
        %1664 = vmatpush.msra.mxu0 %v1577
        %1665 = vmatpush.msra.mxu0 %v1575
        %1666 = vmatpush.msra.mxu0 %v1573
        %1667 = vmatpush.msra.mxu0 %v1571
        %1668 = vmatpush.msra.mxu0 %v1569
        %1669 = vmatmul.f32.gmra.mxu0 %v1619
        %v1670 = vpop.f32.mrf.mxu0
        %v1671 = vadd.f32 0.0, %v1670
        %1672 = vmatmul.f32.gmra.mxu0 %v1622
        %v1673 = vpop.f32.mrf.mxu0
        %v1674 = vadd.f32 0.0, %v1673
        %1675 = vmatmul.f32.gmra.mxu0 %v1625
        %v1676 = vpop.f32.mrf.mxu0
        %v1677 = vadd.f32 0.0, %v1676
        %1678 = vdwg.mxu0
        %1679 = vmatpush.msra.mxu0 0.0
        %1680 = vmatpush.msra.mxu0 0.0
        %1681 = vmatpush.msra.mxu0 0.0
        %1682 = vmatpush.msra.mxu0 0.0
        %1683 = vmatpush.msra.mxu0 0.0
        %1684 = vmatpush.msra.mxu0 0.0
        %1685 = vmatpush.msra.mxu0 %v1566
        %1686 = vmatpush.msra.mxu0 %v1560
        %1687 = vmatpush.msra.mxu0 %v1554
        %1688 = vmatpush.msra.mxu0 %v1548
        %1689 = vmatpush.msra.mxu0 %v1542
        %1690 = vmatpush.msra.mxu0 %v1536
        %1691 = vmatpush.msra.mxu0 %v1530
        %1692 = vmatpush.msra.mxu0 %v1524
        %1693 = vmatpush.msra.mxu0 %v1518
        %1694 = vmatpush.msra.mxu0 %v1512
        %1695 = vmatmul.f32.gmra.mxu0 %v1619
        %v1696 = vpop.f32.mrf.mxu0
        %v1697 = vadd.f32 0.0, %v1696
        %1698 = vmatmul.f32.gmra.mxu0 %v1622
        %v1699 = vpop.f32.mrf.mxu0
        %v1700 = vadd.f32 0.0, %v1699
        %1701 = vmatmul.f32.gmra.mxu0 %v1625
        %v1702 = vpop.f32.mrf.mxu0
        %v1703 = vadd.f32 0.0, %v1702
        %1704 = vdwg.mxu0
        %v1705 = vadd.f32 %v1494, %v1645
        %v1706 = vadd.f32 %v1495, %v1671
        %v1707 = vadd.f32 %v1496, %v1697
        %v1708 = vadd.f32 %v1497, %v1648
        %v1709 = vadd.f32 %v1498, %v1674
        %v1710 = vadd.f32 %v1499, %v1700
        %v1711 = vadd.f32 %v1500, %v1651
        %v1712 = vadd.f32 %v1501, %v1677
        %v1713 = vadd.f32 %v1502, %v1703
        %s1714 = scalar_lea.vmem %s3, 96
        %v1715 = vld [vmem:[%s1714] sm:$0xff]
        %v1716 = vld [vmem:[%s1714 + $0x8] sm:$0xff]
        %v1717 = vld [vmem:[%s1714 + $0x10] sm:$0xf]
        %v1718 = vld [vmem:[#allocation2] sm:$0xff]
        %v1719 = vld [vmem:[#allocation2 + $0x8] sm:$0xff]
        %v1720 = vld [vmem:[#allocation2 + $0x10] sm:$0xff]
        %v1721 = vld [vmem:[#allocation2 + $0x18] sm:$0xff]
        %v1722 = vld [vmem:[#allocation2 + $0x20] sm:$0xff]
        %v1723 = vld [vmem:[#allocation2 + $0x28] sm:$0xff]
        %v1724 = vld [vmem:[#allocation2 + $0x30] sm:$0xff]
        %v1725 = vld [vmem:[#allocation2 + $0x38] sm:$0xff]
        %v1726 = vld [vmem:[#allocation2 + $0x40] sm:$0xff]
        %v1727 = vld [vmem:[#allocation2 + $0x48] sm:$0xff]
        %v1728 = vld [vmem:[#allocation2 + $0x50] sm:$0xff]
        %v1729 = vld [vmem:[#allocation2 + $0x58] sm:$0xff]
        %v1730 = vld [vmem:[#allocation2 + $0x60] sm:$0xff]
        %v1731 = vld [vmem:[#allocation2 + $0x68] sm:$0xff]
        %v1732 = vld [vmem:[#allocation2 + $0x70] sm:$0xff]
        %v1733 = vld [vmem:[#allocation2 + $0x78] sm:$0xff]
        %v1734 = vld [vmem:[#allocation2 + $0x80] sm:$0xff]
        %v1735 = vld [vmem:[#allocation2 + $0x88] sm:$0xff]
        %v1736 = vld [vmem:[#allocation2 + $0x90] sm:$0xff]
        %v1737 = vld [vmem:[#allocation2 + $0x98] sm:$0xff]
        %v1738 = vld [vmem:[#allocation2 + $0xa0] sm:$0xff]
        %v1739 = vld [vmem:[#allocation2 + $0xa8] sm:$0xff]
        %v1740 = vld [vmem:[#allocation2 + $0xb0] sm:$0xff]
        %v1741 = vld [vmem:[#allocation2 + $0xb8] sm:$0xff]
        %v1742 = vld [vmem:[#allocation2 + $0xc0] sm:$0xff]
        %v1743 = vld [vmem:[#allocation2 + $0xc8] sm:$0xff]
        %v1744 = vld [vmem:[#allocation2 + $0xd0] sm:$0xff]
        %v1745 = vld [vmem:[#allocation2 + $0xd8] sm:$0xff]
        %v1746 = vld [vmem:[#allocation2 + $0xe0] sm:$0xff]
        %v1747 = vld [vmem:[#allocation2 + $0xe8] sm:$0xff]
        %v1748 = vld [vmem:[#allocation2 + $0xf0] sm:$0xff]
        %v1749 = vld [vmem:[#allocation2 + $0xf8] sm:$0xff]
        %v1750 = vld [vmem:[#allocation2 + $0x100] sm:$0xff]
        %v1751 = vld [vmem:[#allocation2 + $0x108] sm:$0xff]
        %v1752 = vld [vmem:[#allocation2 + $0x110] sm:$0xff]
        %v1753 = vld [vmem:[#allocation2 + $0x118] sm:$0xff]
        %v1754 = vld [vmem:[#allocation2 + $0x120] sm:$0xff]
        %v1755 = vld [vmem:[#allocation2 + $0x128] sm:$0xff]
        %v1756 = vld [vmem:[#allocation2 + $0x130] sm:$0xff]
        %v1757 = vld [vmem:[#allocation2 + $0x138] sm:$0xff]
        %1798 = vrot.lane.b32.xlu0 %v1718, 48
        %v1799 = vpop.permute.xlu0 %1798
        %1800 = vrot.lane.b32.xlu0 %v1719, 48
        %v1801 = vpop.permute.xlu0 %1800
        %1802 = vrot.lane.b32.xlu0 %v1720, 48
        %v1803 = vpop.permute.xlu0 %1802
        %1804 = vrot.lane.b32.xlu0 %v1721, 48
        %v1805 = vpop.permute.xlu0 %1804
        %1806 = vrot.lane.b32.xlu0 %v1722, 48
        %v1807 = vpop.permute.xlu0 %1806
        %1808 = vrot.lane.b32.xlu0 %v1723, 48
        %v1809 = vpop.permute.xlu0 %1808
        %1810 = vrot.lane.b32.xlu0 %v1724, 48
        %v1811 = vpop.permute.xlu0 %1810
        %1812 = vrot.lane.b32.xlu0 %v1725, 48
        %v1813 = vpop.permute.xlu0 %1812
        %1814 = vrot.lane.b32.xlu0 %v1726, 48
        %v1815 = vpop.permute.xlu0 %1814
        %1816 = vrot.lane.b32.xlu0 %v1727, 48
        %v1817 = vpop.permute.xlu0 %1816
        %1818 = vrot.lane.b32.xlu0 %v1728, 48
        %v1819 = vpop.permute.xlu0 %1818
        %1820 = vrot.lane.b32.xlu0 %v1729, 48
        %v1821 = vpop.permute.xlu0 %1820
        %1822 = vrot.lane.b32.xlu0 %v1730, 48
        %v1823 = vpop.permute.xlu0 %1822
        %1824 = vrot.lane.b32.xlu0 %v1731, 48
        %v1825 = vpop.permute.xlu0 %1824
        %1826 = vrot.lane.b32.xlu0 %v1732, 48
        %v1827 = vpop.permute.xlu0 %1826
        %1828 = vrot.lane.b32.xlu0 %v1733, 48
        %v1829 = vpop.permute.xlu0 %1828
        %1830 = vrot.lane.b32.xlu0 %v1734, 48
        %v1831 = vpop.permute.xlu0 %1830
        %1832 = vrot.lane.b32.xlu0 %v1735, 48
        %v1833 = vpop.permute.xlu0 %1832
        %1834 = vrot.lane.b32.xlu0 %v1736, 48
        %v1835 = vpop.permute.xlu0 %1834
        %1836 = vrot.lane.b32.xlu0 %v1737, 48
        %v1837 = vpop.permute.xlu0 %1836
        %1838 = vrot.lane.b32.xlu0 %v1738, 48
        %v1839 = vpop.permute.xlu0 %1838
        %1840 = vrot.lane.b32.xlu0 %v1739, 48
        %v1841 = vpop.permute.xlu0 %1840
        %1842 = vrot.lane.b32.xlu0 %v1740, 48
        %v1843 = vpop.permute.xlu0 %1842
        %1844 = vrot.lane.b32.xlu0 %v1741, 48
        %v1845 = vpop.permute.xlu0 %1844
        %1846 = vrot.lane.b32.xlu0 %v1742, 48
        %v1847 = vpop.permute.xlu0 %1846
        %1848 = vrot.lane.b32.xlu0 %v1743, 48
        %v1849 = vpop.permute.xlu0 %1848
        %1850 = vrot.lane.b32.xlu0 %v1744, 48
        %v1851 = vpop.permute.xlu0 %1850
        %1852 = vrot.lane.b32.xlu0 %v1745, 48
        %v1853 = vpop.permute.xlu0 %1852
        %1854 = vrot.lane.b32.xlu0 %v1746, 48
        %v1855 = vpop.permute.xlu0 %1854
        %1856 = vrot.lane.b32.xlu0 %v1747, 48
        %v1857 = vpop.permute.xlu0 %1856
        %1858 = vrot.lane.b32.xlu0 %v1748, 48
        %v1859 = vpop.permute.xlu0 %1858
        %1860 = vrot.lane.b32.xlu0 %v1749, 48
        %v1861 = vpop.permute.xlu0 %1860
        %1862 = vrot.lane.b32.xlu0 %v1750, 48
        %v1863 = vpop.permute.xlu0 %1862
        %1864 = vrot.lane.b32.xlu0 %v1751, 48
        %v1865 = vpop.permute.xlu0 %1864
        %1866 = vrot.lane.b32.xlu0 %v1752, 48
        %v1867 = vpop.permute.xlu0 %1866
        %1868 = vrot.lane.b32.xlu0 %v1753, 48
        %v1869 = vpop.permute.xlu0 %1868
        %1870 = vrot.lane.b32.xlu0 %v1754, 48
        %v1871 = vpop.permute.xlu0 %1870
        %1872 = vrot.lane.b32.xlu0 %v1755, 48
        %v1873 = vpop.permute.xlu0 %1872
        %1874 = vrot.lane.b32.xlu0 %v1756, 48
        %v1875 = vpop.permute.xlu0 %1874
        %1876 = vrot.lane.b32.xlu0 %v1757, 48
        %v1877 = vpop.permute.xlu0 %1876
        %vm1878 = vcmask 392192
        %v1879 = vsel %vm1878, %v1799, %v1801
        %v1880 = vsel %vm1878, %v1801, %v1803
        %v1881 = vsel %vm1878, %v1803, %v1805
        %v1882 = vsel %vm1878, %v1807, %v1809
        %v1883 = vsel %vm1878, %v1809, %v1811
        %v1884 = vsel %vm1878, %v1811, %v1813
        %v1885 = vsel %vm1878, %v1815, %v1817
        %v1886 = vsel %vm1878, %v1817, %v1819
        %v1887 = vsel %vm1878, %v1819, %v1821
        %v1888 = vsel %vm1878, %v1823, %v1825
        %v1889 = vsel %vm1878, %v1825, %v1827
        %v1890 = vsel %vm1878, %v1827, %v1829
        %v1891 = vsel %vm1878, %v1831, %v1833
        %v1892 = vsel %vm1878, %v1833, %v1835
        %v1893 = vsel %vm1878, %v1835, %v1837
        %v1894 = vsel %vm1878, %v1839, %v1841
        %v1895 = vsel %vm1878, %v1841, %v1843
        %v1896 = vsel %vm1878, %v1843, %v1845
        %v1897 = vsel %vm1878, %v1847, %v1849
        %v1898 = vsel %vm1878, %v1849, %v1851
        %v1899 = vsel %vm1878, %v1851, %v1853
        %v1900 = vsel %vm1878, %v1855, %v1857
        %v1901 = vsel %vm1878, %v1857, %v1859
        %v1902 = vsel %vm1878, %v1859, %v1861
        %v1903 = vsel %vm1878, %v1863, %v1865
        %v1904 = vsel %vm1878, %v1865, %v1867
        %v1905 = vsel %vm1878, %v1867, %v1869
        %v1906 = vsel %vm1878, %v1871, %v1873
        %v1907 = vsel %vm1878, %v1873, %v1875
        %v1908 = vsel %vm1878, %v1875, %v1877
        %v1940 = vsel %vm1117, %v1715, 0
        %v1943 = vsel %vm1117, %v1716, 0
        %v1946 = vsel %vm1117, %v1717, 0
        %1948 = vmatpush.msra.mxu0 0.0
        %1949 = vmatpush.msra.mxu0 0.0
        %1950 = vmatpush.msra.mxu0 0.0
        %1951 = vmatpush.msra.mxu0 0.0
        %1952 = vmatpush.msra.mxu0 0.0
        %1953 = vmatpush.msra.mxu0 0.0
        %1954 = vmatpush.msra.mxu0 %v1906
        %1955 = vmatpush.msra.mxu0 %v1903
        %1956 = vmatpush.msra.mxu0 %v1900
        %1957 = vmatpush.msra.mxu0 %v1897
        %1958 = vmatpush.msra.mxu0 %v1894
        %1959 = vmatpush.msra.mxu0 %v1891
        %1960 = vmatpush.msra.mxu0 %v1888
        %1961 = vmatpush.msra.mxu0 %v1885
        %1962 = vmatpush.msra.mxu0 %v1882
        %1963 = vmatpush.msra.mxu0 %v1879
        %1964 = vmatmul.f32.gmra.mxu0 %v1940
        %v1965 = vpop.f32.mrf.mxu0
        %v1966 = vadd.f32 0.0, %v1965
        %1967 = vmatmul.f32.gmra.mxu0 %v1943
        %v1968 = vpop.f32.mrf.mxu0
        %v1969 = vadd.f32 0.0, %v1968
        %1970 = vmatmul.f32.gmra.mxu0 %v1946
        %v1971 = vpop.f32.mrf.mxu0
        %v1972 = vadd.f32 0.0, %v1971
        %1973 = vdwg.mxu0
        %1974 = vmatpush.msra.mxu0 0.0
        %1975 = vmatpush.msra.mxu0 0.0
        %1976 = vmatpush.msra.mxu0 0.0
        %1977 = vmatpush.msra.mxu0 0.0
        %1978 = vmatpush.msra.mxu0 0.0
        %1979 = vmatpush.msra.mxu0 0.0
        %1980 = vmatpush.msra.mxu0 %v1907
        %1981 = vmatpush.msra.mxu0 %v1904
        %1982 = vmatpush.msra.mxu0 %v1901
        %1983 = vmatpush.msra.mxu0 %v1898
        %1984 = vmatpush.msra.mxu0 %v1895
        %1985 = vmatpush.msra.mxu0 %v1892
        %1986 = vmatpush.msra.mxu0 %v1889
        %1987 = vmatpush.msra.mxu0 %v1886
        %1988 = vmatpush.msra.mxu0 %v1883
        %1989 = vmatpush.msra.mxu0 %v1880
        %1990 = vmatmul.f32.gmra.mxu0 %v1940
        %v1991 = vpop.f32.mrf.mxu0
        %v1992 = vadd.f32 0.0, %v1991
        %1993 = vmatmul.f32.gmra.mxu0 %v1943
        %v1994 = vpop.f32.mrf.mxu0
        %v1995 = vadd.f32 0.0, %v1994
        %1996 = vmatmul.f32.gmra.mxu0 %v1946
        %v1997 = vpop.f32.mrf.mxu0
        %v1998 = vadd.f32 0.0, %v1997
        %1999 = vdwg.mxu0
        %2000 = vmatpush.msra.mxu0 0.0
        %2001 = vmatpush.msra.mxu0 0.0
        %2002 = vmatpush.msra.mxu0 0.0
        %2003 = vmatpush.msra.mxu0 0.0
        %2004 = vmatpush.msra.mxu0 0.0
        %2005 = vmatpush.msra.mxu0 0.0
        %2006 = vmatpush.msra.mxu0 %v1908
        %2007 = vmatpush.msra.mxu0 %v1905
        %2008 = vmatpush.msra.mxu0 %v1902
        %2009 = vmatpush.msra.mxu0 %v1899
        %2010 = vmatpush.msra.mxu0 %v1896
        %2011 = vmatpush.msra.mxu0 %v1893
        %2012 = vmatpush.msra.mxu0 %v1890
        %2013 = vmatpush.msra.mxu0 %v1887
        %2014 = vmatpush.msra.mxu0 %v1884
        %2015 = vmatpush.msra.mxu0 %v1881
        %2016 = vmatmul.f32.gmra.mxu0 %v1940
        %v2017 = vpop.f32.mrf.mxu0
        %v2018 = vadd.f32 0.0, %v2017
        %2019 = vmatmul.f32.gmra.mxu0 %v1943
        %v2020 = vpop.f32.mrf.mxu0
        %v2021 = vadd.f32 0.0, %v2020
        %2022 = vmatmul.f32.gmra.mxu0 %v1946
        %v2023 = vpop.f32.mrf.mxu0
        %v2024 = vadd.f32 0.0, %v2023
        %2025 = vdwg.mxu0
        %v2026 = vadd.f32 %v1705, %v1966
        %v2027 = vadd.f32 %v1706, %v1992
        %v2028 = vadd.f32 %v1707, %v2018
        %v2029 = vadd.f32 %v1708, %v1969
        %v2030 = vadd.f32 %v1709, %v1995
        %v2031 = vadd.f32 %v1710, %v2021
        %v2032 = vadd.f32 %v1711, %v1972
        %v2033 = vadd.f32 %v1712, %v1998
        %v2034 = vadd.f32 %v1713, %v2024
        %2044 = vrot.lane.b32.xlu0 %v2026, 127
        %v2045 = vpop.permute.xlu0 %2044
        %2046 = vrot.lane.b32.xlu0 %v2027, 127
        %v2047 = vpop.permute.xlu0 %2046
        %2048 = vrot.lane.b32.xlu0 %v2028, 127
        %v2049 = vpop.permute.xlu0 %2048
        %2050 = vrot.lane.b32.xlu0 %v2029, 127
        %v2051 = vpop.permute.xlu0 %2050
        %2052 = vrot.lane.b32.xlu0 %v2030, 127
        %v2053 = vpop.permute.xlu0 %2052
        %2054 = vrot.lane.b32.xlu0 %v2031, 127
        %v2055 = vpop.permute.xlu0 %2054
        %2056 = vrot.lane.b32.xlu0 %v2032, 127
        %v2057 = vpop.permute.xlu0 %2056
        %2058 = vrot.lane.b32.xlu0 %v2033, 127
        %v2059 = vpop.permute.xlu0 %2058
        %2060 = vrot.lane.b32.xlu0 %v2034, 127
        %v2061 = vpop.permute.xlu0 %2060
        %v2062 = vsel %vm799, %v2045, %v2047
        %v2063 = vsel %vm799, %v2047, %v2049
        %v2064 = vsel %vm799, %v2051, %v2053
        %v2065 = vsel %vm799, %v2053, %v2055
        %v2066 = vsel %vm799, %v2057, %v2059
        %v2067 = vsel %vm799, %v2059, %v2061
        %v2074 = vmax.f32 %v2026, %v2062
        %v2075 = vmax.f32 %v2027, %v2063
        %v2076 = vmax.f32 %v2029, %v2064
        %v2077 = vmax.f32 %v2030, %v2065
        %v2078 = vmax.f32 %v2032, %v2066
        %v2079 = vmax.f32 %v2033, %v2067
        %2080 = vrot.lane.b32.xlu0 %v2026, 126
        %v2081 = vpop.permute.xlu0 %2080
        %2082 = vrot.lane.b32.xlu0 %v2027, 126
        %v2083 = vpop.permute.xlu0 %2082
        %2084 = vrot.lane.b32.xlu0 %v2028, 126
        %v2085 = vpop.permute.xlu0 %2084
        %2086 = vrot.lane.b32.xlu0 %v2029, 126
        %v2087 = vpop.permute.xlu0 %2086
        %2088 = vrot.lane.b32.xlu0 %v2030, 126
        %v2089 = vpop.permute.xlu0 %2088
        %2090 = vrot.lane.b32.xlu0 %v2031, 126
        %v2091 = vpop.permute.xlu0 %2090
        %2092 = vrot.lane.b32.xlu0 %v2032, 126
        %v2093 = vpop.permute.xlu0 %2092
        %2094 = vrot.lane.b32.xlu0 %v2033, 126
        %v2095 = vpop.permute.xlu0 %2094
        %2096 = vrot.lane.b32.xlu0 %v2034, 126
        %v2097 = vpop.permute.xlu0 %2096
        %v2098 = vsel %vm838, %v2081, %v2083
        %v2099 = vsel %vm838, %v2083, %v2085
        %v2100 = vsel %vm838, %v2087, %v2089
        %v2101 = vsel %vm838, %v2089, %v2091
        %v2102 = vsel %vm838, %v2093, %v2095
        %v2103 = vsel %vm838, %v2095, %v2097
        %v2110 = vmax.f32 %v2074, %v2098
        %v2111 = vmax.f32 %v2075, %v2099
        %v2112 = vmax.f32 %v2076, %v2100
        %v2113 = vmax.f32 %v2077, %v2101
        %v2114 = vmax.f32 %v2078, %v2102
        %v2115 = vmax.f32 %v2079, %v2103
        %2116 = vrot.lane.b32.xlu0 %v2026, 108
        %v2117 = vpop.permute.xlu0 %2116
        %2118 = vrot.lane.b32.xlu0 %v2027, 108
        %v2119 = vpop.permute.xlu0 %2118
        %2120 = vrot.lane.b32.xlu0 %v2028, 108
        %v2121 = vpop.permute.xlu0 %2120
        %2122 = vrot.lane.b32.xlu0 %v2029, 108
        %v2123 = vpop.permute.xlu0 %2122
        %2124 = vrot.lane.b32.xlu0 %v2030, 108
        %v2125 = vpop.permute.xlu0 %2124
        %2126 = vrot.lane.b32.xlu0 %v2031, 108
        %v2127 = vpop.permute.xlu0 %2126
        %2128 = vrot.lane.b32.xlu0 %v2032, 108
        %v2129 = vpop.permute.xlu0 %2128
        %2130 = vrot.lane.b32.xlu0 %v2033, 108
        %v2131 = vpop.permute.xlu0 %2130
        %2132 = vrot.lane.b32.xlu0 %v2034, 108
        %v2133 = vpop.permute.xlu0 %2132
        %v2134 = vsel %vm1066, %v2117, %v2119
        %v2135 = vsel %vm1066, %v2119, %v2121
        %v2136 = vsel %vm1066, %v2123, %v2125
        %v2137 = vsel %vm1066, %v2125, %v2127
        %v2138 = vsel %vm1066, %v2129, %v2131
        %v2139 = vsel %vm1066, %v2131, %v2133
        %v2146 = vmax.f32 %v2110, %v2134
        %v2147 = vmax.f32 %v2111, %v2135
        %v2148 = vmax.f32 %v2112, %v2136
        %v2149 = vmax.f32 %v2113, %v2137
        %v2150 = vmax.f32 %v2114, %v2138
        %v2151 = vmax.f32 %v2115, %v2139
        %2152 = vrot.lane.b32.xlu0 %v2026, 107
        %v2153 = vpop.permute.xlu0 %2152
        %2154 = vrot.lane.b32.xlu0 %v2027, 107
        %v2155 = vpop.permute.xlu0 %2154
        %2156 = vrot.lane.b32.xlu0 %v2028, 107
        %v2157 = vpop.permute.xlu0 %2156
        %2158 = vrot.lane.b32.xlu0 %v2029, 107
        %v2159 = vpop.permute.xlu0 %2158
        %2160 = vrot.lane.b32.xlu0 %v2030, 107
        %v2161 = vpop.permute.xlu0 %2160
        %2162 = vrot.lane.b32.xlu0 %v2031, 107
        %v2163 = vpop.permute.xlu0 %2162
        %2164 = vrot.lane.b32.xlu0 %v2032, 107
        %v2165 = vpop.permute.xlu0 %2164
        %2166 = vrot.lane.b32.xlu0 %v2033, 107
        %v2167 = vpop.permute.xlu0 %2166
        %2168 = vrot.lane.b32.xlu0 %v2034, 107
        %v2169 = vpop.permute.xlu0 %2168
        %vm2170 = vcmask 875520
        %v2171 = vsel %vm2170, %v2153, %v2155
        %v2172 = vsel %vm2170, %v2155, %v2157
        %v2173 = vsel %vm2170, %v2159, %v2161
        %v2174 = vsel %vm2170, %v2161, %v2163
        %v2175 = vsel %vm2170, %v2165, %v2167
        %v2176 = vsel %vm2170, %v2167, %v2169
        %v2183 = vmax.f32 %v2146, %v2171
        %v2184 = vmax.f32 %v2147, %v2172
        %v2185 = vmax.f32 %v2148, %v2173
        %v2186 = vmax.f32 %v2149, %v2174
        %v2187 = vmax.f32 %v2150, %v2175
        %v2188 = vmax.f32 %v2151, %v2176
        %2189 = vrot.lane.b32.xlu0 %v2026, 106
        %v2190 = vpop.permute.xlu0 %2189
        %2191 = vrot.lane.b32.xlu0 %v2027, 106
        %v2192 = vpop.permute.xlu0 %2191
        %2193 = vrot.lane.b32.xlu0 %v2028, 106
        %v2194 = vpop.permute.xlu0 %2193
        %2195 = vrot.lane.b32.xlu0 %v2029, 106
        %v2196 = vpop.permute.xlu0 %2195
        %2197 = vrot.lane.b32.xlu0 %v2030, 106
        %v2198 = vpop.permute.xlu0 %2197
        %2199 = vrot.lane.b32.xlu0 %v2031, 106
        %v2200 = vpop.permute.xlu0 %2199
        %2201 = vrot.lane.b32.xlu0 %v2032, 106
        %v2202 = vpop.permute.xlu0 %2201
        %2203 = vrot.lane.b32.xlu0 %v2033, 106
        %v2204 = vpop.permute.xlu0 %2203
        %2205 = vrot.lane.b32.xlu0 %v2034, 106
        %v2206 = vpop.permute.xlu0 %2205
        %vm2207 = vcmask 867328
        %v2208 = vsel %vm2207, %v2190, %v2192
        %v2209 = vsel %vm2207, %v2192, %v2194
        %v2210 = vsel %vm2207, %v2196, %v2198
        %v2211 = vsel %vm2207, %v2198, %v2200
        %v2212 = vsel %vm2207, %v2202, %v2204
        %v2213 = vsel %vm2207, %v2204, %v2206
        %v2220 = vmax.f32 %v2183, %v2208
        %v2221 = vmax.f32 %v2184, %v2209
        %v2222 = vmax.f32 %v2185, %v2210
        %v2223 = vmax.f32 %v2186, %v2211
        %v2224 = vmax.f32 %v2187, %v2212
        %v2225 = vmax.f32 %v2188, %v2213
        %2226 = vrot.lane.b32.xlu0 %v2026, 88
        %v2227 = vpop.permute.xlu0 %2226
        %2228 = vrot.lane.b32.xlu0 %v2027, 88
        %v2229 = vpop.permute.xlu0 %2228
        %2230 = vrot.lane.b32.xlu0 %v2028, 88
        %v2231 = vpop.permute.xlu0 %2230
        %2232 = vrot.lane.b32.xlu0 %v2029, 88
        %v2233 = vpop.permute.xlu0 %2232
        %2234 = vrot.lane.b32.xlu0 %v2030, 88
        %v2235 = vpop.permute.xlu0 %2234
        %2236 = vrot.lane.b32.xlu0 %v2031, 88
        %v2237 = vpop.permute.xlu0 %2236
        %2238 = vrot.lane.b32.xlu0 %v2032, 88
        %v2239 = vpop.permute.xlu0 %2238
        %2240 = vrot.lane.b32.xlu0 %v2033, 88
        %v2241 = vpop.permute.xlu0 %2240
        %2242 = vrot.lane.b32.xlu0 %v2034, 88
        %v2243 = vpop.permute.xlu0 %2242
        %v2244 = vsel %vm1356, %v2227, %v2229
        %v2245 = vsel %vm1356, %v2229, %v2231
        %v2246 = vsel %vm1356, %v2233, %v2235
        %v2247 = vsel %vm1356, %v2235, %v2237
        %v2248 = vsel %vm1356, %v2239, %v2241
        %v2249 = vsel %vm1356, %v2241, %v2243
        %v2256 = vmax.f32 %v2220, %v2244
        %v2257 = vmax.f32 %v2221, %v2245
        %v2258 = vmax.f32 %v2222, %v2246
        %v2259 = vmax.f32 %v2223, %v2247
        %v2260 = vmax.f32 %v2224, %v2248
        %v2261 = vmax.f32 %v2225, %v2249
        %2262 = vrot.lane.b32.xlu0 %v2026, 87
        %v2263 = vpop.permute.xlu0 %2262
        %2264 = vrot.lane.b32.xlu0 %v2027, 87
        %v2265 = vpop.permute.xlu0 %2264
        %2266 = vrot.lane.b32.xlu0 %v2028, 87
        %v2267 = vpop.permute.xlu0 %2266
        %2268 = vrot.lane.b32.xlu0 %v2029, 87
        %v2269 = vpop.permute.xlu0 %2268
        %2270 = vrot.lane.b32.xlu0 %v2030, 87
        %v2271 = vpop.permute.xlu0 %2270
        %2272 = vrot.lane.b32.xlu0 %v2031, 87
        %v2273 = vpop.permute.xlu0 %2272
        %2274 = vrot.lane.b32.xlu0 %v2032, 87
        %v2275 = vpop.permute.xlu0 %2274
        %2276 = vrot.lane.b32.xlu0 %v2033, 87
        %v2277 = vpop.permute.xlu0 %2276
        %2278 = vrot.lane.b32.xlu0 %v2034, 87
        %v2279 = vpop.permute.xlu0 %2278
        %vm2280 = vcmask 711680
        %v2281 = vsel %vm2280, %v2263, %v2265
        %v2282 = vsel %vm2280, %v2265, %v2267
        %v2283 = vsel %vm2280, %v2269, %v2271
        %v2284 = vsel %vm2280, %v2271, %v2273
        %v2285 = vsel %vm2280, %v2275, %v2277
        %v2286 = vsel %vm2280, %v2277, %v2279
        %v2293 = vmax.f32 %v2256, %v2281
        %v2294 = vmax.f32 %v2257, %v2282
        %v2295 = vmax.f32 %v2258, %v2283
        %v2296 = vmax.f32 %v2259, %v2284
        %v2297 = vmax.f32 %v2260, %v2285
        %v2298 = vmax.f32 %v2261, %v2286
        %2299 = vrot.lane.b32.xlu0 %v2026, 86
        %v2300 = vpop.permute.xlu0 %2299
        %2301 = vrot.lane.b32.xlu0 %v2027, 86
        %v2302 = vpop.permute.xlu0 %2301
        %2303 = vrot.lane.b32.xlu0 %v2028, 86
        %v2304 = vpop.permute.xlu0 %2303
        %2305 = vrot.lane.b32.xlu0 %v2029, 86
        %v2306 = vpop.permute.xlu0 %2305
        %2307 = vrot.lane.b32.xlu0 %v2030, 86
        %v2308 = vpop.permute.xlu0 %2307
        %2309 = vrot.lane.b32.xlu0 %v2031, 86
        %v2310 = vpop.permute.xlu0 %2309
        %2311 = vrot.lane.b32.xlu0 %v2032, 86
        %v2312 = vpop.permute.xlu0 %2311
        %2313 = vrot.lane.b32.xlu0 %v2033, 86
        %v2314 = vpop.permute.xlu0 %2313
        %2315 = vrot.lane.b32.xlu0 %v2034, 86
        %v2316 = vpop.permute.xlu0 %2315
        %vm2317 = vcmask 703488
        %v2318 = vsel %vm2317, %v2300, %v2302
        %v2319 = vsel %vm2317, %v2302, %v2304
        %v2320 = vsel %vm2317, %v2306, %v2308
        %v2321 = vsel %vm2317, %v2308, %v2310
        %v2322 = vsel %vm2317, %v2312, %v2314
        %v2323 = vsel %vm2317, %v2314, %v2316
        %v2330 = vmax.f32 %v2293, %v2318
        %v2331 = vmax.f32 %v2294, %v2319
        %v2332 = vmax.f32 %v2295, %v2320
        %v2333 = vmax.f32 %v2296, %v2321
        %v2334 = vmax.f32 %v2297, %v2322
        %v2335 = vmax.f32 %v2298, %v2323
        %v2336 = vld [vmem:[%s4] sm:$0xff]
        %v2337 = vld [vmem:[%s4 + $0x8] sm:$0xff]
        %v2338 = vld [vmem:[%s4 + $0x10] sm:$0xf]
        %2340 = vset.pattern.permute.xlu0 0
        %2341 = vperm.xlu0 %2340, %v2336
        %v2342 = vpop.permute.xlu0 %2341
        %2345 = vset.pattern.permute.xlu0 0
        %2346 = vperm.xlu0 %2345, %v2337
        %v2347 = vpop.permute.xlu0 %2346
        %2350 = vset.pattern.permute.xlu0 0
        %2351 = vperm.xlu0 %2350, %v2338
        %v2352 = vpop.permute.xlu0 %2351
        %v2354 = vadd.f32 %v2330, %v2342
        %v2355 = vadd.f32 %v2331, %v2342
        %v2356 = vadd.f32 %v2332, %v2347
        %v2357 = vadd.f32 %v2333, %v2347
        %v2358 = vadd.f32 %v2334, %v2352
        %v2359 = vadd.f32 %v2335, %v2352
        %v2360 = vmax.f32 %v2354, 0.0
        %v2361 = vmax.f32 %v2355, 0.0
        %v2362 = vmax.f32 %v2356, 0.0
        %v2363 = vmax.f32 %v2357, 0.0
        %v2364 = vmax.f32 %v2358, 0.0
        %v2365 = vmax.f32 %v2359, 0.0
        %v2366 = vld [vmem:[%s6] sm:$0x1]
        %v2367 = vld [vmem:[%s5] sm:$0xff]
        %v2368 = vld [vmem:[%s5 + $0x8] sm:$0xff]
        %v2369 = vld [vmem:[%s5 + $0x10] sm:$0xff]
        %v2370 = vld [vmem:[%s5 + $0x18] sm:$0xff]
        %v2371 = vld [vmem:[%s5 + $0x20] sm:$0xff]
        %v2372 = vld [vmem:[%s5 + $0x28] sm:$0xff]
        %v2373 = vld [vmem:[%s5 + $0x30] sm:$0xff]
        %v2374 = vld [vmem:[%s5 + $0x38] sm:$0xff]
        %v2375 = vld [vmem:[%s5 + $0x40] sm:$0xff]
        %v2376 = vld [vmem:[%s5 + $0x48] sm:$0xff]
        %v2377 = vld [vmem:[%s5 + $0x50] sm:$0xff]
        %v2378 = vld [vmem:[%s5 + $0x58] sm:$0xff]
        %v2379 = vld [vmem:[%s5 + $0x60] sm:$0xff]
        %v2380 = vld [vmem:[%s5 + $0x68] sm:$0xff]
        %v2381 = vld [vmem:[%s5 + $0x70] sm:$0xff]
        %v2382 = vld [vmem:[%s5 + $0x78] sm:$0xff]
        %v2383 = vld [vmem:[%s5 + $0x80] sm:$0xff]
        %v2384 = vld [vmem:[%s5 + $0x88] sm:$0xff]
        %v2385 = vld [vmem:[%s5 + $0x90] sm:$0xff]
        %v2386 = vld [vmem:[%s5 + $0x98] sm:$0xff]
        %v2387 = vld [vmem:[%s5 + $0xa0] sm:$0xff]
        %v2388 = vld [vmem:[%s5 + $0xa8] sm:$0xff]
        %v2389 = vld [vmem:[%s5 + $0xb0] sm:$0xff]
        %v2390 = vld [vmem:[%s5 + $0xb8] sm:$0xff]
        %v2391 = vld [vmem:[%s5 + $0xc0] sm:$0xff]
        %v2392 = vld [vmem:[%s5 + $0xc8] sm:$0xff]
        %v2393 = vld [vmem:[%s5 + $0xd0] sm:$0xff]
        %v2394 = vld [vmem:[%s5 + $0xd8] sm:$0xff]
        %v2395 = vld [vmem:[%s5 + $0xe0] sm:$0xff]
        %v2396 = vld [vmem:[%s5 + $0xe8] sm:$0xff]
        %v2397 = vld [vmem:[%s5 + $0xf0] sm:$0xff]
        %v2398 = vld [vmem:[%s5 + $0xf8] sm:$0xff]
        %2399 = vmatpush.msra.mxu0 %v2382
        %2400 = vmatpush.msra.mxu0 %v2381
        %2401 = vmatpush.msra.mxu0 %v2380
        %2402 = vmatpush.msra.mxu0 %v2379
        %2403 = vmatpush.msra.mxu0 %v2378
        %2404 = vmatpush.msra.mxu0 %v2377
        %2405 = vmatpush.msra.mxu0 %v2376
        %2406 = vmatpush.msra.mxu0 %v2375
        %2407 = vmatpush.msra.mxu0 %v2374
        %2408 = vmatpush.msra.mxu0 %v2373
        %2409 = vmatpush.msra.mxu0 %v2372
        %2410 = vmatpush.msra.mxu0 %v2371
        %2411 = vmatpush.msra.mxu0 %v2370
        %2412 = vmatpush.msra.mxu0 %v2369
        %2413 = vmatpush.msra.mxu0 %v2368
        %2414 = vmatpush.msra.mxu0 %v2367
        %2415 = vmatmul.f32.gmra.mxu0 %v2360
        %v2416 = vpop.f32.mrf.mxu0
        %v2417 = vadd.f32 0.0, %v2416
        %2418 = vdwg.mxu0
        %2419 = vmatpush.msra.mxu0 %v2398
        %2420 = vmatpush.msra.mxu0 %v2397
        %2421 = vmatpush.msra.mxu0 %v2396
        %2422 = vmatpush.msra.mxu0 %v2395
        %2423 = vmatpush.msra.mxu0 %v2394
        %2424 = vmatpush.msra.mxu0 %v2393
        %2425 = vmatpush.msra.mxu0 %v2392
        %2426 = vmatpush.msra.mxu0 %v2391
        %2427 = vmatpush.msra.mxu0 %v2390
        %2428 = vmatpush.msra.mxu0 %v2389
        %2429 = vmatpush.msra.mxu0 %v2388
        %2430 = vmatpush.msra.mxu0 %v2387
        %2431 = vmatpush.msra.mxu0 %v2386
        %2432 = vmatpush.msra.mxu0 %v2385
        %2433 = vmatpush.msra.mxu0 %v2384
        %2434 = vmatpush.msra.mxu0 %v2383
        %2435 = vmatmul.f32.gmra.mxu0 %v2361
        %v2436 = vpop.f32.mrf.mxu0
        %v2437 = vadd.f32 %v2417, %v2436
        %2438 = vdwg.mxu0
        %v2439 = vadd.f32 %v2366, %v2437
        %s2440 = scalar_lea.vmem %s5, 256
        %v2441 = vld [vmem:[%s2440] sm:$0xff]
        %v2442 = vld [vmem:[%s2440 + $0x8] sm:$0xff]
        %v2443 = vld [vmem:[%s2440 + $0x10] sm:$0xff]
        %v2444 = vld [vmem:[%s2440 + $0x18] sm:$0xff]
        %v2445 = vld [vmem:[%s2440 + $0x20] sm:$0xff]
        %v2446 = vld [vmem:[%s2440 + $0x28] sm:$0xff]
        %v2447 = vld [vmem:[%s2440 + $0x30] sm:$0xff]
        %v2448 = vld [vmem:[%s2440 + $0x38] sm:$0xff]
        %v2449 = vld [vmem:[%s2440 + $0x40] sm:$0xff]
        %v2450 = vld [vmem:[%s2440 + $0x48] sm:$0xff]
        %v2451 = vld [vmem:[%s2440 + $0x50] sm:$0xff]
        %v2452 = vld [vmem:[%s2440 + $0x58] sm:$0xff]
        %v2453 = vld [vmem:[%s2440 + $0x60] sm:$0xff]
        %v2454 = vld [vmem:[%s2440 + $0x68] sm:$0xff]
        %v2455 = vld [vmem:[%s2440 + $0x70] sm:$0xff]
        %v2456 = vld [vmem:[%s2440 + $0x78] sm:$0xff]
        %v2457 = vld [vmem:[%s2440 + $0x80] sm:$0xff]
        %v2458 = vld [vmem:[%s2440 + $0x88] sm:$0xff]
        %v2459 = vld [vmem:[%s2440 + $0x90] sm:$0xff]
        %v2460 = vld [vmem:[%s2440 + $0x98] sm:$0xff]
        %v2461 = vld [vmem:[%s2440 + $0xa0] sm:$0xff]
        %v2462 = vld [vmem:[%s2440 + $0xa8] sm:$0xff]
        %v2463 = vld [vmem:[%s2440 + $0xb0] sm:$0xff]
        %v2464 = vld [vmem:[%s2440 + $0xb8] sm:$0xff]
        %v2465 = vld [vmem:[%s2440 + $0xc0] sm:$0xff]
        %v2466 = vld [vmem:[%s2440 + $0xc8] sm:$0xff]
        %v2467 = vld [vmem:[%s2440 + $0xd0] sm:$0xff]
        %v2468 = vld [vmem:[%s2440 + $0xd8] sm:$0xff]
        %v2469 = vld [vmem:[%s2440 + $0xe0] sm:$0xff]
        %v2470 = vld [vmem:[%s2440 + $0xe8] sm:$0xff]
        %v2471 = vld [vmem:[%s2440 + $0xf0] sm:$0xff]
        %v2472 = vld [vmem:[%s2440 + $0xf8] sm:$0xff]
        %v2475 = vrot.slane %v2360, 1
        %v2476 = vrot.slane %v2361, 1
        %2479 = vmatpush.msra.mxu0 %v2456
        %2480 = vmatpush.msra.mxu0 %v2455
        %2481 = vmatpush.msra.mxu0 %v2454
        %2482 = vmatpush.msra.mxu0 %v2453
        %2483 = vmatpush.msra.mxu0 %v2452
        %2484 = vmatpush.msra.mxu0 %v2451
        %2485 = vmatpush.msra.mxu0 %v2450
        %2486 = vmatpush.msra.mxu0 %v2449
        %2487 = vmatpush.msra.mxu0 %v2448
        %2488 = vmatpush.msra.mxu0 %v2447
        %2489 = vmatpush.msra.mxu0 %v2446
        %2490 = vmatpush.msra.mxu0 %v2445
        %2491 = vmatpush.msra.mxu0 %v2444
        %2492 = vmatpush.msra.mxu0 %v2443
        %2493 = vmatpush.msra.mxu0 %v2442
        %2494 = vmatpush.msra.mxu0 %v2441
        %2495 = vmatmul.f32.gmra.mxu0 %v2475
        %v2496 = vpop.f32.mrf.mxu0
        %v2497 = vadd.f32 0.0, %v2496
        %2498 = vdwg.mxu0
        %2499 = vmatpush.msra.mxu0 %v2472
        %2500 = vmatpush.msra.mxu0 %v2471
        %2501 = vmatpush.msra.mxu0 %v2470
        %2502 = vmatpush.msra.mxu0 %v2469
        %2503 = vmatpush.msra.mxu0 %v2468
        %2504 = vmatpush.msra.mxu0 %v2467
        %2505 = vmatpush.msra.mxu0 %v2466
        %2506 = vmatpush.msra.mxu0 %v2465
        %2507 = vmatpush.msra.mxu0 %v2464
        %2508 = vmatpush.msra.mxu0 %v2463
        %2509 = vmatpush.msra.mxu0 %v2462
        %2510 = vmatpush.msra.mxu0 %v2461
        %2511 = vmatpush.msra.mxu0 %v2460
        %2512 = vmatpush.msra.mxu0 %v2459
        %2513 = vmatpush.msra.mxu0 %v2458
        %2514 = vmatpush.msra.mxu0 %v2457
        %2515 = vmatmul.f32.gmra.mxu0 %v2476
        %v2516 = vpop.f32.mrf.mxu0
        %v2517 = vadd.f32 %v2497, %v2516
        %2518 = vdwg.mxu0
        %v2519 = vadd.f32 %v2439, %v2517
        %s2520 = scalar_lea.vmem %s5, 512
        %v2521 = vld [vmem:[%s2520] sm:$0xff]
        %v2522 = vld [vmem:[%s2520 + $0x8] sm:$0xff]
        %v2523 = vld [vmem:[%s2520 + $0x10] sm:$0xff]
        %v2524 = vld [vmem:[%s2520 + $0x18] sm:$0xff]
        %v2525 = vld [vmem:[%s2520 + $0x20] sm:$0xff]
        %v2526 = vld [vmem:[%s2520 + $0x28] sm:$0xff]
        %v2527 = vld [vmem:[%s2520 + $0x30] sm:$0xff]
        %v2528 = vld [vmem:[%s2520 + $0x38] sm:$0xff]
        %v2529 = vld [vmem:[%s2520 + $0x40] sm:$0xff]
        %v2530 = vld [vmem:[%s2520 + $0x48] sm:$0xff]
        %v2531 = vld [vmem:[%s2520 + $0x50] sm:$0xff]
        %v2532 = vld [vmem:[%s2520 + $0x58] sm:$0xff]
        %v2533 = vld [vmem:[%s2520 + $0x60] sm:$0xff]
        %v2534 = vld [vmem:[%s2520 + $0x68] sm:$0xff]
        %v2535 = vld [vmem:[%s2520 + $0x70] sm:$0xff]
        %v2536 = vld [vmem:[%s2520 + $0x78] sm:$0xff]
        %v2537 = vld [vmem:[%s2520 + $0x80] sm:$0xff]
        %v2538 = vld [vmem:[%s2520 + $0x88] sm:$0xff]
        %v2539 = vld [vmem:[%s2520 + $0x90] sm:$0xff]
        %v2540 = vld [vmem:[%s2520 + $0x98] sm:$0xff]
        %v2541 = vld [vmem:[%s2520 + $0xa0] sm:$0xff]
        %v2542 = vld [vmem:[%s2520 + $0xa8] sm:$0xff]
        %v2543 = vld [vmem:[%s2520 + $0xb0] sm:$0xff]
        %v2544 = vld [vmem:[%s2520 + $0xb8] sm:$0xff]
        %v2545 = vld [vmem:[%s2520 + $0xc0] sm:$0xff]
        %v2546 = vld [vmem:[%s2520 + $0xc8] sm:$0xff]
        %v2547 = vld [vmem:[%s2520 + $0xd0] sm:$0xff]
        %v2548 = vld [vmem:[%s2520 + $0xd8] sm:$0xff]
        %v2549 = vld [vmem:[%s2520 + $0xe0] sm:$0xff]
        %v2550 = vld [vmem:[%s2520 + $0xe8] sm:$0xff]
        %v2551 = vld [vmem:[%s2520 + $0xf0] sm:$0xff]
        %v2552 = vld [vmem:[%s2520 + $0xf8] sm:$0xff]
        %v2553 = vrot.slane %v2360, 2
        %v2554 = vrot.slane %v2361, 2
        %2557 = vmatpush.msra.mxu0 %v2536
        %2558 = vmatpush.msra.mxu0 %v2535
        %2559 = vmatpush.msra.mxu0 %v2534
        %2560 = vmatpush.msra.mxu0 %v2533
        %2561 = vmatpush.msra.mxu0 %v2532
        %2562 = vmatpush.msra.mxu0 %v2531
        %2563 = vmatpush.msra.mxu0 %v2530
        %2564 = vmatpush.msra.mxu0 %v2529
        %2565 = vmatpush.msra.mxu0 %v2528
        %2566 = vmatpush.msra.mxu0 %v2527
        %2567 = vmatpush.msra.mxu0 %v2526
        %2568 = vmatpush.msra.mxu0 %v2525
        %2569 = vmatpush.msra.mxu0 %v2524
        %2570 = vmatpush.msra.mxu0 %v2523
        %2571 = vmatpush.msra.mxu0 %v2522
        %2572 = vmatpush.msra.mxu0 %v2521
        %2573 = vmatmul.f32.gmra.mxu0 %v2553
        %v2574 = vpop.f32.mrf.mxu0
        %v2575 = vadd.f32 0.0, %v2574
        %2576 = vdwg.mxu0
        %2577 = vmatpush.msra.mxu0 %v2552
        %2578 = vmatpush.msra.mxu0 %v2551
        %2579 = vmatpush.msra.mxu0 %v2550
        %2580 = vmatpush.msra.mxu0 %v2549
        %2581 = vmatpush.msra.mxu0 %v2548
        %2582 = vmatpush.msra.mxu0 %v2547
        %2583 = vmatpush.msra.mxu0 %v2546
        %2584 = vmatpush.msra.mxu0 %v2545
        %2585 = vmatpush.msra.mxu0 %v2544
        %2586 = vmatpush.msra.mxu0 %v2543
        %2587 = vmatpush.msra.mxu0 %v2542
        %2588 = vmatpush.msra.mxu0 %v2541
        %2589 = vmatpush.msra.mxu0 %v2540
        %2590 = vmatpush.msra.mxu0 %v2539
        %2591 = vmatpush.msra.mxu0 %v2538
        %2592 = vmatpush.msra.mxu0 %v2537
        %2593 = vmatmul.f32.gmra.mxu0 %v2554
        %v2594 = vpop.f32.mrf.mxu0
        %v2595 = vadd.f32 %v2575, %v2594
        %2596 = vdwg.mxu0
        %v2597 = vadd.f32 %v2519, %v2595
        %s2598 = scalar_lea.vmem %s5, 768
        %v2599 = vld [vmem:[%s2598] sm:$0xff]
        %v2600 = vld [vmem:[%s2598 + $0x8] sm:$0xff]
        %v2601 = vld [vmem:[%s2598 + $0x10] sm:$0xff]
        %v2602 = vld [vmem:[%s2598 + $0x18] sm:$0xff]
        %v2603 = vld [vmem:[%s2598 + $0x20] sm:$0xff]
        %v2604 = vld [vmem:[%s2598 + $0x28] sm:$0xff]
        %v2605 = vld [vmem:[%s2598 + $0x30] sm:$0xff]
        %v2606 = vld [vmem:[%s2598 + $0x38] sm:$0xff]
        %v2607 = vld [vmem:[%s2598 + $0x40] sm:$0xff]
        %v2608 = vld [vmem:[%s2598 + $0x48] sm:$0xff]
        %v2609 = vld [vmem:[%s2598 + $0x50] sm:$0xff]
        %v2610 = vld [vmem:[%s2598 + $0x58] sm:$0xff]
        %v2611 = vld [vmem:[%s2598 + $0x60] sm:$0xff]
        %v2612 = vld [vmem:[%s2598 + $0x68] sm:$0xff]
        %v2613 = vld [vmem:[%s2598 + $0x70] sm:$0xff]
        %v2614 = vld [vmem:[%s2598 + $0x78] sm:$0xff]
        %v2615 = vld [vmem:[%s2598 + $0x80] sm:$0xff]
        %v2616 = vld [vmem:[%s2598 + $0x88] sm:$0xff]
        %v2617 = vld [vmem:[%s2598 + $0x90] sm:$0xff]
        %v2618 = vld [vmem:[%s2598 + $0x98] sm:$0xff]
        %v2619 = vld [vmem:[%s2598 + $0xa0] sm:$0xff]
        %v2620 = vld [vmem:[%s2598 + $0xa8] sm:$0xff]
        %v2621 = vld [vmem:[%s2598 + $0xb0] sm:$0xff]
        %v2622 = vld [vmem:[%s2598 + $0xb8] sm:$0xff]
        %v2623 = vld [vmem:[%s2598 + $0xc0] sm:$0xff]
        %v2624 = vld [vmem:[%s2598 + $0xc8] sm:$0xff]
        %v2625 = vld [vmem:[%s2598 + $0xd0] sm:$0xff]
        %v2626 = vld [vmem:[%s2598 + $0xd8] sm:$0xff]
        %v2627 = vld [vmem:[%s2598 + $0xe0] sm:$0xff]
        %v2628 = vld [vmem:[%s2598 + $0xe8] sm:$0xff]
        %v2629 = vld [vmem:[%s2598 + $0xf0] sm:$0xff]
        %v2630 = vld [vmem:[%s2598 + $0xf8] sm:$0xff]
        %v2631 = vrot.slane %v2360, 3
        %v2632 = vrot.slane %v2361, 3
        %2635 = vmatpush.msra.mxu0 %v2614
        %2636 = vmatpush.msra.mxu0 %v2613
        %2637 = vmatpush.msra.mxu0 %v2612
        %2638 = vmatpush.msra.mxu0 %v2611
        %2639 = vmatpush.msra.mxu0 %v2610
        %2640 = vmatpush.msra.mxu0 %v2609
        %2641 = vmatpush.msra.mxu0 %v2608
        %2642 = vmatpush.msra.mxu0 %v2607
        %2643 = vmatpush.msra.mxu0 %v2606
        %2644 = vmatpush.msra.mxu0 %v2605
        %2645 = vmatpush.msra.mxu0 %v2604
        %2646 = vmatpush.msra.mxu0 %v2603
        %2647 = vmatpush.msra.mxu0 %v2602
        %2648 = vmatpush.msra.mxu0 %v2601
        %2649 = vmatpush.msra.mxu0 %v2600
        %2650 = vmatpush.msra.mxu0 %v2599
        %2651 = vmatmul.f32.gmra.mxu0 %v2631
        %v2652 = vpop.f32.mrf.mxu0
        %v2653 = vadd.f32 0.0, %v2652
        %2654 = vdwg.mxu0
        %2655 = vmatpush.msra.mxu0 %v2630
        %2656 = vmatpush.msra.mxu0 %v2629
        %2657 = vmatpush.msra.mxu0 %v2628
        %2658 = vmatpush.msra.mxu0 %v2627
        %2659 = vmatpush.msra.mxu0 %v2626
        %2660 = vmatpush.msra.mxu0 %v2625
        %2661 = vmatpush.msra.mxu0 %v2624
        %2662 = vmatpush.msra.mxu0 %v2623
        %2663 = vmatpush.msra.mxu0 %v2622
        %2664 = vmatpush.msra.mxu0 %v2621
        %2665 = vmatpush.msra.mxu0 %v2620
        %2666 = vmatpush.msra.mxu0 %v2619
        %2667 = vmatpush.msra.mxu0 %v2618
        %2668 = vmatpush.msra.mxu0 %v2617
        %2669 = vmatpush.msra.mxu0 %v2616
        %2670 = vmatpush.msra.mxu0 %v2615
        %2671 = vmatmul.f32.gmra.mxu0 %v2632
        %v2672 = vpop.f32.mrf.mxu0
        %v2673 = vadd.f32 %v2653, %v2672
        %2674 = vdwg.mxu0
        %v2675 = vadd.f32 %v2597, %v2673
        %s2676 = scalar_lea.vmem %s5, 1024
        %v2677 = vld [vmem:[%s2676] sm:$0xff]
        %v2678 = vld [vmem:[%s2676 + $0x8] sm:$0xff]
        %v2679 = vld [vmem:[%s2676 + $0x10] sm:$0xff]
        %v2680 = vld [vmem:[%s2676 + $0x18] sm:$0xff]
        %v2681 = vld [vmem:[%s2676 + $0x20] sm:$0xff]
        %v2682 = vld [vmem:[%s2676 + $0x28] sm:$0xff]
        %v2683 = vld [vmem:[%s2676 + $0x30] sm:$0xff]
        %v2684 = vld [vmem:[%s2676 + $0x38] sm:$0xff]
        %v2685 = vld [vmem:[%s2676 + $0x40] sm:$0xff]
        %v2686 = vld [vmem:[%s2676 + $0x48] sm:$0xff]
        %v2687 = vld [vmem:[%s2676 + $0x50] sm:$0xff]
        %v2688 = vld [vmem:[%s2676 + $0x58] sm:$0xff]
        %v2689 = vld [vmem:[%s2676 + $0x60] sm:$0xff]
        %v2690 = vld [vmem:[%s2676 + $0x68] sm:$0xff]
        %v2691 = vld [vmem:[%s2676 + $0x70] sm:$0xff]
        %v2692 = vld [vmem:[%s2676 + $0x78] sm:$0xff]
        %v2693 = vld [vmem:[%s2676 + $0x80] sm:$0xff]
        %v2694 = vld [vmem:[%s2676 + $0x88] sm:$0xff]
        %v2695 = vld [vmem:[%s2676 + $0x90] sm:$0xff]
        %v2696 = vld [vmem:[%s2676 + $0x98] sm:$0xff]
        %v2697 = vld [vmem:[%s2676 + $0xa0] sm:$0xff]
        %v2698 = vld [vmem:[%s2676 + $0xa8] sm:$0xff]
        %v2699 = vld [vmem:[%s2676 + $0xb0] sm:$0xff]
        %v2700 = vld [vmem:[%s2676 + $0xb8] sm:$0xff]
        %v2701 = vld [vmem:[%s2676 + $0xc0] sm:$0xff]
        %v2702 = vld [vmem:[%s2676 + $0xc8] sm:$0xff]
        %v2703 = vld [vmem:[%s2676 + $0xd0] sm:$0xff]
        %v2704 = vld [vmem:[%s2676 + $0xd8] sm:$0xff]
        %v2705 = vld [vmem:[%s2676 + $0xe0] sm:$0xff]
        %v2706 = vld [vmem:[%s2676 + $0xe8] sm:$0xff]
        %v2707 = vld [vmem:[%s2676 + $0xf0] sm:$0xff]
        %v2708 = vld [vmem:[%s2676 + $0xf8] sm:$0xff]
        %v2709 = vrot.slane %v2360, 4
        %v2710 = vrot.slane %v2361, 4
        %2713 = vmatpush.msra.mxu0 %v2692
        %2714 = vmatpush.msra.mxu0 %v2691
        %2715 = vmatpush.msra.mxu0 %v2690
        %2716 = vmatpush.msra.mxu0 %v2689
        %2717 = vmatpush.msra.mxu0 %v2688
        %2718 = vmatpush.msra.mxu0 %v2687
        %2719 = vmatpush.msra.mxu0 %v2686
        %2720 = vmatpush.msra.mxu0 %v2685
        %2721 = vmatpush.msra.mxu0 %v2684
        %2722 = vmatpush.msra.mxu0 %v2683
        %2723 = vmatpush.msra.mxu0 %v2682
        %2724 = vmatpush.msra.mxu0 %v2681
        %2725 = vmatpush.msra.mxu0 %v2680
        %2726 = vmatpush.msra.mxu0 %v2679
        %2727 = vmatpush.msra.mxu0 %v2678
        %2728 = vmatpush.msra.mxu0 %v2677
        %2729 = vmatmul.f32.gmra.mxu0 %v2709
        %v2730 = vpop.f32.mrf.mxu0
        %v2731 = vadd.f32 0.0, %v2730
        %2732 = vdwg.mxu0
        %2733 = vmatpush.msra.mxu0 %v2708
        %2734 = vmatpush.msra.mxu0 %v2707
        %2735 = vmatpush.msra.mxu0 %v2706
        %2736 = vmatpush.msra.mxu0 %v2705
        %2737 = vmatpush.msra.mxu0 %v2704
        %2738 = vmatpush.msra.mxu0 %v2703
        %2739 = vmatpush.msra.mxu0 %v2702
        %2740 = vmatpush.msra.mxu0 %v2701
        %2741 = vmatpush.msra.mxu0 %v2700
        %2742 = vmatpush.msra.mxu0 %v2699
        %2743 = vmatpush.msra.mxu0 %v2698
        %2744 = vmatpush.msra.mxu0 %v2697
        %2745 = vmatpush.msra.mxu0 %v2696
        %2746 = vmatpush.msra.mxu0 %v2695
        %2747 = vmatpush.msra.mxu0 %v2694
        %2748 = vmatpush.msra.mxu0 %v2693
        %2749 = vmatmul.f32.gmra.mxu0 %v2710
        %v2750 = vpop.f32.mrf.mxu0
        %v2751 = vadd.f32 %v2731, %v2750
        %2752 = vdwg.mxu0
        %v2753 = vadd.f32 %v2675, %v2751
        %s2754 = scalar_lea.vmem %s5, 1280
        %v2755 = vld [vmem:[%s2754] sm:$0xff]
        %v2756 = vld [vmem:[%s2754 + $0x8] sm:$0xff]
        %v2757 = vld [vmem:[%s2754 + $0x10] sm:$0xff]
        %v2758 = vld [vmem:[%s2754 + $0x18] sm:$0xff]
        %v2759 = vld [vmem:[%s2754 + $0x20] sm:$0xff]
        %v2760 = vld [vmem:[%s2754 + $0x28] sm:$0xff]
        %v2761 = vld [vmem:[%s2754 + $0x30] sm:$0xff]
        %v2762 = vld [vmem:[%s2754 + $0x38] sm:$0xff]
        %v2763 = vld [vmem:[%s2754 + $0x40] sm:$0xff]
        %v2764 = vld [vmem:[%s2754 + $0x48] sm:$0xff]
        %v2765 = vld [vmem:[%s2754 + $0x50] sm:$0xff]
        %v2766 = vld [vmem:[%s2754 + $0x58] sm:$0xff]
        %v2767 = vld [vmem:[%s2754 + $0x60] sm:$0xff]
        %v2768 = vld [vmem:[%s2754 + $0x68] sm:$0xff]
        %v2769 = vld [vmem:[%s2754 + $0x70] sm:$0xff]
        %v2770 = vld [vmem:[%s2754 + $0x78] sm:$0xff]
        %v2771 = vld [vmem:[%s2754 + $0x80] sm:$0xff]
        %v2772 = vld [vmem:[%s2754 + $0x88] sm:$0xff]
        %v2773 = vld [vmem:[%s2754 + $0x90] sm:$0xff]
        %v2774 = vld [vmem:[%s2754 + $0x98] sm:$0xff]
        %v2775 = vld [vmem:[%s2754 + $0xa0] sm:$0xff]
        %v2776 = vld [vmem:[%s2754 + $0xa8] sm:$0xff]
        %v2777 = vld [vmem:[%s2754 + $0xb0] sm:$0xff]
        %v2778 = vld [vmem:[%s2754 + $0xb8] sm:$0xff]
        %v2779 = vld [vmem:[%s2754 + $0xc0] sm:$0xff]
        %v2780 = vld [vmem:[%s2754 + $0xc8] sm:$0xff]
        %v2781 = vld [vmem:[%s2754 + $0xd0] sm:$0xff]
        %v2782 = vld [vmem:[%s2754 + $0xd8] sm:$0xff]
        %v2783 = vld [vmem:[%s2754 + $0xe0] sm:$0xff]
        %v2784 = vld [vmem:[%s2754 + $0xe8] sm:$0xff]
        %v2785 = vld [vmem:[%s2754 + $0xf0] sm:$0xff]
        %v2786 = vld [vmem:[%s2754 + $0xf8] sm:$0xff]
        %v2787 = vrot.slane %v2360, 5
        %v2788 = vrot.slane %v2361, 5
        %2791 = vmatpush.msra.mxu0 %v2770
        %2792 = vmatpush.msra.mxu0 %v2769
        %2793 = vmatpush.msra.mxu0 %v2768
        %2794 = vmatpush.msra.mxu0 %v2767
        %2795 = vmatpush.msra.mxu0 %v2766
        %2796 = vmatpush.msra.mxu0 %v2765
        %2797 = vmatpush.msra.mxu0 %v2764
        %2798 = vmatpush.msra.mxu0 %v2763
        %2799 = vmatpush.msra.mxu0 %v2762
        %2800 = vmatpush.msra.mxu0 %v2761
        %2801 = vmatpush.msra.mxu0 %v2760
        %2802 = vmatpush.msra.mxu0 %v2759
        %2803 = vmatpush.msra.mxu0 %v2758
        %2804 = vmatpush.msra.mxu0 %v2757
        %2805 = vmatpush.msra.mxu0 %v2756
        %2806 = vmatpush.msra.mxu0 %v2755
        %2807 = vmatmul.f32.gmra.mxu0 %v2787
        %v2808 = vpop.f32.mrf.mxu0
        %v2809 = vadd.f32 0.0, %v2808
        %2810 = vdwg.mxu0
        %2811 = vmatpush.msra.mxu0 %v2786
        %2812 = vmatpush.msra.mxu0 %v2785
        %2813 = vmatpush.msra.mxu0 %v2784
        %2814 = vmatpush.msra.mxu0 %v2783
        %2815 = vmatpush.msra.mxu0 %v2782
        %2816 = vmatpush.msra.mxu0 %v2781
        %2817 = vmatpush.msra.mxu0 %v2780
        %2818 = vmatpush.msra.mxu0 %v2779
        %2819 = vmatpush.msra.mxu0 %v2778
        %2820 = vmatpush.msra.mxu0 %v2777
        %2821 = vmatpush.msra.mxu0 %v2776
        %2822 = vmatpush.msra.mxu0 %v2775
        %2823 = vmatpush.msra.mxu0 %v2774
        %2824 = vmatpush.msra.mxu0 %v2773
        %2825 = vmatpush.msra.mxu0 %v2772
        %2826 = vmatpush.msra.mxu0 %v2771
        %2827 = vmatmul.f32.gmra.mxu0 %v2788
        %v2828 = vpop.f32.mrf.mxu0
        %v2829 = vadd.f32 %v2809, %v2828
        %2830 = vdwg.mxu0
        %v2831 = vadd.f32 %v2753, %v2829
        %s2832 = scalar_lea.vmem %s5, 1536
        %v2833 = vld [vmem:[%s2832] sm:$0xff]
        %v2834 = vld [vmem:[%s2832 + $0x8] sm:$0xff]
        %v2835 = vld [vmem:[%s2832 + $0x10] sm:$0xff]
        %v2836 = vld [vmem:[%s2832 + $0x18] sm:$0xff]
        %v2837 = vld [vmem:[%s2832 + $0x20] sm:$0xff]
        %v2838 = vld [vmem:[%s2832 + $0x28] sm:$0xff]
        %v2839 = vld [vmem:[%s2832 + $0x30] sm:$0xff]
        %v2840 = vld [vmem:[%s2832 + $0x38] sm:$0xff]
        %v2841 = vld [vmem:[%s2832 + $0x40] sm:$0xff]
        %v2842 = vld [vmem:[%s2832 + $0x48] sm:$0xff]
        %v2843 = vld [vmem:[%s2832 + $0x50] sm:$0xff]
        %v2844 = vld [vmem:[%s2832 + $0x58] sm:$0xff]
        %v2845 = vld [vmem:[%s2832 + $0x60] sm:$0xff]
        %v2846 = vld [vmem:[%s2832 + $0x68] sm:$0xff]
        %v2847 = vld [vmem:[%s2832 + $0x70] sm:$0xff]
        %v2848 = vld [vmem:[%s2832 + $0x78] sm:$0xff]
        %v2849 = vld [vmem:[%s2832 + $0x80] sm:$0xff]
        %v2850 = vld [vmem:[%s2832 + $0x88] sm:$0xff]
        %v2851 = vld [vmem:[%s2832 + $0x90] sm:$0xff]
        %v2852 = vld [vmem:[%s2832 + $0x98] sm:$0xff]
        %v2853 = vld [vmem:[%s2832 + $0xa0] sm:$0xff]
        %v2854 = vld [vmem:[%s2832 + $0xa8] sm:$0xff]
        %v2855 = vld [vmem:[%s2832 + $0xb0] sm:$0xff]
        %v2856 = vld [vmem:[%s2832 + $0xb8] sm:$0xff]
        %v2857 = vld [vmem:[%s2832 + $0xc0] sm:$0xff]
        %v2858 = vld [vmem:[%s2832 + $0xc8] sm:$0xff]
        %v2859 = vld [vmem:[%s2832 + $0xd0] sm:$0xff]
        %v2860 = vld [vmem:[%s2832 + $0xd8] sm:$0xff]
        %v2861 = vld [vmem:[%s2832 + $0xe0] sm:$0xff]
        %v2862 = vld [vmem:[%s2832 + $0xe8] sm:$0xff]
        %v2863 = vld [vmem:[%s2832 + $0xf0] sm:$0xff]
        %v2864 = vld [vmem:[%s2832 + $0xf8] sm:$0xff]
        %v2865 = vrot.slane %v2360, 6
        %v2866 = vrot.slane %v2361, 6
        %2869 = vmatpush.msra.mxu0 %v2848
        %2870 = vmatpush.msra.mxu0 %v2847
        %2871 = vmatpush.msra.mxu0 %v2846
        %2872 = vmatpush.msra.mxu0 %v2845
        %2873 = vmatpush.msra.mxu0 %v2844
        %2874 = vmatpush.msra.mxu0 %v2843
        %2875 = vmatpush.msra.mxu0 %v2842
        %2876 = vmatpush.msra.mxu0 %v2841
        %2877 = vmatpush.msra.mxu0 %v2840
        %2878 = vmatpush.msra.mxu0 %v2839
        %2879 = vmatpush.msra.mxu0 %v2838
        %2880 = vmatpush.msra.mxu0 %v2837
        %2881 = vmatpush.msra.mxu0 %v2836
        %2882 = vmatpush.msra.mxu0 %v2835
        %2883 = vmatpush.msra.mxu0 %v2834
        %2884 = vmatpush.msra.mxu0 %v2833
        %2885 = vmatmul.f32.gmra.mxu0 %v2865
        %v2886 = vpop.f32.mrf.mxu0
        %v2887 = vadd.f32 0.0, %v2886
        %2888 = vdwg.mxu0
        %2889 = vmatpush.msra.mxu0 %v2864
        %2890 = vmatpush.msra.mxu0 %v2863
        %2891 = vmatpush.msra.mxu0 %v2862
        %2892 = vmatpush.msra.mxu0 %v2861
        %2893 = vmatpush.msra.mxu0 %v2860
        %2894 = vmatpush.msra.mxu0 %v2859
        %2895 = vmatpush.msra.mxu0 %v2858
        %2896 = vmatpush.msra.mxu0 %v2857
        %2897 = vmatpush.msra.mxu0 %v2856
        %2898 = vmatpush.msra.mxu0 %v2855
        %2899 = vmatpush.msra.mxu0 %v2854
        %2900 = vmatpush.msra.mxu0 %v2853
        %2901 = vmatpush.msra.mxu0 %v2852
        %2902 = vmatpush.msra.mxu0 %v2851
        %2903 = vmatpush.msra.mxu0 %v2850
        %2904 = vmatpush.msra.mxu0 %v2849
        %2905 = vmatmul.f32.gmra.mxu0 %v2866
        %v2906 = vpop.f32.mrf.mxu0
        %v2907 = vadd.f32 %v2887, %v2906
        %2908 = vdwg.mxu0
        %v2909 = vadd.f32 %v2831, %v2907
        %s2910 = scalar_lea.vmem %s5, 1792
        %v2911 = vld [vmem:[%s2910] sm:$0xff]
        %v2912 = vld [vmem:[%s2910 + $0x8] sm:$0xff]
        %v2913 = vld [vmem:[%s2910 + $0x10] sm:$0xff]
        %v2914 = vld [vmem:[%s2910 + $0x18] sm:$0xff]
        %v2915 = vld [vmem:[%s2910 + $0x20] sm:$0xff]
        %v2916 = vld [vmem:[%s2910 + $0x28] sm:$0xff]
        %v2917 = vld [vmem:[%s2910 + $0x30] sm:$0xff]
        %v2918 = vld [vmem:[%s2910 + $0x38] sm:$0xff]
        %v2919 = vld [vmem:[%s2910 + $0x40] sm:$0xff]
        %v2920 = vld [vmem:[%s2910 + $0x48] sm:$0xff]
        %v2921 = vld [vmem:[%s2910 + $0x50] sm:$0xff]
        %v2922 = vld [vmem:[%s2910 + $0x58] sm:$0xff]
        %v2923 = vld [vmem:[%s2910 + $0x60] sm:$0xff]
        %v2924 = vld [vmem:[%s2910 + $0x68] sm:$0xff]
        %v2925 = vld [vmem:[%s2910 + $0x70] sm:$0xff]
        %v2926 = vld [vmem:[%s2910 + $0x78] sm:$0xff]
        %v2927 = vld [vmem:[%s2910 + $0x80] sm:$0xff]
        %v2928 = vld [vmem:[%s2910 + $0x88] sm:$0xff]
        %v2929 = vld [vmem:[%s2910 + $0x90] sm:$0xff]
        %v2930 = vld [vmem:[%s2910 + $0x98] sm:$0xff]
        %v2931 = vld [vmem:[%s2910 + $0xa0] sm:$0xff]
        %v2932 = vld [vmem:[%s2910 + $0xa8] sm:$0xff]
        %v2933 = vld [vmem:[%s2910 + $0xb0] sm:$0xff]
        %v2934 = vld [vmem:[%s2910 + $0xb8] sm:$0xff]
        %v2935 = vld [vmem:[%s2910 + $0xc0] sm:$0xff]
        %v2936 = vld [vmem:[%s2910 + $0xc8] sm:$0xff]
        %v2937 = vld [vmem:[%s2910 + $0xd0] sm:$0xff]
        %v2938 = vld [vmem:[%s2910 + $0xd8] sm:$0xff]
        %v2939 = vld [vmem:[%s2910 + $0xe0] sm:$0xff]
        %v2940 = vld [vmem:[%s2910 + $0xe8] sm:$0xff]
        %v2941 = vld [vmem:[%s2910 + $0xf0] sm:$0xff]
        %v2942 = vld [vmem:[%s2910 + $0xf8] sm:$0xff]
        %v2943 = vrot.slane %v2360, 7
        %v2944 = vrot.slane %v2361, 7
        %2947 = vmatpush.msra.mxu0 %v2926
        %2948 = vmatpush.msra.mxu0 %v2925
        %2949 = vmatpush.msra.mxu0 %v2924
        %2950 = vmatpush.msra.mxu0 %v2923
        %2951 = vmatpush.msra.mxu0 %v2922
        %2952 = vmatpush.msra.mxu0 %v2921
        %2953 = vmatpush.msra.mxu0 %v2920
        %2954 = vmatpush.msra.mxu0 %v2919
        %2955 = vmatpush.msra.mxu0 %v2918
        %2956 = vmatpush.msra.mxu0 %v2917
        %2957 = vmatpush.msra.mxu0 %v2916
        %2958 = vmatpush.msra.mxu0 %v2915
        %2959 = vmatpush.msra.mxu0 %v2914
        %2960 = vmatpush.msra.mxu0 %v2913
        %2961 = vmatpush.msra.mxu0 %v2912
        %2962 = vmatpush.msra.mxu0 %v2911
        %2963 = vmatmul.f32.gmra.mxu0 %v2943
        %v2964 = vpop.f32.mrf.mxu0
        %v2965 = vadd.f32 0.0, %v2964
        %2966 = vdwg.mxu0
        %2967 = vmatpush.msra.mxu0 %v2942
        %2968 = vmatpush.msra.mxu0 %v2941
        %2969 = vmatpush.msra.mxu0 %v2940
        %2970 = vmatpush.msra.mxu0 %v2939
        %2971 = vmatpush.msra.mxu0 %v2938
        %2972 = vmatpush.msra.mxu0 %v2937
        %2973 = vmatpush.msra.mxu0 %v2936
        %2974 = vmatpush.msra.mxu0 %v2935
        %2975 = vmatpush.msra.mxu0 %v2934
        %2976 = vmatpush.msra.mxu0 %v2933
        %2977 = vmatpush.msra.mxu0 %v2932
        %2978 = vmatpush.msra.mxu0 %v2931
        %2979 = vmatpush.msra.mxu0 %v2930
        %2980 = vmatpush.msra.mxu0 %v2929
        %2981 = vmatpush.msra.mxu0 %v2928
        %2982 = vmatpush.msra.mxu0 %v2927
        %2983 = vmatmul.f32.gmra.mxu0 %v2944
        %v2984 = vpop.f32.mrf.mxu0
        %v2985 = vadd.f32 %v2965, %v2984
        %2986 = vdwg.mxu0
        %v2987 = vadd.f32 %v2909, %v2985
        %s2988 = scalar_lea.vmem %s5, 2048
        %v2989 = vld [vmem:[%s2988] sm:$0xff]
        %v2990 = vld [vmem:[%s2988 + $0x8] sm:$0xff]
        %v2991 = vld [vmem:[%s2988 + $0x10] sm:$0xff]
        %v2992 = vld [vmem:[%s2988 + $0x18] sm:$0xff]
        %v2993 = vld [vmem:[%s2988 + $0x20] sm:$0xff]
        %v2994 = vld [vmem:[%s2988 + $0x28] sm:$0xff]
        %v2995 = vld [vmem:[%s2988 + $0x30] sm:$0xff]
        %v2996 = vld [vmem:[%s2988 + $0x38] sm:$0xff]
        %v2997 = vld [vmem:[%s2988 + $0x40] sm:$0xff]
        %v2998 = vld [vmem:[%s2988 + $0x48] sm:$0xff]
        %v2999 = vld [vmem:[%s2988 + $0x50] sm:$0xff]
        %v3000 = vld [vmem:[%s2988 + $0x58] sm:$0xff]
        %v3001 = vld [vmem:[%s2988 + $0x60] sm:$0xff]
        %v3002 = vld [vmem:[%s2988 + $0x68] sm:$0xff]
        %v3003 = vld [vmem:[%s2988 + $0x70] sm:$0xff]
        %v3004 = vld [vmem:[%s2988 + $0x78] sm:$0xff]
        %v3005 = vld [vmem:[%s2988 + $0x80] sm:$0xff]
        %v3006 = vld [vmem:[%s2988 + $0x88] sm:$0xff]
        %v3007 = vld [vmem:[%s2988 + $0x90] sm:$0xff]
        %v3008 = vld [vmem:[%s2988 + $0x98] sm:$0xff]
        %v3009 = vld [vmem:[%s2988 + $0xa0] sm:$0xff]
        %v3010 = vld [vmem:[%s2988 + $0xa8] sm:$0xff]
        %v3011 = vld [vmem:[%s2988 + $0xb0] sm:$0xff]
        %v3012 = vld [vmem:[%s2988 + $0xb8] sm:$0xff]
        %v3013 = vld [vmem:[%s2988 + $0xc0] sm:$0xff]
        %v3014 = vld [vmem:[%s2988 + $0xc8] sm:$0xff]
        %v3015 = vld [vmem:[%s2988 + $0xd0] sm:$0xff]
        %v3016 = vld [vmem:[%s2988 + $0xd8] sm:$0xff]
        %v3017 = vld [vmem:[%s2988 + $0xe0] sm:$0xff]
        %v3018 = vld [vmem:[%s2988 + $0xe8] sm:$0xff]
        %v3019 = vld [vmem:[%s2988 + $0xf0] sm:$0xff]
        %v3020 = vld [vmem:[%s2988 + $0xf8] sm:$0xff]
        %3021 = vmatpush.msra.mxu0 %v3004
        %3022 = vmatpush.msra.mxu0 %v3003
        %3023 = vmatpush.msra.mxu0 %v3002
        %3024 = vmatpush.msra.mxu0 %v3001
        %3025 = vmatpush.msra.mxu0 %v3000
        %3026 = vmatpush.msra.mxu0 %v2999
        %3027 = vmatpush.msra.mxu0 %v2998
        %3028 = vmatpush.msra.mxu0 %v2997
        %3029 = vmatpush.msra.mxu0 %v2996
        %3030 = vmatpush.msra.mxu0 %v2995
        %3031 = vmatpush.msra.mxu0 %v2994
        %3032 = vmatpush.msra.mxu0 %v2993
        %3033 = vmatpush.msra.mxu0 %v2992
        %3034 = vmatpush.msra.mxu0 %v2991
        %3035 = vmatpush.msra.mxu0 %v2990
        %3036 = vmatpush.msra.mxu0 %v2989
        %3037 = vmatmul.f32.gmra.mxu0 %v2362
        %v3038 = vpop.f32.mrf.mxu0
        %v3039 = vadd.f32 0.0, %v3038
        %3040 = vdwg.mxu0
        %3041 = vmatpush.msra.mxu0 %v3020
        %3042 = vmatpush.msra.mxu0 %v3019
        %3043 = vmatpush.msra.mxu0 %v3018
        %3044 = vmatpush.msra.mxu0 %v3017
        %3045 = vmatpush.msra.mxu0 %v3016
        %3046 = vmatpush.msra.mxu0 %v3015
        %3047 = vmatpush.msra.mxu0 %v3014
        %3048 = vmatpush.msra.mxu0 %v3013
        %3049 = vmatpush.msra.mxu0 %v3012
        %3050 = vmatpush.msra.mxu0 %v3011
        %3051 = vmatpush.msra.mxu0 %v3010
        %3052 = vmatpush.msra.mxu0 %v3009
        %3053 = vmatpush.msra.mxu0 %v3008
        %3054 = vmatpush.msra.mxu0 %v3007
        %3055 = vmatpush.msra.mxu0 %v3006
        %3056 = vmatpush.msra.mxu0 %v3005
        %3057 = vmatmul.f32.gmra.mxu0 %v2363
        %v3058 = vpop.f32.mrf.mxu0
        %v3059 = vadd.f32 %v3039, %v3058
        %3060 = vdwg.mxu0
        %v3061 = vadd.f32 %v2987, %v3059
        %s3062 = scalar_lea.vmem %s5, 2304
        %v3063 = vld [vmem:[%s3062] sm:$0xff]
        %v3064 = vld [vmem:[%s3062 + $0x8] sm:$0xff]
        %v3065 = vld [vmem:[%s3062 + $0x10] sm:$0xff]
        %v3066 = vld [vmem:[%s3062 + $0x18] sm:$0xff]
        %v3067 = vld [vmem:[%s3062 + $0x20] sm:$0xff]
        %v3068 = vld [vmem:[%s3062 + $0x28] sm:$0xff]
        %v3069 = vld [vmem:[%s3062 + $0x30] sm:$0xff]
        %v3070 = vld [vmem:[%s3062 + $0x38] sm:$0xff]
        %v3071 = vld [vmem:[%s3062 + $0x40] sm:$0xff]
        %v3072 = vld [vmem:[%s3062 + $0x48] sm:$0xff]
        %v3073 = vld [vmem:[%s3062 + $0x50] sm:$0xff]
        %v3074 = vld [vmem:[%s3062 + $0x58] sm:$0xff]
        %v3075 = vld [vmem:[%s3062 + $0x60] sm:$0xff]
        %v3076 = vld [vmem:[%s3062 + $0x68] sm:$0xff]
        %v3077 = vld [vmem:[%s3062 + $0x70] sm:$0xff]
        %v3078 = vld [vmem:[%s3062 + $0x78] sm:$0xff]
        %v3079 = vld [vmem:[%s3062 + $0x80] sm:$0xff]
        %v3080 = vld [vmem:[%s3062 + $0x88] sm:$0xff]
        %v3081 = vld [vmem:[%s3062 + $0x90] sm:$0xff]
        %v3082 = vld [vmem:[%s3062 + $0x98] sm:$0xff]
        %v3083 = vld [vmem:[%s3062 + $0xa0] sm:$0xff]
        %v3084 = vld [vmem:[%s3062 + $0xa8] sm:$0xff]
        %v3085 = vld [vmem:[%s3062 + $0xb0] sm:$0xff]
        %v3086 = vld [vmem:[%s3062 + $0xb8] sm:$0xff]
        %v3087 = vld [vmem:[%s3062 + $0xc0] sm:$0xff]
        %v3088 = vld [vmem:[%s3062 + $0xc8] sm:$0xff]
        %v3089 = vld [vmem:[%s3062 + $0xd0] sm:$0xff]
        %v3090 = vld [vmem:[%s3062 + $0xd8] sm:$0xff]
        %v3091 = vld [vmem:[%s3062 + $0xe0] sm:$0xff]
        %v3092 = vld [vmem:[%s3062 + $0xe8] sm:$0xff]
        %v3093 = vld [vmem:[%s3062 + $0xf0] sm:$0xff]
        %v3094 = vld [vmem:[%s3062 + $0xf8] sm:$0xff]
        %v3097 = vrot.slane %v2362, 1
        %v3098 = vrot.slane %v2363, 1
        %3101 = vmatpush.msra.mxu0 %v3078
        %3102 = vmatpush.msra.mxu0 %v3077
        %3103 = vmatpush.msra.mxu0 %v3076
        %3104 = vmatpush.msra.mxu0 %v3075
        %3105 = vmatpush.msra.mxu0 %v3074
        %3106 = vmatpush.msra.mxu0 %v3073
        %3107 = vmatpush.msra.mxu0 %v3072
        %3108 = vmatpush.msra.mxu0 %v3071
        %3109 = vmatpush.msra.mxu0 %v3070
        %3110 = vmatpush.msra.mxu0 %v3069
        %3111 = vmatpush.msra.mxu0 %v3068
        %3112 = vmatpush.msra.mxu0 %v3067
        %3113 = vmatpush.msra.mxu0 %v3066
        %3114 = vmatpush.msra.mxu0 %v3065
        %3115 = vmatpush.msra.mxu0 %v3064
        %3116 = vmatpush.msra.mxu0 %v3063
        %3117 = vmatmul.f32.gmra.mxu0 %v3097
        %v3118 = vpop.f32.mrf.mxu0
        %v3119 = vadd.f32 0.0, %v3118
        %3120 = vdwg.mxu0
        %3121 = vmatpush.msra.mxu0 %v3094
        %3122 = vmatpush.msra.mxu0 %v3093
        %3123 = vmatpush.msra.mxu0 %v3092
        %3124 = vmatpush.msra.mxu0 %v3091
        %3125 = vmatpush.msra.mxu0 %v3090
        %3126 = vmatpush.msra.mxu0 %v3089
        %3127 = vmatpush.msra.mxu0 %v3088
        %3128 = vmatpush.msra.mxu0 %v3087
        %3129 = vmatpush.msra.mxu0 %v3086
        %3130 = vmatpush.msra.mxu0 %v3085
        %3131 = vmatpush.msra.mxu0 %v3084
        %3132 = vmatpush.msra.mxu0 %v3083
        %3133 = vmatpush.msra.mxu0 %v3082
        %3134 = vmatpush.msra.mxu0 %v3081
        %3135 = vmatpush.msra.mxu0 %v3080
        %3136 = vmatpush.msra.mxu0 %v3079
        %3137 = vmatmul.f32.gmra.mxu0 %v3098
        %v3138 = vpop.f32.mrf.mxu0
        %v3139 = vadd.f32 %v3119, %v3138
        %3140 = vdwg.mxu0
        %v3141 = vadd.f32 %v3061, %v3139
        %s3142 = scalar_lea.vmem %s5, 2560
        %v3143 = vld [vmem:[%s3142] sm:$0xff]
        %v3144 = vld [vmem:[%s3142 + $0x8] sm:$0xff]
        %v3145 = vld [vmem:[%s3142 + $0x10] sm:$0xff]
        %v3146 = vld [vmem:[%s3142 + $0x18] sm:$0xff]
        %v3147 = vld [vmem:[%s3142 + $0x20] sm:$0xff]
        %v3148 = vld [vmem:[%s3142 + $0x28] sm:$0xff]
        %v3149 = vld [vmem:[%s3142 + $0x30] sm:$0xff]
        %v3150 = vld [vmem:[%s3142 + $0x38] sm:$0xff]
        %v3151 = vld [vmem:[%s3142 + $0x40] sm:$0xff]
        %v3152 = vld [vmem:[%s3142 + $0x48] sm:$0xff]
        %v3153 = vld [vmem:[%s3142 + $0x50] sm:$0xff]
        %v3154 = vld [vmem:[%s3142 + $0x58] sm:$0xff]
        %v3155 = vld [vmem:[%s3142 + $0x60] sm:$0xff]
        %v3156 = vld [vmem:[%s3142 + $0x68] sm:$0xff]
        %v3157 = vld [vmem:[%s3142 + $0x70] sm:$0xff]
        %v3158 = vld [vmem:[%s3142 + $0x78] sm:$0xff]
        %v3159 = vld [vmem:[%s3142 + $0x80] sm:$0xff]
        %v3160 = vld [vmem:[%s3142 + $0x88] sm:$0xff]
        %v3161 = vld [vmem:[%s3142 + $0x90] sm:$0xff]
        %v3162 = vld [vmem:[%s3142 + $0x98] sm:$0xff]
        %v3163 = vld [vmem:[%s3142 + $0xa0] sm:$0xff]
        %v3164 = vld [vmem:[%s3142 + $0xa8] sm:$0xff]
        %v3165 = vld [vmem:[%s3142 + $0xb0] sm:$0xff]
        %v3166 = vld [vmem:[%s3142 + $0xb8] sm:$0xff]
        %v3167 = vld [vmem:[%s3142 + $0xc0] sm:$0xff]
        %v3168 = vld [vmem:[%s3142 + $0xc8] sm:$0xff]
        %v3169 = vld [vmem:[%s3142 + $0xd0] sm:$0xff]
        %v3170 = vld [vmem:[%s3142 + $0xd8] sm:$0xff]
        %v3171 = vld [vmem:[%s3142 + $0xe0] sm:$0xff]
        %v3172 = vld [vmem:[%s3142 + $0xe8] sm:$0xff]
        %v3173 = vld [vmem:[%s3142 + $0xf0] sm:$0xff]
        %v3174 = vld [vmem:[%s3142 + $0xf8] sm:$0xff]
        %v3175 = vrot.slane %v2362, 2
        %v3176 = vrot.slane %v2363, 2
        %3179 = vmatpush.msra.mxu0 %v3158
        %3180 = vmatpush.msra.mxu0 %v3157
        %3181 = vmatpush.msra.mxu0 %v3156
        %3182 = vmatpush.msra.mxu0 %v3155
        %3183 = vmatpush.msra.mxu0 %v3154
        %3184 = vmatpush.msra.mxu0 %v3153
        %3185 = vmatpush.msra.mxu0 %v3152
        %3186 = vmatpush.msra.mxu0 %v3151
        %3187 = vmatpush.msra.mxu0 %v3150
        %3188 = vmatpush.msra.mxu0 %v3149
        %3189 = vmatpush.msra.mxu0 %v3148
        %3190 = vmatpush.msra.mxu0 %v3147
        %3191 = vmatpush.msra.mxu0 %v3146
        %3192 = vmatpush.msra.mxu0 %v3145
        %3193 = vmatpush.msra.mxu0 %v3144
        %3194 = vmatpush.msra.mxu0 %v3143
        %3195 = vmatmul.f32.gmra.mxu0 %v3175
        %v3196 = vpop.f32.mrf.mxu0
        %v3197 = vadd.f32 0.0, %v3196
        %3198 = vdwg.mxu0
        %3199 = vmatpush.msra.mxu0 %v3174
        %3200 = vmatpush.msra.mxu0 %v3173
        %3201 = vmatpush.msra.mxu0 %v3172
        %3202 = vmatpush.msra.mxu0 %v3171
        %3203 = vmatpush.msra.mxu0 %v3170
        %3204 = vmatpush.msra.mxu0 %v3169
        %3205 = vmatpush.msra.mxu0 %v3168
        %3206 = vmatpush.msra.mxu0 %v3167
        %3207 = vmatpush.msra.mxu0 %v3166
        %3208 = vmatpush.msra.mxu0 %v3165
        %3209 = vmatpush.msra.mxu0 %v3164
        %3210 = vmatpush.msra.mxu0 %v3163
        %3211 = vmatpush.msra.mxu0 %v3162
        %3212 = vmatpush.msra.mxu0 %v3161
        %3213 = vmatpush.msra.mxu0 %v3160
        %3214 = vmatpush.msra.mxu0 %v3159
        %3215 = vmatmul.f32.gmra.mxu0 %v3176
        %v3216 = vpop.f32.mrf.mxu0
        %v3217 = vadd.f32 %v3197, %v3216
        %3218 = vdwg.mxu0
        %v3219 = vadd.f32 %v3141, %v3217
        %s3220 = scalar_lea.vmem %s5, 2816
        %v3221 = vld [vmem:[%s3220] sm:$0xff]
        %v3222 = vld [vmem:[%s3220 + $0x8] sm:$0xff]
        %v3223 = vld [vmem:[%s3220 + $0x10] sm:$0xff]
        %v3224 = vld [vmem:[%s3220 + $0x18] sm:$0xff]
        %v3225 = vld [vmem:[%s3220 + $0x20] sm:$0xff]
        %v3226 = vld [vmem:[%s3220 + $0x28] sm:$0xff]
        %v3227 = vld [vmem:[%s3220 + $0x30] sm:$0xff]
        %v3228 = vld [vmem:[%s3220 + $0x38] sm:$0xff]
        %v3229 = vld [vmem:[%s3220 + $0x40] sm:$0xff]
        %v3230 = vld [vmem:[%s3220 + $0x48] sm:$0xff]
        %v3231 = vld [vmem:[%s3220 + $0x50] sm:$0xff]
        %v3232 = vld [vmem:[%s3220 + $0x58] sm:$0xff]
        %v3233 = vld [vmem:[%s3220 + $0x60] sm:$0xff]
        %v3234 = vld [vmem:[%s3220 + $0x68] sm:$0xff]
        %v3235 = vld [vmem:[%s3220 + $0x70] sm:$0xff]
        %v3236 = vld [vmem:[%s3220 + $0x78] sm:$0xff]
        %v3237 = vld [vmem:[%s3220 + $0x80] sm:$0xff]
        %v3238 = vld [vmem:[%s3220 + $0x88] sm:$0xff]
        %v3239 = vld [vmem:[%s3220 + $0x90] sm:$0xff]
        %v3240 = vld [vmem:[%s3220 + $0x98] sm:$0xff]
        %v3241 = vld [vmem:[%s3220 + $0xa0] sm:$0xff]
        %v3242 = vld [vmem:[%s3220 + $0xa8] sm:$0xff]
        %v3243 = vld [vmem:[%s3220 + $0xb0] sm:$0xff]
        %v3244 = vld [vmem:[%s3220 + $0xb8] sm:$0xff]
        %v3245 = vld [vmem:[%s3220 + $0xc0] sm:$0xff]
        %v3246 = vld [vmem:[%s3220 + $0xc8] sm:$0xff]
        %v3247 = vld [vmem:[%s3220 + $0xd0] sm:$0xff]
        %v3248 = vld [vmem:[%s3220 + $0xd8] sm:$0xff]
        %v3249 = vld [vmem:[%s3220 + $0xe0] sm:$0xff]
        %v3250 = vld [vmem:[%s3220 + $0xe8] sm:$0xff]
        %v3251 = vld [vmem:[%s3220 + $0xf0] sm:$0xff]
        %v3252 = vld [vmem:[%s3220 + $0xf8] sm:$0xff]
        %v3253 = vrot.slane %v2362, 3
        %v3254 = vrot.slane %v2363, 3
        %3257 = vmatpush.msra.mxu0 %v3236
        %3258 = vmatpush.msra.mxu0 %v3235
        %3259 = vmatpush.msra.mxu0 %v3234
        %3260 = vmatpush.msra.mxu0 %v3233
        %3261 = vmatpush.msra.mxu0 %v3232
        %3262 = vmatpush.msra.mxu0 %v3231
        %3263 = vmatpush.msra.mxu0 %v3230
        %3264 = vmatpush.msra.mxu0 %v3229
        %3265 = vmatpush.msra.mxu0 %v3228
        %3266 = vmatpush.msra.mxu0 %v3227
        %3267 = vmatpush.msra.mxu0 %v3226
        %3268 = vmatpush.msra.mxu0 %v3225
        %3269 = vmatpush.msra.mxu0 %v3224
        %3270 = vmatpush.msra.mxu0 %v3223
        %3271 = vmatpush.msra.mxu0 %v3222
        %3272 = vmatpush.msra.mxu0 %v3221
        %3273 = vmatmul.f32.gmra.mxu0 %v3253
        %v3274 = vpop.f32.mrf.mxu0
        %v3275 = vadd.f32 0.0, %v3274
        %3276 = vdwg.mxu0
        %3277 = vmatpush.msra.mxu0 %v3252
        %3278 = vmatpush.msra.mxu0 %v3251
        %3279 = vmatpush.msra.mxu0 %v3250
        %3280 = vmatpush.msra.mxu0 %v3249
        %3281 = vmatpush.msra.mxu0 %v3248
        %3282 = vmatpush.msra.mxu0 %v3247
        %3283 = vmatpush.msra.mxu0 %v3246
        %3284 = vmatpush.msra.mxu0 %v3245
        %3285 = vmatpush.msra.mxu0 %v3244
        %3286 = vmatpush.msra.mxu0 %v3243
        %3287 = vmatpush.msra.mxu0 %v3242
        %3288 = vmatpush.msra.mxu0 %v3241
        %3289 = vmatpush.msra.mxu0 %v3240
        %3290 = vmatpush.msra.mxu0 %v3239
        %3291 = vmatpush.msra.mxu0 %v3238
        %3292 = vmatpush.msra.mxu0 %v3237
        %3293 = vmatmul.f32.gmra.mxu0 %v3254
        %v3294 = vpop.f32.mrf.mxu0
        %v3295 = vadd.f32 %v3275, %v3294
        %3296 = vdwg.mxu0
        %v3297 = vadd.f32 %v3219, %v3295
        %s3298 = scalar_lea.vmem %s5, 3072
        %v3299 = vld [vmem:[%s3298] sm:$0xff]
        %v3300 = vld [vmem:[%s3298 + $0x8] sm:$0xff]
        %v3301 = vld [vmem:[%s3298 + $0x10] sm:$0xff]
        %v3302 = vld [vmem:[%s3298 + $0x18] sm:$0xff]
        %v3303 = vld [vmem:[%s3298 + $0x20] sm:$0xff]
        %v3304 = vld [vmem:[%s3298 + $0x28] sm:$0xff]
        %v3305 = vld [vmem:[%s3298 + $0x30] sm:$0xff]
        %v3306 = vld [vmem:[%s3298 + $0x38] sm:$0xff]
        %v3307 = vld [vmem:[%s3298 + $0x40] sm:$0xff]
        %v3308 = vld [vmem:[%s3298 + $0x48] sm:$0xff]
        %v3309 = vld [vmem:[%s3298 + $0x50] sm:$0xff]
        %v3310 = vld [vmem:[%s3298 + $0x58] sm:$0xff]
        %v3311 = vld [vmem:[%s3298 + $0x60] sm:$0xff]
        %v3312 = vld [vmem:[%s3298 + $0x68] sm:$0xff]
        %v3313 = vld [vmem:[%s3298 + $0x70] sm:$0xff]
        %v3314 = vld [vmem:[%s3298 + $0x78] sm:$0xff]
        %v3315 = vld [vmem:[%s3298 + $0x80] sm:$0xff]
        %v3316 = vld [vmem:[%s3298 + $0x88] sm:$0xff]
        %v3317 = vld [vmem:[%s3298 + $0x90] sm:$0xff]
        %v3318 = vld [vmem:[%s3298 + $0x98] sm:$0xff]
        %v3319 = vld [vmem:[%s3298 + $0xa0] sm:$0xff]
        %v3320 = vld [vmem:[%s3298 + $0xa8] sm:$0xff]
        %v3321 = vld [vmem:[%s3298 + $0xb0] sm:$0xff]
        %v3322 = vld [vmem:[%s3298 + $0xb8] sm:$0xff]
        %v3323 = vld [vmem:[%s3298 + $0xc0] sm:$0xff]
        %v3324 = vld [vmem:[%s3298 + $0xc8] sm:$0xff]
        %v3325 = vld [vmem:[%s3298 + $0xd0] sm:$0xff]
        %v3326 = vld [vmem:[%s3298 + $0xd8] sm:$0xff]
        %v3327 = vld [vmem:[%s3298 + $0xe0] sm:$0xff]
        %v3328 = vld [vmem:[%s3298 + $0xe8] sm:$0xff]
        %v3329 = vld [vmem:[%s3298 + $0xf0] sm:$0xff]
        %v3330 = vld [vmem:[%s3298 + $0xf8] sm:$0xff]
        %v3331 = vrot.slane %v2362, 4
        %v3332 = vrot.slane %v2363, 4
        %3335 = vmatpush.msra.mxu0 %v3314
        %3336 = vmatpush.msra.mxu0 %v3313
        %3337 = vmatpush.msra.mxu0 %v3312
        %3338 = vmatpush.msra.mxu0 %v3311
        %3339 = vmatpush.msra.mxu0 %v3310
        %3340 = vmatpush.msra.mxu0 %v3309
        %3341 = vmatpush.msra.mxu0 %v3308
        %3342 = vmatpush.msra.mxu0 %v3307
        %3343 = vmatpush.msra.mxu0 %v3306
        %3344 = vmatpush.msra.mxu0 %v3305
        %3345 = vmatpush.msra.mxu0 %v3304
        %3346 = vmatpush.msra.mxu0 %v3303
        %3347 = vmatpush.msra.mxu0 %v3302
        %3348 = vmatpush.msra.mxu0 %v3301
        %3349 = vmatpush.msra.mxu0 %v3300
        %3350 = vmatpush.msra.mxu0 %v3299
        %3351 = vmatmul.f32.gmra.mxu0 %v3331
        %v3352 = vpop.f32.mrf.mxu0
        %v3353 = vadd.f32 0.0, %v3352
        %3354 = vdwg.mxu0
        %3355 = vmatpush.msra.mxu0 %v3330
        %3356 = vmatpush.msra.mxu0 %v3329
        %3357 = vmatpush.msra.mxu0 %v3328
        %3358 = vmatpush.msra.mxu0 %v3327
        %3359 = vmatpush.msra.mxu0 %v3326
        %3360 = vmatpush.msra.mxu0 %v3325
        %3361 = vmatpush.msra.mxu0 %v3324
        %3362 = vmatpush.msra.mxu0 %v3323
        %3363 = vmatpush.msra.mxu0 %v3322
        %3364 = vmatpush.msra.mxu0 %v3321
        %3365 = vmatpush.msra.mxu0 %v3320
        %3366 = vmatpush.msra.mxu0 %v3319
        %3367 = vmatpush.msra.mxu0 %v3318
        %3368 = vmatpush.msra.mxu0 %v3317
        %3369 = vmatpush.msra.mxu0 %v3316
        %3370 = vmatpush.msra.mxu0 %v3315
        %3371 = vmatmul.f32.gmra.mxu0 %v3332
        %v3372 = vpop.f32.mrf.mxu0
        %v3373 = vadd.f32 %v3353, %v3372
        %3374 = vdwg.mxu0
        %v3375 = vadd.f32 %v3297, %v3373
        %s3376 = scalar_lea.vmem %s5, 3328
        %v3377 = vld [vmem:[%s3376] sm:$0xff]
        %v3378 = vld [vmem:[%s3376 + $0x8] sm:$0xff]
        %v3379 = vld [vmem:[%s3376 + $0x10] sm:$0xff]
        %v3380 = vld [vmem:[%s3376 + $0x18] sm:$0xff]
        %v3381 = vld [vmem:[%s3376 + $0x20] sm:$0xff]
        %v3382 = vld [vmem:[%s3376 + $0x28] sm:$0xff]
        %v3383 = vld [vmem:[%s3376 + $0x30] sm:$0xff]
        %v3384 = vld [vmem:[%s3376 + $0x38] sm:$0xff]
        %v3385 = vld [vmem:[%s3376 + $0x40] sm:$0xff]
        %v3386 = vld [vmem:[%s3376 + $0x48] sm:$0xff]
        %v3387 = vld [vmem:[%s3376 + $0x50] sm:$0xff]
        %v3388 = vld [vmem:[%s3376 + $0x58] sm:$0xff]
        %v3389 = vld [vmem:[%s3376 + $0x60] sm:$0xff]
        %v3390 = vld [vmem:[%s3376 + $0x68] sm:$0xff]
        %v3391 = vld [vmem:[%s3376 + $0x70] sm:$0xff]
        %v3392 = vld [vmem:[%s3376 + $0x78] sm:$0xff]
        %v3393 = vld [vmem:[%s3376 + $0x80] sm:$0xff]
        %v3394 = vld [vmem:[%s3376 + $0x88] sm:$0xff]
        %v3395 = vld [vmem:[%s3376 + $0x90] sm:$0xff]
        %v3396 = vld [vmem:[%s3376 + $0x98] sm:$0xff]
        %v3397 = vld [vmem:[%s3376 + $0xa0] sm:$0xff]
        %v3398 = vld [vmem:[%s3376 + $0xa8] sm:$0xff]
        %v3399 = vld [vmem:[%s3376 + $0xb0] sm:$0xff]
        %v3400 = vld [vmem:[%s3376 + $0xb8] sm:$0xff]
        %v3401 = vld [vmem:[%s3376 + $0xc0] sm:$0xff]
        %v3402 = vld [vmem:[%s3376 + $0xc8] sm:$0xff]
        %v3403 = vld [vmem:[%s3376 + $0xd0] sm:$0xff]
        %v3404 = vld [vmem:[%s3376 + $0xd8] sm:$0xff]
        %v3405 = vld [vmem:[%s3376 + $0xe0] sm:$0xff]
        %v3406 = vld [vmem:[%s3376 + $0xe8] sm:$0xff]
        %v3407 = vld [vmem:[%s3376 + $0xf0] sm:$0xff]
        %v3408 = vld [vmem:[%s3376 + $0xf8] sm:$0xff]
        %v3409 = vrot.slane %v2362, 5
        %v3410 = vrot.slane %v2363, 5
        %3413 = vmatpush.msra.mxu0 %v3392
        %3414 = vmatpush.msra.mxu0 %v3391
        %3415 = vmatpush.msra.mxu0 %v3390
        %3416 = vmatpush.msra.mxu0 %v3389
        %3417 = vmatpush.msra.mxu0 %v3388
        %3418 = vmatpush.msra.mxu0 %v3387
        %3419 = vmatpush.msra.mxu0 %v3386
        %3420 = vmatpush.msra.mxu0 %v3385
        %3421 = vmatpush.msra.mxu0 %v3384
        %3422 = vmatpush.msra.mxu0 %v3383
        %3423 = vmatpush.msra.mxu0 %v3382
        %3424 = vmatpush.msra.mxu0 %v3381
        %3425 = vmatpush.msra.mxu0 %v3380
        %3426 = vmatpush.msra.mxu0 %v3379
        %3427 = vmatpush.msra.mxu0 %v3378
        %3428 = vmatpush.msra.mxu0 %v3377
        %3429 = vmatmul.f32.gmra.mxu0 %v3409
        %v3430 = vpop.f32.mrf.mxu0
        %v3431 = vadd.f32 0.0, %v3430
        %3432 = vdwg.mxu0
        %3433 = vmatpush.msra.mxu0 %v3408
        %3434 = vmatpush.msra.mxu0 %v3407
        %3435 = vmatpush.msra.mxu0 %v3406
        %3436 = vmatpush.msra.mxu0 %v3405
        %3437 = vmatpush.msra.mxu0 %v3404
        %3438 = vmatpush.msra.mxu0 %v3403
        %3439 = vmatpush.msra.mxu0 %v3402
        %3440 = vmatpush.msra.mxu0 %v3401
        %3441 = vmatpush.msra.mxu0 %v3400
        %3442 = vmatpush.msra.mxu0 %v3399
        %3443 = vmatpush.msra.mxu0 %v3398
        %3444 = vmatpush.msra.mxu0 %v3397
        %3445 = vmatpush.msra.mxu0 %v3396
        %3446 = vmatpush.msra.mxu0 %v3395
        %3447 = vmatpush.msra.mxu0 %v3394
        %3448 = vmatpush.msra.mxu0 %v3393
        %3449 = vmatmul.f32.gmra.mxu0 %v3410
        %v3450 = vpop.f32.mrf.mxu0
        %v3451 = vadd.f32 %v3431, %v3450
        %3452 = vdwg.mxu0
        %v3453 = vadd.f32 %v3375, %v3451
        %s3454 = scalar_lea.vmem %s5, 3584
        %v3455 = vld [vmem:[%s3454] sm:$0xff]
        %v3456 = vld [vmem:[%s3454 + $0x8] sm:$0xff]
        %v3457 = vld [vmem:[%s3454 + $0x10] sm:$0xff]
        %v3458 = vld [vmem:[%s3454 + $0x18] sm:$0xff]
        %v3459 = vld [vmem:[%s3454 + $0x20] sm:$0xff]
        %v3460 = vld [vmem:[%s3454 + $0x28] sm:$0xff]
        %v3461 = vld [vmem:[%s3454 + $0x30] sm:$0xff]
        %v3462 = vld [vmem:[%s3454 + $0x38] sm:$0xff]
        %v3463 = vld [vmem:[%s3454 + $0x40] sm:$0xff]
        %v3464 = vld [vmem:[%s3454 + $0x48] sm:$0xff]
        %v3465 = vld [vmem:[%s3454 + $0x50] sm:$0xff]
        %v3466 = vld [vmem:[%s3454 + $0x58] sm:$0xff]
        %v3467 = vld [vmem:[%s3454 + $0x60] sm:$0xff]
        %v3468 = vld [vmem:[%s3454 + $0x68] sm:$0xff]
        %v3469 = vld [vmem:[%s3454 + $0x70] sm:$0xff]
        %v3470 = vld [vmem:[%s3454 + $0x78] sm:$0xff]
        %v3471 = vld [vmem:[%s3454 + $0x80] sm:$0xff]
        %v3472 = vld [vmem:[%s3454 + $0x88] sm:$0xff]
        %v3473 = vld [vmem:[%s3454 + $0x90] sm:$0xff]
        %v3474 = vld [vmem:[%s3454 + $0x98] sm:$0xff]
        %v3475 = vld [vmem:[%s3454 + $0xa0] sm:$0xff]
        %v3476 = vld [vmem:[%s3454 + $0xa8] sm:$0xff]
        %v3477 = vld [vmem:[%s3454 + $0xb0] sm:$0xff]
        %v3478 = vld [vmem:[%s3454 + $0xb8] sm:$0xff]
        %v3479 = vld [vmem:[%s3454 + $0xc0] sm:$0xff]
        %v3480 = vld [vmem:[%s3454 + $0xc8] sm:$0xff]
        %v3481 = vld [vmem:[%s3454 + $0xd0] sm:$0xff]
        %v3482 = vld [vmem:[%s3454 + $0xd8] sm:$0xff]
        %v3483 = vld [vmem:[%s3454 + $0xe0] sm:$0xff]
        %v3484 = vld [vmem:[%s3454 + $0xe8] sm:$0xff]
        %v3485 = vld [vmem:[%s3454 + $0xf0] sm:$0xff]
        %v3486 = vld [vmem:[%s3454 + $0xf8] sm:$0xff]
        %v3487 = vrot.slane %v2362, 6
        %v3488 = vrot.slane %v2363, 6
        %3491 = vmatpush.msra.mxu0 %v3470
        %3492 = vmatpush.msra.mxu0 %v3469
        %3493 = vmatpush.msra.mxu0 %v3468
        %3494 = vmatpush.msra.mxu0 %v3467
        %3495 = vmatpush.msra.mxu0 %v3466
        %3496 = vmatpush.msra.mxu0 %v3465
        %3497 = vmatpush.msra.mxu0 %v3464
        %3498 = vmatpush.msra.mxu0 %v3463
        %3499 = vmatpush.msra.mxu0 %v3462
        %3500 = vmatpush.msra.mxu0 %v3461
        %3501 = vmatpush.msra.mxu0 %v3460
        %3502 = vmatpush.msra.mxu0 %v3459
        %3503 = vmatpush.msra.mxu0 %v3458
        %3504 = vmatpush.msra.mxu0 %v3457
        %3505 = vmatpush.msra.mxu0 %v3456
        %3506 = vmatpush.msra.mxu0 %v3455
        %3507 = vmatmul.f32.gmra.mxu0 %v3487
        %v3508 = vpop.f32.mrf.mxu0
        %v3509 = vadd.f32 0.0, %v3508
        %3510 = vdwg.mxu0
        %3511 = vmatpush.msra.mxu0 %v3486
        %3512 = vmatpush.msra.mxu0 %v3485
        %3513 = vmatpush.msra.mxu0 %v3484
        %3514 = vmatpush.msra.mxu0 %v3483
        %3515 = vmatpush.msra.mxu0 %v3482
        %3516 = vmatpush.msra.mxu0 %v3481
        %3517 = vmatpush.msra.mxu0 %v3480
        %3518 = vmatpush.msra.mxu0 %v3479
        %3519 = vmatpush.msra.mxu0 %v3478
        %3520 = vmatpush.msra.mxu0 %v3477
        %3521 = vmatpush.msra.mxu0 %v3476
        %3522 = vmatpush.msra.mxu0 %v3475
        %3523 = vmatpush.msra.mxu0 %v3474
        %3524 = vmatpush.msra.mxu0 %v3473
        %3525 = vmatpush.msra.mxu0 %v3472
        %3526 = vmatpush.msra.mxu0 %v3471
        %3527 = vmatmul.f32.gmra.mxu0 %v3488
        %v3528 = vpop.f32.mrf.mxu0
        %v3529 = vadd.f32 %v3509, %v3528
        %3530 = vdwg.mxu0
        %v3531 = vadd.f32 %v3453, %v3529
        %s3532 = scalar_lea.vmem %s5, 3840
        %v3533 = vld [vmem:[%s3532] sm:$0xff]
        %v3534 = vld [vmem:[%s3532 + $0x8] sm:$0xff]
        %v3535 = vld [vmem:[%s3532 + $0x10] sm:$0xff]
        %v3536 = vld [vmem:[%s3532 + $0x18] sm:$0xff]
        %v3537 = vld [vmem:[%s3532 + $0x20] sm:$0xff]
        %v3538 = vld [vmem:[%s3532 + $0x28] sm:$0xff]
        %v3539 = vld [vmem:[%s3532 + $0x30] sm:$0xff]
        %v3540 = vld [vmem:[%s3532 + $0x38] sm:$0xff]
        %v3541 = vld [vmem:[%s3532 + $0x40] sm:$0xff]
        %v3542 = vld [vmem:[%s3532 + $0x48] sm:$0xff]
        %v3543 = vld [vmem:[%s3532 + $0x50] sm:$0xff]
        %v3544 = vld [vmem:[%s3532 + $0x58] sm:$0xff]
        %v3545 = vld [vmem:[%s3532 + $0x60] sm:$0xff]
        %v3546 = vld [vmem:[%s3532 + $0x68] sm:$0xff]
        %v3547 = vld [vmem:[%s3532 + $0x70] sm:$0xff]
        %v3548 = vld [vmem:[%s3532 + $0x78] sm:$0xff]
        %v3549 = vld [vmem:[%s3532 + $0x80] sm:$0xff]
        %v3550 = vld [vmem:[%s3532 + $0x88] sm:$0xff]
        %v3551 = vld [vmem:[%s3532 + $0x90] sm:$0xff]
        %v3552 = vld [vmem:[%s3532 + $0x98] sm:$0xff]
        %v3553 = vld [vmem:[%s3532 + $0xa0] sm:$0xff]
        %v3554 = vld [vmem:[%s3532 + $0xa8] sm:$0xff]
        %v3555 = vld [vmem:[%s3532 + $0xb0] sm:$0xff]
        %v3556 = vld [vmem:[%s3532 + $0xb8] sm:$0xff]
        %v3557 = vld [vmem:[%s3532 + $0xc0] sm:$0xff]
        %v3558 = vld [vmem:[%s3532 + $0xc8] sm:$0xff]
        %v3559 = vld [vmem:[%s3532 + $0xd0] sm:$0xff]
        %v3560 = vld [vmem:[%s3532 + $0xd8] sm:$0xff]
        %v3561 = vld [vmem:[%s3532 + $0xe0] sm:$0xff]
        %v3562 = vld [vmem:[%s3532 + $0xe8] sm:$0xff]
        %v3563 = vld [vmem:[%s3532 + $0xf0] sm:$0xff]
        %v3564 = vld [vmem:[%s3532 + $0xf8] sm:$0xff]
        %v3565 = vrot.slane %v2362, 7
        %v3566 = vrot.slane %v2363, 7
        %3569 = vmatpush.msra.mxu0 %v3548
        %3570 = vmatpush.msra.mxu0 %v3547
        %3571 = vmatpush.msra.mxu0 %v3546
        %3572 = vmatpush.msra.mxu0 %v3545
        %3573 = vmatpush.msra.mxu0 %v3544
        %3574 = vmatpush.msra.mxu0 %v3543
        %3575 = vmatpush.msra.mxu0 %v3542
        %3576 = vmatpush.msra.mxu0 %v3541
        %3577 = vmatpush.msra.mxu0 %v3540
        %3578 = vmatpush.msra.mxu0 %v3539
        %3579 = vmatpush.msra.mxu0 %v3538
        %3580 = vmatpush.msra.mxu0 %v3537
        %3581 = vmatpush.msra.mxu0 %v3536
        %3582 = vmatpush.msra.mxu0 %v3535
        %3583 = vmatpush.msra.mxu0 %v3534
        %3584 = vmatpush.msra.mxu0 %v3533
        %3585 = vmatmul.f32.gmra.mxu0 %v3565
        %v3586 = vpop.f32.mrf.mxu0
        %v3587 = vadd.f32 0.0, %v3586
        %3588 = vdwg.mxu0
        %3589 = vmatpush.msra.mxu0 %v3564
        %3590 = vmatpush.msra.mxu0 %v3563
        %3591 = vmatpush.msra.mxu0 %v3562
        %3592 = vmatpush.msra.mxu0 %v3561
        %3593 = vmatpush.msra.mxu0 %v3560
        %3594 = vmatpush.msra.mxu0 %v3559
        %3595 = vmatpush.msra.mxu0 %v3558
        %3596 = vmatpush.msra.mxu0 %v3557
        %3597 = vmatpush.msra.mxu0 %v3556
        %3598 = vmatpush.msra.mxu0 %v3555
        %3599 = vmatpush.msra.mxu0 %v3554
        %3600 = vmatpush.msra.mxu0 %v3553
        %3601 = vmatpush.msra.mxu0 %v3552
        %3602 = vmatpush.msra.mxu0 %v3551
        %3603 = vmatpush.msra.mxu0 %v3550
        %3604 = vmatpush.msra.mxu0 %v3549
        %3605 = vmatmul.f32.gmra.mxu0 %v3566
        %v3606 = vpop.f32.mrf.mxu0
        %v3607 = vadd.f32 %v3587, %v3606
        %3608 = vdwg.mxu0
        %v3609 = vadd.f32 %v3531, %v3607
        %s3610 = scalar_lea.vmem %s5, 4096
        %v3611 = vld [vmem:[%s3610] sm:$0xff]
        %v3612 = vld [vmem:[%s3610 + $0x8] sm:$0xff]
        %v3613 = vld [vmem:[%s3610 + $0x10] sm:$0xff]
        %v3614 = vld [vmem:[%s3610 + $0x18] sm:$0xff]
        %v3615 = vld [vmem:[%s3610 + $0x20] sm:$0xff]
        %v3616 = vld [vmem:[%s3610 + $0x28] sm:$0xff]
        %v3617 = vld [vmem:[%s3610 + $0x30] sm:$0xff]
        %v3618 = vld [vmem:[%s3610 + $0x38] sm:$0xff]
        %v3619 = vld [vmem:[%s3610 + $0x40] sm:$0xff]
        %v3620 = vld [vmem:[%s3610 + $0x48] sm:$0xff]
        %v3621 = vld [vmem:[%s3610 + $0x50] sm:$0xff]
        %v3622 = vld [vmem:[%s3610 + $0x58] sm:$0xff]
        %v3623 = vld [vmem:[%s3610 + $0x60] sm:$0xff]
        %v3624 = vld [vmem:[%s3610 + $0x68] sm:$0xff]
        %v3625 = vld [vmem:[%s3610 + $0x70] sm:$0xff]
        %v3626 = vld [vmem:[%s3610 + $0x78] sm:$0xff]
        %v3627 = vld [vmem:[%s3610 + $0x80] sm:$0xff]
        %v3628 = vld [vmem:[%s3610 + $0x88] sm:$0xff]
        %v3629 = vld [vmem:[%s3610 + $0x90] sm:$0xff]
        %v3630 = vld [vmem:[%s3610 + $0x98] sm:$0xff]
        %v3631 = vld [vmem:[%s3610 + $0xa0] sm:$0xff]
        %v3632 = vld [vmem:[%s3610 + $0xa8] sm:$0xff]
        %v3633 = vld [vmem:[%s3610 + $0xb0] sm:$0xff]
        %v3634 = vld [vmem:[%s3610 + $0xb8] sm:$0xff]
        %v3635 = vld [vmem:[%s3610 + $0xc0] sm:$0xff]
        %v3636 = vld [vmem:[%s3610 + $0xc8] sm:$0xff]
        %v3637 = vld [vmem:[%s3610 + $0xd0] sm:$0xff]
        %v3638 = vld [vmem:[%s3610 + $0xd8] sm:$0xff]
        %v3639 = vld [vmem:[%s3610 + $0xe0] sm:$0xff]
        %v3640 = vld [vmem:[%s3610 + $0xe8] sm:$0xff]
        %v3641 = vld [vmem:[%s3610 + $0xf0] sm:$0xff]
        %v3642 = vld [vmem:[%s3610 + $0xf8] sm:$0xff]
        %3643 = vmatpush.msra.mxu0 %v3626
        %3644 = vmatpush.msra.mxu0 %v3625
        %3645 = vmatpush.msra.mxu0 %v3624
        %3646 = vmatpush.msra.mxu0 %v3623
        %3647 = vmatpush.msra.mxu0 %v3622
        %3648 = vmatpush.msra.mxu0 %v3621
        %3649 = vmatpush.msra.mxu0 %v3620
        %3650 = vmatpush.msra.mxu0 %v3619
        %3651 = vmatpush.msra.mxu0 %v3618
        %3652 = vmatpush.msra.mxu0 %v3617
        %3653 = vmatpush.msra.mxu0 %v3616
        %3654 = vmatpush.msra.mxu0 %v3615
        %3655 = vmatpush.msra.mxu0 %v3614
        %3656 = vmatpush.msra.mxu0 %v3613
        %3657 = vmatpush.msra.mxu0 %v3612
        %3658 = vmatpush.msra.mxu0 %v3611
        %3659 = vmatmul.f32.gmra.mxu0 %v2364
        %v3660 = vpop.f32.mrf.mxu0
        %v3661 = vadd.f32 0.0, %v3660
        %3662 = vdwg.mxu0
        %3663 = vmatpush.msra.mxu0 %v3642
        %3664 = vmatpush.msra.mxu0 %v3641
        %3665 = vmatpush.msra.mxu0 %v3640
        %3666 = vmatpush.msra.mxu0 %v3639
        %3667 = vmatpush.msra.mxu0 %v3638
        %3668 = vmatpush.msra.mxu0 %v3637
        %3669 = vmatpush.msra.mxu0 %v3636
        %3670 = vmatpush.msra.mxu0 %v3635
        %3671 = vmatpush.msra.mxu0 %v3634
        %3672 = vmatpush.msra.mxu0 %v3633
        %3673 = vmatpush.msra.mxu0 %v3632
        %3674 = vmatpush.msra.mxu0 %v3631
        %3675 = vmatpush.msra.mxu0 %v3630
        %3676 = vmatpush.msra.mxu0 %v3629
        %3677 = vmatpush.msra.mxu0 %v3628
        %3678 = vmatpush.msra.mxu0 %v3627
        %3679 = vmatmul.f32.gmra.mxu0 %v2365
        %v3680 = vpop.f32.mrf.mxu0
        %v3681 = vadd.f32 %v3661, %v3680
        %3682 = vdwg.mxu0
        %v3683 = vadd.f32 %v3609, %v3681
        %s3684 = scalar_lea.vmem %s5, 4352
        %v3685 = vld [vmem:[%s3684] sm:$0xff]
        %v3686 = vld [vmem:[%s3684 + $0x8] sm:$0xff]
        %v3687 = vld [vmem:[%s3684 + $0x10] sm:$0xff]
        %v3688 = vld [vmem:[%s3684 + $0x18] sm:$0xff]
        %v3689 = vld [vmem:[%s3684 + $0x20] sm:$0xff]
        %v3690 = vld [vmem:[%s3684 + $0x28] sm:$0xff]
        %v3691 = vld [vmem:[%s3684 + $0x30] sm:$0xff]
        %v3692 = vld [vmem:[%s3684 + $0x38] sm:$0xff]
        %v3693 = vld [vmem:[%s3684 + $0x40] sm:$0xff]
        %v3694 = vld [vmem:[%s3684 + $0x48] sm:$0xff]
        %v3695 = vld [vmem:[%s3684 + $0x50] sm:$0xff]
        %v3696 = vld [vmem:[%s3684 + $0x58] sm:$0xff]
        %v3697 = vld [vmem:[%s3684 + $0x60] sm:$0xff]
        %v3698 = vld [vmem:[%s3684 + $0x68] sm:$0xff]
        %v3699 = vld [vmem:[%s3684 + $0x70] sm:$0xff]
        %v3700 = vld [vmem:[%s3684 + $0x78] sm:$0xff]
        %v3701 = vld [vmem:[%s3684 + $0x80] sm:$0xff]
        %v3702 = vld [vmem:[%s3684 + $0x88] sm:$0xff]
        %v3703 = vld [vmem:[%s3684 + $0x90] sm:$0xff]
        %v3704 = vld [vmem:[%s3684 + $0x98] sm:$0xff]
        %v3705 = vld [vmem:[%s3684 + $0xa0] sm:$0xff]
        %v3706 = vld [vmem:[%s3684 + $0xa8] sm:$0xff]
        %v3707 = vld [vmem:[%s3684 + $0xb0] sm:$0xff]
        %v3708 = vld [vmem:[%s3684 + $0xb8] sm:$0xff]
        %v3709 = vld [vmem:[%s3684 + $0xc0] sm:$0xff]
        %v3710 = vld [vmem:[%s3684 + $0xc8] sm:$0xff]
        %v3711 = vld [vmem:[%s3684 + $0xd0] sm:$0xff]
        %v3712 = vld [vmem:[%s3684 + $0xd8] sm:$0xff]
        %v3713 = vld [vmem:[%s3684 + $0xe0] sm:$0xff]
        %v3714 = vld [vmem:[%s3684 + $0xe8] sm:$0xff]
        %v3715 = vld [vmem:[%s3684 + $0xf0] sm:$0xff]
        %v3716 = vld [vmem:[%s3684 + $0xf8] sm:$0xff]
        %v3719 = vrot.slane %v2364, 1
        %v3720 = vrot.slane %v2365, 1
        %3723 = vmatpush.msra.mxu0 %v3700
        %3724 = vmatpush.msra.mxu0 %v3699
        %3725 = vmatpush.msra.mxu0 %v3698
        %3726 = vmatpush.msra.mxu0 %v3697
        %3727 = vmatpush.msra.mxu0 %v3696
        %3728 = vmatpush.msra.mxu0 %v3695
        %3729 = vmatpush.msra.mxu0 %v3694
        %3730 = vmatpush.msra.mxu0 %v3693
        %3731 = vmatpush.msra.mxu0 %v3692
        %3732 = vmatpush.msra.mxu0 %v3691
        %3733 = vmatpush.msra.mxu0 %v3690
        %3734 = vmatpush.msra.mxu0 %v3689
        %3735 = vmatpush.msra.mxu0 %v3688
        %3736 = vmatpush.msra.mxu0 %v3687
        %3737 = vmatpush.msra.mxu0 %v3686
        %3738 = vmatpush.msra.mxu0 %v3685
        %3739 = vmatmul.f32.gmra.mxu0 %v3719
        %v3740 = vpop.f32.mrf.mxu0
        %v3741 = vadd.f32 0.0, %v3740
        %3742 = vdwg.mxu0
        %3743 = vmatpush.msra.mxu0 %v3716
        %3744 = vmatpush.msra.mxu0 %v3715
        %3745 = vmatpush.msra.mxu0 %v3714
        %3746 = vmatpush.msra.mxu0 %v3713
        %3747 = vmatpush.msra.mxu0 %v3712
        %3748 = vmatpush.msra.mxu0 %v3711
        %3749 = vmatpush.msra.mxu0 %v3710
        %3750 = vmatpush.msra.mxu0 %v3709
        %3751 = vmatpush.msra.mxu0 %v3708
        %3752 = vmatpush.msra.mxu0 %v3707
        %3753 = vmatpush.msra.mxu0 %v3706
        %3754 = vmatpush.msra.mxu0 %v3705
        %3755 = vmatpush.msra.mxu0 %v3704
        %3756 = vmatpush.msra.mxu0 %v3703
        %3757 = vmatpush.msra.mxu0 %v3702
        %3758 = vmatpush.msra.mxu0 %v3701
        %3759 = vmatmul.f32.gmra.mxu0 %v3720
        %v3760 = vpop.f32.mrf.mxu0
        %v3761 = vadd.f32 %v3741, %v3760
        %3762 = vdwg.mxu0
        %v3763 = vadd.f32 %v3683, %v3761
        %s3764 = scalar_lea.vmem %s5, 4608
        %v3765 = vld [vmem:[%s3764] sm:$0xff]
        %v3766 = vld [vmem:[%s3764 + $0x8] sm:$0xff]
        %v3767 = vld [vmem:[%s3764 + $0x10] sm:$0xff]
        %v3768 = vld [vmem:[%s3764 + $0x18] sm:$0xff]
        %v3769 = vld [vmem:[%s3764 + $0x20] sm:$0xff]
        %v3770 = vld [vmem:[%s3764 + $0x28] sm:$0xff]
        %v3771 = vld [vmem:[%s3764 + $0x30] sm:$0xff]
        %v3772 = vld [vmem:[%s3764 + $0x38] sm:$0xff]
        %v3773 = vld [vmem:[%s3764 + $0x40] sm:$0xff]
        %v3774 = vld [vmem:[%s3764 + $0x48] sm:$0xff]
        %v3775 = vld [vmem:[%s3764 + $0x50] sm:$0xff]
        %v3776 = vld [vmem:[%s3764 + $0x58] sm:$0xff]
        %v3777 = vld [vmem:[%s3764 + $0x60] sm:$0xff]
        %v3778 = vld [vmem:[%s3764 + $0x68] sm:$0xff]
        %v3779 = vld [vmem:[%s3764 + $0x70] sm:$0xff]
        %v3780 = vld [vmem:[%s3764 + $0x78] sm:$0xff]
        %v3781 = vld [vmem:[%s3764 + $0x80] sm:$0xff]
        %v3782 = vld [vmem:[%s3764 + $0x88] sm:$0xff]
        %v3783 = vld [vmem:[%s3764 + $0x90] sm:$0xff]
        %v3784 = vld [vmem:[%s3764 + $0x98] sm:$0xff]
        %v3785 = vld [vmem:[%s3764 + $0xa0] sm:$0xff]
        %v3786 = vld [vmem:[%s3764 + $0xa8] sm:$0xff]
        %v3787 = vld [vmem:[%s3764 + $0xb0] sm:$0xff]
        %v3788 = vld [vmem:[%s3764 + $0xb8] sm:$0xff]
        %v3789 = vld [vmem:[%s3764 + $0xc0] sm:$0xff]
        %v3790 = vld [vmem:[%s3764 + $0xc8] sm:$0xff]
        %v3791 = vld [vmem:[%s3764 + $0xd0] sm:$0xff]
        %v3792 = vld [vmem:[%s3764 + $0xd8] sm:$0xff]
        %v3793 = vld [vmem:[%s3764 + $0xe0] sm:$0xff]
        %v3794 = vld [vmem:[%s3764 + $0xe8] sm:$0xff]
        %v3795 = vld [vmem:[%s3764 + $0xf0] sm:$0xff]
        %v3796 = vld [vmem:[%s3764 + $0xf8] sm:$0xff]
        %v3797 = vrot.slane %v2364, 2
        %v3798 = vrot.slane %v2365, 2
        %3801 = vmatpush.msra.mxu0 %v3780
        %3802 = vmatpush.msra.mxu0 %v3779
        %3803 = vmatpush.msra.mxu0 %v3778
        %3804 = vmatpush.msra.mxu0 %v3777
        %3805 = vmatpush.msra.mxu0 %v3776
        %3806 = vmatpush.msra.mxu0 %v3775
        %3807 = vmatpush.msra.mxu0 %v3774
        %3808 = vmatpush.msra.mxu0 %v3773
        %3809 = vmatpush.msra.mxu0 %v3772
        %3810 = vmatpush.msra.mxu0 %v3771
        %3811 = vmatpush.msra.mxu0 %v3770
        %3812 = vmatpush.msra.mxu0 %v3769
        %3813 = vmatpush.msra.mxu0 %v3768
        %3814 = vmatpush.msra.mxu0 %v3767
        %3815 = vmatpush.msra.mxu0 %v3766
        %3816 = vmatpush.msra.mxu0 %v3765
        %3817 = vmatmul.f32.gmra.mxu0 %v3797
        %v3818 = vpop.f32.mrf.mxu0
        %v3819 = vadd.f32 0.0, %v3818
        %3820 = vdwg.mxu0
        %3821 = vmatpush.msra.mxu0 %v3796
        %3822 = vmatpush.msra.mxu0 %v3795
        %3823 = vmatpush.msra.mxu0 %v3794
        %3824 = vmatpush.msra.mxu0 %v3793
        %3825 = vmatpush.msra.mxu0 %v3792
        %3826 = vmatpush.msra.mxu0 %v3791
        %3827 = vmatpush.msra.mxu0 %v3790
        %3828 = vmatpush.msra.mxu0 %v3789
        %3829 = vmatpush.msra.mxu0 %v3788
        %3830 = vmatpush.msra.mxu0 %v3787
        %3831 = vmatpush.msra.mxu0 %v3786
        %3832 = vmatpush.msra.mxu0 %v3785
        %3833 = vmatpush.msra.mxu0 %v3784
        %3834 = vmatpush.msra.mxu0 %v3783
        %3835 = vmatpush.msra.mxu0 %v3782
        %3836 = vmatpush.msra.mxu0 %v3781
        %3837 = vmatmul.f32.gmra.mxu0 %v3798
        %v3838 = vpop.f32.mrf.mxu0
        %v3839 = vadd.f32 %v3819, %v3838
        %3840 = vdwg.mxu0
        %v3841 = vadd.f32 %v3763, %v3839
        %s3842 = scalar_lea.vmem %s5, 4864
        %v3843 = vld [vmem:[%s3842] sm:$0xff]
        %v3844 = vld [vmem:[%s3842 + $0x8] sm:$0xff]
        %v3845 = vld [vmem:[%s3842 + $0x10] sm:$0xff]
        %v3846 = vld [vmem:[%s3842 + $0x18] sm:$0xff]
        %v3847 = vld [vmem:[%s3842 + $0x20] sm:$0xff]
        %v3848 = vld [vmem:[%s3842 + $0x28] sm:$0xff]
        %v3849 = vld [vmem:[%s3842 + $0x30] sm:$0xff]
        %v3850 = vld [vmem:[%s3842 + $0x38] sm:$0xff]
        %v3851 = vld [vmem:[%s3842 + $0x40] sm:$0xff]
        %v3852 = vld [vmem:[%s3842 + $0x48] sm:$0xff]
        %v3853 = vld [vmem:[%s3842 + $0x50] sm:$0xff]
        %v3854 = vld [vmem:[%s3842 + $0x58] sm:$0xff]
        %v3855 = vld [vmem:[%s3842 + $0x60] sm:$0xff]
        %v3856 = vld [vmem:[%s3842 + $0x68] sm:$0xff]
        %v3857 = vld [vmem:[%s3842 + $0x70] sm:$0xff]
        %v3858 = vld [vmem:[%s3842 + $0x78] sm:$0xff]
        %v3859 = vld [vmem:[%s3842 + $0x80] sm:$0xff]
        %v3860 = vld [vmem:[%s3842 + $0x88] sm:$0xff]
        %v3861 = vld [vmem:[%s3842 + $0x90] sm:$0xff]
        %v3862 = vld [vmem:[%s3842 + $0x98] sm:$0xff]
        %v3863 = vld [vmem:[%s3842 + $0xa0] sm:$0xff]
        %v3864 = vld [vmem:[%s3842 + $0xa8] sm:$0xff]
        %v3865 = vld [vmem:[%s3842 + $0xb0] sm:$0xff]
        %v3866 = vld [vmem:[%s3842 + $0xb8] sm:$0xff]
        %v3867 = vld [vmem:[%s3842 + $0xc0] sm:$0xff]
        %v3868 = vld [vmem:[%s3842 + $0xc8] sm:$0xff]
        %v3869 = vld [vmem:[%s3842 + $0xd0] sm:$0xff]
        %v3870 = vld [vmem:[%s3842 + $0xd8] sm:$0xff]
        %v3871 = vld [vmem:[%s3842 + $0xe0] sm:$0xff]
        %v3872 = vld [vmem:[%s3842 + $0xe8] sm:$0xff]
        %v3873 = vld [vmem:[%s3842 + $0xf0] sm:$0xff]
        %v3874 = vld [vmem:[%s3842 + $0xf8] sm:$0xff]
        %v3875 = vrot.slane %v2364, 3
        %v3876 = vrot.slane %v2365, 3
        %3879 = vmatpush.msra.mxu0 %v3858
        %3880 = vmatpush.msra.mxu0 %v3857
        %3881 = vmatpush.msra.mxu0 %v3856
        %3882 = vmatpush.msra.mxu0 %v3855
        %3883 = vmatpush.msra.mxu0 %v3854
        %3884 = vmatpush.msra.mxu0 %v3853
        %3885 = vmatpush.msra.mxu0 %v3852
        %3886 = vmatpush.msra.mxu0 %v3851
        %3887 = vmatpush.msra.mxu0 %v3850
        %3888 = vmatpush.msra.mxu0 %v3849
        %3889 = vmatpush.msra.mxu0 %v3848
        %3890 = vmatpush.msra.mxu0 %v3847
        %3891 = vmatpush.msra.mxu0 %v3846
        %3892 = vmatpush.msra.mxu0 %v3845
        %3893 = vmatpush.msra.mxu0 %v3844
        %3894 = vmatpush.msra.mxu0 %v3843
        %3895 = vmatmul.f32.gmra.mxu0 %v3875
        %v3896 = vpop.f32.mrf.mxu0
        %v3897 = vadd.f32 0.0, %v3896
        %3898 = vdwg.mxu0
        %3899 = vmatpush.msra.mxu0 %v3874
        %3900 = vmatpush.msra.mxu0 %v3873
        %3901 = vmatpush.msra.mxu0 %v3872
        %3902 = vmatpush.msra.mxu0 %v3871
        %3903 = vmatpush.msra.mxu0 %v3870
        %3904 = vmatpush.msra.mxu0 %v3869
        %3905 = vmatpush.msra.mxu0 %v3868
        %3906 = vmatpush.msra.mxu0 %v3867
        %3907 = vmatpush.msra.mxu0 %v3866
        %3908 = vmatpush.msra.mxu0 %v3865
        %3909 = vmatpush.msra.mxu0 %v3864
        %3910 = vmatpush.msra.mxu0 %v3863
        %3911 = vmatpush.msra.mxu0 %v3862
        %3912 = vmatpush.msra.mxu0 %v3861
        %3913 = vmatpush.msra.mxu0 %v3860
        %3914 = vmatpush.msra.mxu0 %v3859
        %3915 = vmatmul.f32.gmra.mxu0 %v3876
        %v3916 = vpop.f32.mrf.mxu0
        %v3917 = vadd.f32 %v3897, %v3916
        %3918 = vdwg.mxu0
        %v3919 = vadd.f32 %v3841, %v3917
        %vm3920 = vcmask 114688
        %3921 = vst.msk [vmem:[%s270] sm:$0x1] %vm3920, %v3919
        %s3922 = sand.u32 %s181, 1
        %s3923 = scalar_lea.sflag [#allocation4], %s3922
        %s3924 = sand.u32 %s181, 1
        %s3925 = scalar_lea.vmem [#allocation3], %s3924
        // Predicated region
        $region49: #{simple_net_forward.1} parent=47 // pred_check
          %p3926 = pneg %p191
        $region50: #{simple_net_forward.1} parent=47 // pred_check_branch
          %3928 = sbr.rel (%p3926) target = $region52
        $region51: #{simple_net_forward.1} parent=47 // pred_region
          %3930 = vsyncadd %s3923, 0
          %s3931 = scalar_lea.hbm %s7, %s21
          %s3933 = sshll.u32 %s3925, 4
          %s3934 = int_to_ptr.vmem [resolvable:$true] %s3933
          %s3935 = sshll.u32 %s3931, 4
          %s3936 = int_to_ptr.hbm [resolvable:$true] %s3935
          %3938 = dma.vmem_to_hbm [thread:$0]  %s3934, 16, %s3936, %s3923
        $region52: #{simple_net_forward.1} parent=47 // pred_fallthru
          _
      $region48: #{simple_net_forward.1} parent=5 // pred_fallthru
        _
      %p3939 = scmp.le.s32.totalorder 2, %s16
      // Predicated region
      $region53: #{simple_net_forward.1} parent=5 // pred_check
        %p3940 = pneg %p3939
      $region54: #{simple_net_forward.1} parent=5 // pred_check_branch
        %3942 = sbr.rel (%p3940) target = $region56
      $region55: #{simple_net_forward.1} parent=5 // pred_region
        %s3943 = ssub.s32 %s16, 2
        // Predicated region
        $region57: #{simple_net_forward.1} parent=55 // pred_check
          %p3944 = pneg %p197
        $region58: #{simple_net_forward.1} parent=55 // pred_check_branch
          %3946 = sbr.rel (%p3944) target = $region60
        $region59: #{simple_net_forward.1} parent=55 // pred_region
          %s3947 = sand.u32 %s182, 1
          %s3948 = scalar_lea.sflag [#allocation4], %s3947
          %s3949 = sand.u32 %s182, 1
          %s3950 = scalar_lea.vmem [#allocation3], %s3949
          %3952 = dma.done %s3948, 16
        $region60: #{simple_net_forward.1} parent=55 // pred_fallthru
          _
      $region56: #{simple_net_forward.1} parent=5 // pred_fallthru
        _
    $region6: #{simple_net_forward.1} parent=1 // loop_footer
      %s20 = sadd.s32 1, %s16
    $region7: #{simple_net_forward.1} parent=1 // loop_footer_branch
      %15 = sbr.rel target = $region3
    $region8: #{simple_net_forward.1} parent=1 // loop_exit
      _
    %3953 = vsyncpa [#allocation4], 1
    %s3954 = scalar_lea.sflag [#allocation4], 1
    %3955 = vsyncpa %s3954, 1

</llo_original>
